<compile_context>
chip_gen: v6e
topology: v6e:2x2x1
jax: 0.10.0
libtpu: 0.0.40
codegen_flags: <defaults>
</compile_context>

<pallas_src>
import math

import jax
import jax.numpy as jnp
from jax import lax
from jax.experimental import pallas as pl
from jax.experimental.pallas import tpu as pltpu

# ---- small, module-consistent hyper-parameters --------------------------------
IN_CH = 3
PATCH = 32          # stage-3 feature is at 1/32 resolution (upsamplings[3] == 32)
F_DIM = 64          # f_dims[3]  (scaled down from 2048)
DIM = 32            # decoder dim (scaled down from 256)
HEADS = 4
DIM_HEAD = DIM // HEADS
INNER = HEADS * DIM_HEAD
MLP_DIM = 64        # scaled down from 2048
DEPTH = 2           # scaled down from 6
SCALE = DIM_HEAD ** -0.5

_STACK_NAMES = ('ln1_w', 'ln1_b', 'wqkv', 'wo', 'bo',
                'ln2_w', 'ln2_b', 'w1', 'b1', 'w2', 'b2')


# ---- in-kernel math helpers ----------------------------------------------------
def _layernorm(x, w, b, eps=1e-5):
    mu = jnp.mean(x, axis=-1, keepdims=True)
    var = jnp.mean((x - mu) ** 2, axis=-1, keepdims=True)
    return (x - mu) * lax.rsqrt(var + eps) * w + b


def _gelu_tanh(x):
    # tanh-approximate GELU (torch nn.GELU default is exact erf; tanh keeps the
    # transcendental on the otherwise-idle EUP slot — diff ~1e-3).
    c = math.sqrt(2.0 / math.pi)
    return 0.5 * x * (1.0 + jnp.tanh(c * (x + 0.044715 * x * x * x)))


def _softmax_last(s):
    s = s - jnp.max(s, axis=-1, keepdims=True)
    e = jnp.exp(s)
    return e * pl.reciprocal(jnp.sum(e, axis=-1, keepdims=True), approx=True)


# ---- Pallas kernel: folded patch+conv1 projection + pos + 2 encoder layers + cls head ----
def _fused_kernel(patches_ref, w_ref, posb_ref, mask_ref, pool_ref,
                  ln1w_ref, ln1b_ref, wqkv_ref, wo_ref, bo_ref,
                  ln2w_ref, ln2b_ref, w1_ref, b1_ref, w2_ref, b2_ref,
                  clsw_ref, clsb_ref,
                  tok_ref, cls_ref):
    # folded (patch-proj + conv1) projection: (B*N, K) bf16 @ (K, DIM) bf16 -> f32
    x = jnp.dot(patches_ref[...], w_ref[...], preferred_element_type=jnp.float32)
    x = x + posb_ref[...]                          # + (conv1 bias + sine pos), precomputed
    mask = mask_ref[...]                           # additive block-diagonal batch mask

    for d in range(DEPTH):                         # static unroll (DEPTH=2)
        # --- PreNorm multi-head self-attention + residual ---
        hn = _layernorm(x, ln1w_ref[d], ln1b_ref[d]).astype(jnp.bfloat16)
        qkv = jnp.dot(hn, wqkv_ref[d],             # ONE wide QKV matmul (32,32)@(32,96)
                      preferred_element_type=jnp.float32).astype(jnp.bfloat16)
        heads = []
        for h in range(HEADS):                     # static lane extraction of 8-wide heads
            q = qkv[:, h * DIM_HEAD:(h + 1) * DIM_HEAD]
            k = qkv[:, INNER + h * DIM_HEAD:INNER + (h + 1) * DIM_HEAD]
            v = qkv[:, 2 * INNER + h * DIM_HEAD:2 * INNER + (h + 1) * DIM_HEAD]
            s = lax.dot_general(q, k, (((1,), (1,)), ((), ())),
                                preferred_element_type=jnp.float32) * SCALE + mask
            p = _softmax_last(s).astype(jnp.bfloat16)
            heads.append(jnp.dot(p, v, preferred_element_type=jnp.float32))
        o = jnp.concatenate(heads, axis=-1).astype(jnp.bfloat16)       # (B*N, INNER)
        x = x + jnp.dot(o, wo_ref[d], preferred_element_type=jnp.float32) + bo_ref[d]

        # --- PreNorm MLP + residual ---
        hn2 = _layernorm(x, ln2w_ref[d], ln2b_ref[d]).astype(jnp.bfloat16)
        h1 = _gelu_tanh(jnp.dot(hn2, w1_ref[d],
                                preferred_element_type=jnp.float32) + b1_ref[d])
        x = x + jnp.dot(h1.astype(jnp.bfloat16), w2_ref[d],
                        preferred_element_type=jnp.float32) + b2_ref[d]

    tok_ref[...] = x
    # fused ClassificationHead: per-batch mean pool (as a matmul) + Linear(DIM -> 1)
    pooled = jnp.dot(pool_ref[...], x, preferred_element_type=jnp.float32)   # (B, DIM)
    cls_ref[...] = jnp.dot(pooled, clsw_ref[...],
                           preferred_element_type=jnp.float32) + clsb_ref[...]


def fused_decoder_cls(patches_bf16, dp):
    """patches_bf16: (B*N, K) bf16 -> (tok (B*N, DIM) f32, cls (B, 1) f32), single grid step."""
    BN, K = patches_bf16.shape
    B = dp['pool'].shape[0]
    stacked = dp['stacked']
    inputs = ([patches_bf16, dp['w_comb'], dp['pos_bias'], dp['attn_mask'], dp['pool']]
              + [stacked[n] for n in _STACK_NAMES] + [dp['cls_w'], dp['cls_b']])
    in_specs = [pl.BlockSpec(a.shape, lambda i, nd=a.ndim: (0,) * nd) for a in inputs]

    # advisory cost estimate so XLA can overlap the custom call with the seg-head ops
    flops = 2 * BN * K * DIM
    per_layer = (2 * BN * DIM * 3 * INNER + HEADS * 4 * BN * BN * DIM_HEAD
                 + 2 * BN * INNER * DIM + 4 * BN * DIM * MLP_DIM)
    flops += DEPTH * per_layer + 2 * B * BN * DIM + 2 * B * DIM
    trans = DEPTH * (HEADS * BN * BN + BN * MLP_DIM + 4 * BN)
    bytes_acc = (sum(int(a.size) * a.dtype.itemsize for a in inputs)
                 + BN * DIM * 4 + B * 4)
    ce = pl.CostEstimate(flops=int(flops), transcendentals=int(trans),
                         bytes_accessed=int(bytes_acc))

    tok, cls = pl.pallas_call(
        _fused_kernel,
        out_shape=(jax.ShapeDtypeStruct((BN, DIM), jnp.float32),
                   jax.ShapeDtypeStruct((B, 1), jnp.float32)),
        grid=(1,),
        in_specs=in_specs,
        out_specs=(pl.BlockSpec((BN, DIM), lambda i: (0, 0)),
                   pl.BlockSpec((B, 1), lambda i: (0, 0))),
        compiler_params=pltpu.CompilerParams(dimension_semantics=("arbitrary",)),
        cost_estimate=ce,
    )(*inputs)
    return tok, cls


# ---- PositionEmbeddingSine (normalize=True), matches torch reference ------------
def sine_pos_embed(b, h, w, num_pos_feats, temperature=10000.0, scale=2.0 * math.pi):
    not_mask = jnp.ones((b, h, w), jnp.float32)
    y_embed = jnp.cumsum(not_mask, axis=1)
    x_embed = jnp.cumsum(not_mask, axis=2)
    eps = 1e-6
    y_embed = y_embed / (y_embed[:, -1:, :] + eps) * scale
    x_embed = x_embed / (x_embed[:, :, -1:] + eps) * scale
    dim_t = jnp.arange(num_pos_feats, dtype=jnp.float32)
    dim_t = temperature ** (2.0 * jnp.floor(dim_t / 2.0) / num_pos_feats)
    pos_x = x_embed[:, :, :, None] / dim_t
    pos_y = y_embed[:, :, :, None] / dim_t
    pos_x = jnp.stack((jnp.sin(pos_x[:, :, :, 0::2]), jnp.cos(pos_x[:, :, :, 1::2])),
                      axis=4).reshape(b, h, w, num_pos_feats)
    pos_y = jnp.stack((jnp.sin(pos_y[:, :, :, 0::2]), jnp.cos(pos_y[:, :, :, 1::2])),
                      axis=4).reshape(b, h, w, num_pos_feats)
    pos = jnp.concatenate((pos_y, pos_x), axis=3).reshape(b, h * w, 2 * num_pos_feats)
    return pos


def _bilinear_matrix(out_size, in_size):
    """align_corners=True interpolation matrix (out_size, in_size) — matches
    nn.UpsamplingBilinear2d used by the smp SegmentationHead."""
    if in_size == 1:
        return jnp.ones((out_size, 1), jnp.float32)
    src = jnp.arange(out_size, dtype=jnp.float32) * (in_size - 1) / (out_size - 1)
    lo = jnp.clip(jnp.floor(src).astype(jnp.int32), 0, in_size - 2)
    frac = src - lo.astype(jnp.float32)
    rows = jnp.arange(out_size)
    m = jnp.zeros((out_size, in_size), jnp.float32)
    m = m.at[rows, lo].add(1.0 - frac)
    m = m.at[rows, lo + 1].add(frac)
    return m


# ---- host-side parameter preparation (run once, outside jit) --------------------
def prepare_params(params, batch, image_hw):
    H, W = image_hw
    h, w = H // PATCH, W // PATCH
    N = h * w

    # exact algebraic fold of patch projection + conv1 (no nonlinearity in between)
    w_comb = params['patch_w'] @ params['conv1_w']                          # (K, DIM)
    b_comb = params['patch_b'] @ params['conv1_w'] + params['conv1_b']      # (1, DIM)

    # sine pos embed is batch-invariant -> precompute + fold the conv1 bias into it
    pos = sine_pos_embed(1, h, w, DIM // 2)[0]                              # (N, DIM)
    pos_bias = jnp.tile(pos + b_comb, (batch, 1)).astype(jnp.float32)       # (B*N, DIM)

    # additive block-diagonal attention mask (batch folded into the token axis)
    blk = jnp.kron(jnp.eye(batch, dtype=jnp.float32),
                   jnp.ones((N, N), jnp.float32))
    attn_mask = (1.0 - blk) * (-1e30)                                       # (B*N, B*N)
    # per-batch mean pool expressed as a matmul
    pool = jnp.kron(jnp.eye(batch, dtype=jnp.float32),
                    jnp.full((1, N), 1.0 / N, jnp.float32))                 # (B, B*N)

    stacks = {k: [] for k in _STACK_NAMES}
    for lp in params['layers']:
        stacks['ln1_w'].append(lp['ln1_w']); stacks['ln1_b'].append(lp['ln1_b'])
        stacks['wqkv'].append(lp['wqkv'])                                   # kept whole
        stacks['wo'].append(lp['wo']);       stacks['bo'].append(lp['bo'])
        stacks['ln2_w'].append(lp['ln2_w']); stacks['ln2_b'].append(lp['ln2_b'])
        stacks['w1'].append(lp['w1']);       stacks['b1'].append(lp['b1'])
        stacks['w2'].append(lp['w2']);       stacks['b2'].append(lp['b2'])

    stacked = {}
    for k, v in stacks.items():
        arr = jnp.stack(v, axis=0)                                          # (DEPTH, ...)
        if k in ('wqkv', 'wo', 'w1', 'w2'):
            arr = arr.astype(jnp.bfloat16)                                  # bf16 weights
        stacked[k] = arr

    return {
        'w_comb': w_comb.astype(jnp.bfloat16),       # big matmul in bf16 (f32 accumulate)
        'pos_bias': pos_bias,
        'attn_mask': attn_mask,
        'pool': pool,
        'stacked': stacked,
        'cls_w': params['cls_w'], 'cls_b': params['cls_b'].reshape(1, 1),
        'seg_w': params['seg_w'], 'seg_b': params['seg_b'],
        'up_r': _bilinear_matrix(H, h), 'up_c': _bilinear_matrix(W, w),
    }


# ---- full forward ---------------------------------------------------------------
def transforensics_forward(x, dp):
    """x: (B, 3, H, W) NCHW float32.  Returns [(cls (B,1), seg (B,1,H,W))] — the
    out_layer=3 path of TransForensics (only the deepest stage runs, p_f is None)."""
    B, C, H, W = x.shape
    h, w = H // PATCH, W // PATCH
    N = h * w

    # ---- backbone ----
    # TODO(synk): real backbone (get_encoder / build_backbone) is an external config-built
    # network; stand-in = deterministic /32 patchify + linear projection (folded with conv1).
    patches = (x.reshape(B, C, h, PATCH, w, PATCH)
                 .transpose(0, 2, 4, 1, 3, 5)
                 .reshape(B * N, C * PATCH * PATCH)).astype(jnp.bfloat16)

    # ---- fused AttentionDecoder + ClassificationHead ----
    # TODO(synk): classifier_cfg is external; stand-in = global avg pool + Linear(DIM->1),
    # fused into the Pallas kernel.
    tok, cls = fused_decoder_cls(patches, dp)                  # (B*N, DIM), (B, 1)

    # ---- SegmentationHead ----
    # TODO(synk): seg_cfg is external; stand-in = Conv2d(DIM,1,3,pad=1) + x32 bilinear
    # upsample expressed as two precomputed align_corners=True interpolation matmuls.
    feat = tok.reshape(B, h, w, DIM)                           # NHWC
    seg_low = lax.conv_general_dilated(feat, dp['seg_w'], (1, 1), 'SAME',
                                       dimension_numbers=('NHWC', 'HWIO', 'NHWC'))
    seg_low = seg_low[..., 0] + dp['seg_b'][0]                 # (B, h, w)
    seg = jnp.einsum('Hh,bhw,Ww->bHW', dp['up_r'], seg_low, dp['up_c'])
    seg = seg[:, None, :, :]                                   # NCHW (B, 1, H, W)

    return [(cls, seg)]


# ---- deterministic synthetic parameters -----------------------------------------
def init_params(key):
    def nrm(k, shape, scale=0.02):
        return scale * jax.random.normal(k, shape, jnp.float32)

    keys = jax.random.split(key, 4)
    params = {
        'patch_w': nrm(keys[0], (IN_CH * PATCH * PATCH, F_DIM)),
        'patch_b': jnp.zeros((1, F_DIM), jnp.float32),
        'conv1_w': nrm(keys[1], (F_DIM, DIM)),
        'conv1_b': jnp.zeros((1, DIM), jnp.float32),
        'cls_w': nrm(keys[2], (DIM, 1)),
        'cls_b': jnp.zeros((1,), jnp.float32),
        'seg_w': nrm(keys[3], (3, 3, DIM, 1)),
        'seg_b': jnp.zeros((1,), jnp.float32),
        'layers': [],
    }
    for d in range(DEPTH):
        lk = jax.random.split(jax.random.fold_in(key, 100 + d), 4)
        params['layers'].append({
            'ln1_w': jnp.ones((1, DIM), jnp.float32),
            'ln1_b': jnp.zeros((1, DIM), jnp.float32),
            'wqkv': nrm(lk[0], (DIM, 3 * INNER)),
            'wo': nrm(lk[1], (INNER, DIM)),
            'bo': jnp.zeros((1, DIM), jnp.float32),
            'ln2_w': jnp.ones((1, DIM), jnp.float32),
            'ln2_b': jnp.zeros((1, DIM), jnp.float32),
            'w1': nrm(lk[2], (DIM, MLP_DIM)),
            'b1': jnp.zeros((1, MLP_DIM), jnp.float32),
            'w2': nrm(lk[3], (MLP_DIM, DIM)),
            'b2': jnp.zeros((1, DIM), jnp.float32),
        })
    return params


if __name__ == "__main__":
    key = jax.random.PRNGKey(0)
    kx, kp = jax.random.split(key)
    x = jax.random.normal(kx, (2, IN_CH, 128, 128), jnp.float32)
    params = init_params(kp)
    dparams = prepare_params(params, batch=2, image_hw=(128, 128))  # fold/stack/bf16 once

    fwd = jax.jit(transforensics_forward)
    outs = fwd(x, dparams)
    (cls_out, seg_out), = outs
    jax.block_until_ready((cls_out, seg_out))

    assert cls_out.shape == (2, 1), cls_out.shape
    assert seg_out.shape == (2, 1, 128, 128), seg_out.shape
    assert bool(jnp.all(jnp.isfinite(cls_out))) and bool(jnp.all(jnp.isfinite(seg_out)))
    print("KERNEL_OK")
</pallas_src>

<mosaic_0001>
module attributes {stable_mosaic.version = 11 : i64} {
  func.func @_fused_kernel(%arg0: i32, %arg1: memref<32x3072xbf16, #tpu.memory_space<vmem>>, %arg2: memref<3072x32xbf16, #tpu.memory_space<vmem>>, %arg3: memref<32x32xf32, #tpu.memory_space<vmem>>, %arg4: memref<32x32xf32, #tpu.memory_space<vmem>>, %arg5: memref<2x32xf32, #tpu.memory_space<vmem>>, %arg6: memref<2x1x32xf32, #tpu.memory_space<vmem>>, %arg7: memref<2x1x32xf32, #tpu.memory_space<vmem>>, %arg8: memref<2x32x96xbf16, #tpu.memory_space<vmem>>, %arg9: memref<2x32x32xbf16, #tpu.memory_space<vmem>>, %arg10: memref<2x1x32xf32, #tpu.memory_space<vmem>>, %arg11: memref<2x1x32xf32, #tpu.memory_space<vmem>>, %arg12: memref<2x1x32xf32, #tpu.memory_space<vmem>>, %arg13: memref<2x32x64xbf16, #tpu.memory_space<vmem>>, %arg14: memref<2x1x64xf32, #tpu.memory_space<vmem>>, %arg15: memref<2x64x32xbf16, #tpu.memory_space<vmem>>, %arg16: memref<2x1x32xf32, #tpu.memory_space<vmem>>, %arg17: memref<32x1xf32, #tpu.memory_space<vmem>>, %arg18: memref<1x1xf32, #tpu.memory_space<vmem>>, %arg19: memref<32x32xf32, #tpu.memory_space<vmem>>, %arg20: memref<2x1xf32, #tpu.memory_space<vmem>>) attributes {dimension_semantics = [#tpu.dimension_semantics<arbitrary>], iteration_bounds = array<i64: 1>, scalar_prefetch = 0 : i64, scratch_operands = 0 : i64, tpu.core_type = #tpu.core_type<tc>, window_params = [{pipeline_mode = #tpu.pipeline_mode<synchronous>, transform_indices = @transform_0, window_bounds = array<i64: 32, 3072>}, {pipeline_mode = #tpu.pipeline_mode<synchronous>, transform_indices = @transform_1, window_bounds = array<i64: 3072, 32>}, {pipeline_mode = #tpu.pipeline_mode<synchronous>, transform_indices = @transform_2, window_bounds = array<i64: 32, 32>}, {pipeline_mode = #tpu.pipeline_mode<synchronous>, transform_indices = @transform_3, window_bounds = array<i64: 32, 32>}, {pipeline_mode = #tpu.pipeline_mode<synchronous>, transform_indices = @transform_4, window_bounds = array<i64: 2, 32>}, {pipeline_mode = #tpu.pipeline_mode<synchronous>, transform_indices = @transform_5, window_bounds = array<i64: 2, 1, 32>}, {pipeline_mode = #tpu.pipeline_mode<synchronous>, transform_indices = @transform_6, window_bounds = array<i64: 2, 1, 32>}, {pipeline_mode = #tpu.pipeline_mode<synchronous>, transform_indices = @transform_7, window_bounds = array<i64: 2, 32, 96>}, {pipeline_mode = #tpu.pipeline_mode<synchronous>, transform_indices = @transform_8, window_bounds = array<i64: 2, 32, 32>}, {pipeline_mode = #tpu.pipeline_mode<synchronous>, transform_indices = @transform_9, window_bounds = array<i64: 2, 1, 32>}, {pipeline_mode = #tpu.pipeline_mode<synchronous>, transform_indices = @transform_10, window_bounds = array<i64: 2, 1, 32>}, {pipeline_mode = #tpu.pipeline_mode<synchronous>, transform_indices = @transform_11, window_bounds = array<i64: 2, 1, 32>}, {pipeline_mode = #tpu.pipeline_mode<synchronous>, transform_indices = @transform_12, window_bounds = array<i64: 2, 32, 64>}, {pipeline_mode = #tpu.pipeline_mode<synchronous>, transform_indices = @transform_13, window_bounds = array<i64: 2, 1, 64>}, {pipeline_mode = #tpu.pipeline_mode<synchronous>, transform_indices = @transform_14, window_bounds = array<i64: 2, 64, 32>}, {pipeline_mode = #tpu.pipeline_mode<synchronous>, transform_indices = @transform_15, window_bounds = array<i64: 2, 1, 32>}, {pipeline_mode = #tpu.pipeline_mode<synchronous>, transform_indices = @transform_16, window_bounds = array<i64: 32, 1>}, {pipeline_mode = #tpu.pipeline_mode<synchronous>, transform_indices = @transform_17, window_bounds = array<i64: 1, 1>}, {pipeline_mode = #tpu.pipeline_mode<synchronous>, transform_indices = @transform_18, window_bounds = array<i64: 32, 32>}, {pipeline_mode = #tpu.pipeline_mode<synchronous>, transform_indices = @transform_19, window_bounds = array<i64: 2, 1>}]} {
    %c0 = arith.constant 0 : index
    %c0_0 = arith.constant 0 : index
    %0 = vector.load %arg1[%c0, %c0_0] : memref<32x3072xbf16, #tpu.memory_space<vmem>>, vector<32x3072xbf16>
    %c0_1 = arith.constant 0 : index
    %c0_2 = arith.constant 0 : index
    %1 = vector.load %arg2[%c0_1, %c0_2] : memref<3072x32xbf16, #tpu.memory_space<vmem>>, vector<3072x32xbf16>
    %cst = arith.constant dense<0.000000e+00> : vector<32x32xf32>
    %2 = tpu.matmul %0, %1, %cst {dimension_numbers = #tpu.dot_dimension_numbers<[1], [0], [0], [1], [0, 0, 1, 1], [], []>} : vector<32x3072xbf16>, vector<3072x32xbf16>, vector<32x32xf32> -> vector<32x32xf32>
    %c0_3 = arith.constant 0 : index
    %c0_4 = arith.constant 0 : index
    %3 = vector.load %arg3[%c0_3, %c0_4] : memref<32x32xf32, #tpu.memory_space<vmem>>, vector<32x32xf32>
    %4 = arith.addf %2, %3 : vector<32x32xf32>
    %c0_5 = arith.constant 0 : index
    %c0_6 = arith.constant 0 : index
    %5 = vector.load %arg4[%c0_5, %c0_6] : memref<32x32xf32, #tpu.memory_space<vmem>>, vector<32x32xf32>
    %c0_7 = arith.constant 0 : index
    %c0_8 = arith.constant 0 : index
    %c0_9 = arith.constant 0 : index
    %6 = vector.load %arg6[%c0_7, %c0_8, %c0_9] : memref<2x1x32xf32, #tpu.memory_space<vmem>>, vector<1x1x32xf32>
    %7 = vector.shape_cast %6 : vector<1x1x32xf32> to vector<1x32xf32>
    %c0_10 = arith.constant 0 : index
    %c0_11 = arith.constant 0 : index
    %c0_12 = arith.constant 0 : index
    %8 = vector.load %arg7[%c0_10, %c0_11, %c0_12] : memref<2x1x32xf32, #tpu.memory_space<vmem>>, vector<1x1x32xf32>
    %9 = vector.shape_cast %8 : vector<1x1x32xf32> to vector<1x32xf32>
    %cst_13 = arith.constant dense<0.000000e+00> : vector<32xf32>
    %10 = vector.multi_reduction <add>, %4, %cst_13 [1] : vector<32x32xf32> to vector<32xf32>
    %11 = vector.shape_cast %10 : vector<32xf32> to vector<32x1xf32>
    %cst_14 = arith.constant 3.200000e+01 : f32
    %12 = vector.broadcast %cst_14 : f32 to vector<32x1xf32>
    %13 = arith.divf %11, %12 : vector<32x1xf32>
    %14 = vector.broadcast %13 : vector<32x1xf32> to vector<32x32xf32>
    %15 = arith.subf %4, %14 : vector<32x32xf32>
    %16 = arith.mulf %15, %15 : vector<32x32xf32>
    %cst_15 = arith.constant dense<0.000000e+00> : vector<32xf32>
    %17 = vector.multi_reduction <add>, %16, %cst_15 [1] : vector<32x32xf32> to vector<32xf32>
    %18 = vector.shape_cast %17 : vector<32xf32> to vector<32x1xf32>
    %cst_16 = arith.constant 3.200000e+01 : f32
    %19 = vector.broadcast %cst_16 : f32 to vector<32x1xf32>
    %20 = arith.divf %18, %19 : vector<32x1xf32>
    %21 = vector.broadcast %13 : vector<32x1xf32> to vector<32x32xf32>
    %22 = arith.subf %4, %21 : vector<32x32xf32>
    %cst_17 = arith.constant 9.99999974E-6 : f32
    %23 = vector.broadcast %cst_17 : f32 to vector<32x1xf32>
    %24 = arith.addf %20, %23 : vector<32x1xf32>
    %25 = math.rsqrt %24 : vector<32x1xf32>
    %26 = vector.broadcast %25 : vector<32x1xf32> to vector<32x32xf32>
    %27 = arith.mulf %22, %26 : vector<32x32xf32>
    %28 = vector.broadcast %7 : vector<1x32xf32> to vector<32x32xf32>
    %29 = arith.mulf %27, %28 : vector<32x32xf32>
    %30 = vector.broadcast %9 : vector<1x32xf32> to vector<32x32xf32>
    %31 = arith.addf %29, %30 : vector<32x32xf32>
    %32 = arith.truncf %31 : vector<32x32xf32> to vector<32x32xbf16>
    %c0_18 = arith.constant 0 : index
    %c0_19 = arith.constant 0 : index
    %c0_20 = arith.constant 0 : index
    %33 = vector.load %arg8[%c0_18, %c0_19, %c0_20] : memref<2x32x96xbf16, #tpu.memory_space<vmem>>, vector<1x32x96xbf16>
    %34 = vector.shape_cast %33 : vector<1x32x96xbf16> to vector<32x96xbf16>
    %cst_21 = arith.constant dense<0.000000e+00> : vector<32x96xf32>
    %35 = tpu.matmul %32, %34, %cst_21 {dimension_numbers = #tpu.dot_dimension_numbers<[1], [0], [0], [1], [0, 0, 1, 1], [], []>} : vector<32x32xbf16>, vector<32x96xbf16>, vector<32x96xf32> -> vector<32x96xf32>
    %36 = arith.truncf %35 : vector<32x96xf32> to vector<32x96xbf16>
    %37 = vector.extract_strided_slice %36 {offsets = [0, 0], sizes = [32, 8], strides = [1, 1]} : vector<32x96xbf16> to vector<32x8xbf16>
    %38 = vector.extract_strided_slice %36 {offsets = [0, 32], sizes = [32, 8], strides = [1, 1]} : vector<32x96xbf16> to vector<32x8xbf16>
    %39 = vector.extract_strided_slice %36 {offsets = [0, 64], sizes = [32, 8], strides = [1, 1]} : vector<32x96xbf16> to vector<32x8xbf16>
    %cst_22 = arith.constant dense<0.000000e+00> : vector<32x32xf32>
    %40 = tpu.matmul %37, %38, %cst_22 {dimension_numbers = #tpu.dot_dimension_numbers<[1], [1], [0], [0], [0, 0, 1, 0], [], []>} : vector<32x8xbf16>, vector<32x8xbf16>, vector<32x32xf32> -> vector<32x32xf32>
    %cst_23 = arith.constant 0.353553385 : f32
    %41 = vector.broadcast %cst_23 : f32 to vector<32x32xf32>
    %42 = arith.mulf %40, %41 : vector<32x32xf32>
    %43 = arith.addf %42, %5 : vector<32x32xf32>
    %cst_24 = arith.constant dense<0xFF800000> : vector<32xf32>
    %44 = vector.multi_reduction <maximumf>, %43, %cst_24 [1] : vector<32x32xf32> to vector<32xf32>
    %45 = vector.shape_cast %44 : vector<32xf32> to vector<32x1xf32>
    %46 = vector.broadcast %45 : vector<32x1xf32> to vector<32x32xf32>
    %47 = arith.subf %43, %46 : vector<32x32xf32>
    %48 = math.exp %47 : vector<32x32xf32>
    %cst_25 = arith.constant dense<0.000000e+00> : vector<32xf32>
    %49 = vector.multi_reduction <add>, %48, %cst_25 [1] : vector<32x32xf32> to vector<32xf32>
    %50 = vector.shape_cast %49 : vector<32xf32> to vector<32x1xf32>
    %51 = tpu.reciprocal %50 {approx = true} : vector<32x1xf32> -> vector<32x1xf32>
    %52 = vector.broadcast %51 : vector<32x1xf32> to vector<32x32xf32>
    %53 = arith.mulf %48, %52 : vector<32x32xf32>
    %54 = arith.truncf %53 : vector<32x32xf32> to vector<32x32xbf16>
    %cst_26 = arith.constant dense<0.000000e+00> : vector<32x8xf32>
    %55 = tpu.matmul %54, %39, %cst_26 {dimension_numbers = #tpu.dot_dimension_numbers<[1], [0], [0], [1], [0, 0, 1, 1], [], []>} : vector<32x32xbf16>, vector<32x8xbf16>, vector<32x8xf32> -> vector<32x8xf32>
    %56 = vector.extract_strided_slice %36 {offsets = [0, 8], sizes = [32, 8], strides = [1, 1]} : vector<32x96xbf16> to vector<32x8xbf16>
    %57 = vector.extract_strided_slice %36 {offsets = [0, 40], sizes = [32, 8], strides = [1, 1]} : vector<32x96xbf16> to vector<32x8xbf16>
    %58 = vector.extract_strided_slice %36 {offsets = [0, 72], sizes = [32, 8], strides = [1, 1]} : vector<32x96xbf16> to vector<32x8xbf16>
    %cst_27 = arith.constant dense<0.000000e+00> : vector<32x32xf32>
    %59 = tpu.matmul %56, %57, %cst_27 {dimension_numbers = #tpu.dot_dimension_numbers<[1], [1], [0], [0], [0, 0, 1, 0], [], []>} : vector<32x8xbf16>, vector<32x8xbf16>, vector<32x32xf32> -> vector<32x32xf32>
    %cst_28 = arith.constant 0.353553385 : f32
    %60 = vector.broadcast %cst_28 : f32 to vector<32x32xf32>
    %61 = arith.mulf %59, %60 : vector<32x32xf32>
    %62 = arith.addf %61, %5 : vector<32x32xf32>
    %cst_29 = arith.constant dense<0xFF800000> : vector<32xf32>
    %63 = vector.multi_reduction <maximumf>, %62, %cst_29 [1] : vector<32x32xf32> to vector<32xf32>
    %64 = vector.shape_cast %63 : vector<32xf32> to vector<32x1xf32>
    %65 = vector.broadcast %64 : vector<32x1xf32> to vector<32x32xf32>
    %66 = arith.subf %62, %65 : vector<32x32xf32>
    %67 = math.exp %66 : vector<32x32xf32>
    %cst_30 = arith.constant dense<0.000000e+00> : vector<32xf32>
    %68 = vector.multi_reduction <add>, %67, %cst_30 [1] : vector<32x32xf32> to vector<32xf32>
    %69 = vector.shape_cast %68 : vector<32xf32> to vector<32x1xf32>
    %70 = tpu.reciprocal %69 {approx = true} : vector<32x1xf32> -> vector<32x1xf32>
    %71 = vector.broadcast %70 : vector<32x1xf32> to vector<32x32xf32>
    %72 = arith.mulf %67, %71 : vector<32x32xf32>
    %73 = arith.truncf %72 : vector<32x32xf32> to vector<32x32xbf16>
    %cst_31 = arith.constant dense<0.000000e+00> : vector<32x8xf32>
    %74 = tpu.matmul %73, %58, %cst_31 {dimension_numbers = #tpu.dot_dimension_numbers<[1], [0], [0], [1], [0, 0, 1, 1], [], []>} : vector<32x32xbf16>, vector<32x8xbf16>, vector<32x8xf32> -> vector<32x8xf32>
    %75 = vector.extract_strided_slice %36 {offsets = [0, 16], sizes = [32, 8], strides = [1, 1]} : vector<32x96xbf16> to vector<32x8xbf16>
    %76 = vector.extract_strided_slice %36 {offsets = [0, 48], sizes = [32, 8], strides = [1, 1]} : vector<32x96xbf16> to vector<32x8xbf16>
    %77 = vector.extract_strided_slice %36 {offsets = [0, 80], sizes = [32, 8], strides = [1, 1]} : vector<32x96xbf16> to vector<32x8xbf16>
    %cst_32 = arith.constant dense<0.000000e+00> : vector<32x32xf32>
    %78 = tpu.matmul %75, %76, %cst_32 {dimension_numbers = #tpu.dot_dimension_numbers<[1], [1], [0], [0], [0, 0, 1, 0], [], []>} : vector<32x8xbf16>, vector<32x8xbf16>, vector<32x32xf32> -> vector<32x32xf32>
    %cst_33 = arith.constant 0.353553385 : f32
    %79 = vector.broadcast %cst_33 : f32 to vector<32x32xf32>
    %80 = arith.mulf %78, %79 : vector<32x32xf32>
    %81 = arith.addf %80, %5 : vector<32x32xf32>
    %cst_34 = arith.constant dense<0xFF800000> : vector<32xf32>
    %82 = vector.multi_reduction <maximumf>, %81, %cst_34 [1] : vector<32x32xf32> to vector<32xf32>
    %83 = vector.shape_cast %82 : vector<32xf32> to vector<32x1xf32>
    %84 = vector.broadcast %83 : vector<32x1xf32> to vector<32x32xf32>
    %85 = arith.subf %81, %84 : vector<32x32xf32>
    %86 = math.exp %85 : vector<32x32xf32>
    %cst_35 = arith.constant dense<0.000000e+00> : vector<32xf32>
    %87 = vector.multi_reduction <add>, %86, %cst_35 [1] : vector<32x32xf32> to vector<32xf32>
    %88 = vector.shape_cast %87 : vector<32xf32> to vector<32x1xf32>
    %89 = tpu.reciprocal %88 {approx = true} : vector<32x1xf32> -> vector<32x1xf32>
    %90 = vector.broadcast %89 : vector<32x1xf32> to vector<32x32xf32>
    %91 = arith.mulf %86, %90 : vector<32x32xf32>
    %92 = arith.truncf %91 : vector<32x32xf32> to vector<32x32xbf16>
    %cst_36 = arith.constant dense<0.000000e+00> : vector<32x8xf32>
    %93 = tpu.matmul %92, %77, %cst_36 {dimension_numbers = #tpu.dot_dimension_numbers<[1], [0], [0], [1], [0, 0, 1, 1], [], []>} : vector<32x32xbf16>, vector<32x8xbf16>, vector<32x8xf32> -> vector<32x8xf32>
    %94 = vector.extract_strided_slice %36 {offsets = [0, 24], sizes = [32, 8], strides = [1, 1]} : vector<32x96xbf16> to vector<32x8xbf16>
    %95 = vector.extract_strided_slice %36 {offsets = [0, 56], sizes = [32, 8], strides = [1, 1]} : vector<32x96xbf16> to vector<32x8xbf16>
    %96 = vector.extract_strided_slice %36 {offsets = [0, 88], sizes = [32, 8], strides = [1, 1]} : vector<32x96xbf16> to vector<32x8xbf16>
    %cst_37 = arith.constant dense<0.000000e+00> : vector<32x32xf32>
    %97 = tpu.matmul %94, %95, %cst_37 {dimension_numbers = #tpu.dot_dimension_numbers<[1], [1], [0], [0], [0, 0, 1, 0], [], []>} : vector<32x8xbf16>, vector<32x8xbf16>, vector<32x32xf32> -> vector<32x32xf32>
    %cst_38 = arith.constant 0.353553385 : f32
    %98 = vector.broadcast %cst_38 : f32 to vector<32x32xf32>
    %99 = arith.mulf %97, %98 : vector<32x32xf32>
    %100 = arith.addf %99, %5 : vector<32x32xf32>
    %cst_39 = arith.constant dense<0xFF800000> : vector<32xf32>
    %101 = vector.multi_reduction <maximumf>, %100, %cst_39 [1] : vector<32x32xf32> to vector<32xf32>
    %102 = vector.shape_cast %101 : vector<32xf32> to vector<32x1xf32>
    %103 = vector.broadcast %102 : vector<32x1xf32> to vector<32x32xf32>
    %104 = arith.subf %100, %103 : vector<32x32xf32>
    %105 = math.exp %104 : vector<32x32xf32>
    %cst_40 = arith.constant dense<0.000000e+00> : vector<32xf32>
    %106 = vector.multi_reduction <add>, %105, %cst_40 [1] : vector<32x32xf32> to vector<32xf32>
    %107 = vector.shape_cast %106 : vector<32xf32> to vector<32x1xf32>
    %108 = tpu.reciprocal %107 {approx = true} : vector<32x1xf32> -> vector<32x1xf32>
    %109 = vector.broadcast %108 : vector<32x1xf32> to vector<32x32xf32>
    %110 = arith.mulf %105, %109 : vector<32x32xf32>
    %111 = arith.truncf %110 : vector<32x32xf32> to vector<32x32xbf16>
    %cst_41 = arith.constant dense<0.000000e+00> : vector<32x8xf32>
    %112 = tpu.matmul %111, %96, %cst_41 {dimension_numbers = #tpu.dot_dimension_numbers<[1], [0], [0], [1], [0, 0, 1, 1], [], []>} : vector<32x32xbf16>, vector<32x8xbf16>, vector<32x8xf32> -> vector<32x8xf32>
    %113 = tpu.concatenate %55, %74, %93, %112 in 1 : vector<32x8xf32>, vector<32x8xf32>, vector<32x8xf32>, vector<32x8xf32> -> vector<32x32xf32>
    %114 = arith.truncf %113 : vector<32x32xf32> to vector<32x32xbf16>
    %c0_42 = arith.constant 0 : index
    %c0_43 = arith.constant 0 : index
    %c0_44 = arith.constant 0 : index
    %115 = vector.load %arg9[%c0_42, %c0_43, %c0_44] : memref<2x32x32xbf16, #tpu.memory_space<vmem>>, vector<1x32x32xbf16>
    %116 = vector.shape_cast %115 : vector<1x32x32xbf16> to vector<32x32xbf16>
    %cst_45 = arith.constant dense<0.000000e+00> : vector<32x32xf32>
    %117 = tpu.matmul %114, %116, %cst_45 {dimension_numbers = #tpu.dot_dimension_numbers<[1], [0], [0], [1], [0, 0, 1, 1], [], []>} : vector<32x32xbf16>, vector<32x32xbf16>, vector<32x32xf32> -> vector<32x32xf32>
    %118 = arith.addf %4, %117 : vector<32x32xf32>
    %c0_46 = arith.constant 0 : index
    %c0_47 = arith.constant 0 : index
    %c0_48 = arith.constant 0 : index
    %119 = vector.load %arg10[%c0_46, %c0_47, %c0_48] : memref<2x1x32xf32, #tpu.memory_space<vmem>>, vector<1x1x32xf32>
    %120 = vector.shape_cast %119 : vector<1x1x32xf32> to vector<1x32xf32>
    %121 = vector.broadcast %120 : vector<1x32xf32> to vector<32x32xf32>
    %122 = arith.addf %118, %121 : vector<32x32xf32>
    %c0_49 = arith.constant 0 : index
    %c0_50 = arith.constant 0 : index
    %c0_51 = arith.constant 0 : index
    %123 = vector.load %arg11[%c0_49, %c0_50, %c0_51] : memref<2x1x32xf32, #tpu.memory_space<vmem>>, vector<1x1x32xf32>
    %124 = vector.shape_cast %123 : vector<1x1x32xf32> to vector<1x32xf32>
    %c0_52 = arith.constant 0 : index
    %c0_53 = arith.constant 0 : index
    %c0_54 = arith.constant 0 : index
    %125 = vector.load %arg12[%c0_52, %c0_53, %c0_54] : memref<2x1x32xf32, #tpu.memory_space<vmem>>, vector<1x1x32xf32>
    %126 = vector.shape_cast %125 : vector<1x1x32xf32> to vector<1x32xf32>
    %cst_55 = arith.constant dense<0.000000e+00> : vector<32xf32>
    %127 = vector.multi_reduction <add>, %122, %cst_55 [1] : vector<32x32xf32> to vector<32xf32>
    %128 = vector.shape_cast %127 : vector<32xf32> to vector<32x1xf32>
    %cst_56 = arith.constant 3.200000e+01 : f32
    %129 = vector.broadcast %cst_56 : f32 to vector<32x1xf32>
    %130 = arith.divf %128, %129 : vector<32x1xf32>
    %131 = vector.broadcast %130 : vector<32x1xf32> to vector<32x32xf32>
    %132 = arith.subf %122, %131 : vector<32x32xf32>
    %133 = arith.mulf %132, %132 : vector<32x32xf32>
    %cst_57 = arith.constant dense<0.000000e+00> : vector<32xf32>
    %134 = vector.multi_reduction <add>, %133, %cst_57 [1] : vector<32x32xf32> to vector<32xf32>
    %135 = vector.shape_cast %134 : vector<32xf32> to vector<32x1xf32>
    %cst_58 = arith.constant 3.200000e+01 : f32
    %136 = vector.broadcast %cst_58 : f32 to vector<32x1xf32>
    %137 = arith.divf %135, %136 : vector<32x1xf32>
    %138 = vector.broadcast %130 : vector<32x1xf32> to vector<32x32xf32>
    %139 = arith.subf %122, %138 : vector<32x32xf32>
    %cst_59 = arith.constant 9.99999974E-6 : f32
    %140 = vector.broadcast %cst_59 : f32 to vector<32x1xf32>
    %141 = arith.addf %137, %140 : vector<32x1xf32>
    %142 = math.rsqrt %141 : vector<32x1xf32>
    %143 = vector.broadcast %142 : vector<32x1xf32> to vector<32x32xf32>
    %144 = arith.mulf %139, %143 : vector<32x32xf32>
    %145 = vector.broadcast %124 : vector<1x32xf32> to vector<32x32xf32>
    %146 = arith.mulf %144, %145 : vector<32x32xf32>
    %147 = vector.broadcast %126 : vector<1x32xf32> to vector<32x32xf32>
    %148 = arith.addf %146, %147 : vector<32x32xf32>
    %149 = arith.truncf %148 : vector<32x32xf32> to vector<32x32xbf16>
    %c0_60 = arith.constant 0 : index
    %c0_61 = arith.constant 0 : index
    %c0_62 = arith.constant 0 : index
    %150 = vector.load %arg13[%c0_60, %c0_61, %c0_62] : memref<2x32x64xbf16, #tpu.memory_space<vmem>>, vector<1x32x64xbf16>
    %151 = vector.shape_cast %150 : vector<1x32x64xbf16> to vector<32x64xbf16>
    %cst_63 = arith.constant dense<0.000000e+00> : vector<32x64xf32>
    %152 = tpu.matmul %149, %151, %cst_63 {dimension_numbers = #tpu.dot_dimension_numbers<[1], [0], [0], [1], [0, 0, 1, 1], [], []>} : vector<32x32xbf16>, vector<32x64xbf16>, vector<32x64xf32> -> vector<32x64xf32>
    %c0_64 = arith.constant 0 : index
    %c0_65 = arith.constant 0 : index
    %c0_66 = arith.constant 0 : index
    %153 = vector.load %arg14[%c0_64, %c0_65, %c0_66] : memref<2x1x64xf32, #tpu.memory_space<vmem>>, vector<1x1x64xf32>
    %154 = vector.shape_cast %153 : vector<1x1x64xf32> to vector<1x64xf32>
    %155 = vector.broadcast %154 : vector<1x64xf32> to vector<32x64xf32>
    %156 = arith.addf %152, %155 : vector<32x64xf32>
    %cst_67 = arith.constant 5.000000e-01 : f32
    %157 = vector.broadcast %cst_67 : f32 to vector<32x64xf32>
    %158 = arith.mulf %157, %156 : vector<32x64xf32>
    %cst_68 = arith.constant 4.471500e-02 : f32
    %159 = vector.broadcast %cst_68 : f32 to vector<32x64xf32>
    %160 = arith.mulf %159, %156 : vector<32x64xf32>
    %161 = arith.mulf %160, %156 : vector<32x64xf32>
    %162 = arith.mulf %161, %156 : vector<32x64xf32>
    %163 = arith.addf %156, %162 : vector<32x64xf32>
    %cst_69 = arith.constant 0.797884583 : f32
    %164 = vector.broadcast %cst_69 : f32 to vector<32x64xf32>
    %165 = arith.mulf %164, %163 : vector<32x64xf32>
    %166 = math.tanh %165 : vector<32x64xf32>
    %cst_70 = arith.constant 1.000000e+00 : f32
    %167 = vector.broadcast %cst_70 : f32 to vector<32x64xf32>
    %168 = arith.addf %167, %166 : vector<32x64xf32>
    %169 = arith.mulf %158, %168 : vector<32x64xf32>
    %170 = arith.truncf %169 : vector<32x64xf32> to vector<32x64xbf16>
    %c0_71 = arith.constant 0 : index
    %c0_72 = arith.constant 0 : index
    %c0_73 = arith.constant 0 : index
    %171 = vector.load %arg15[%c0_71, %c0_72, %c0_73] : memref<2x64x32xbf16, #tpu.memory_space<vmem>>, vector<1x64x32xbf16>
    %172 = vector.shape_cast %171 : vector<1x64x32xbf16> to vector<64x32xbf16>
    %cst_74 = arith.constant dense<0.000000e+00> : vector<32x32xf32>
    %173 = tpu.matmul %170, %172, %cst_74 {dimension_numbers = #tpu.dot_dimension_numbers<[1], [0], [0], [1], [0, 0, 1, 1], [], []>} : vector<32x64xbf16>, vector<64x32xbf16>, vector<32x32xf32> -> vector<32x32xf32>
    %174 = arith.addf %122, %173 : vector<32x32xf32>
    %c0_75 = arith.constant 0 : index
    %c0_76 = arith.constant 0 : index
    %c0_77 = arith.constant 0 : index
    %175 = vector.load %arg16[%c0_75, %c0_76, %c0_77] : memref<2x1x32xf32, #tpu.memory_space<vmem>>, vector<1x1x32xf32>
    %176 = vector.shape_cast %175 : vector<1x1x32xf32> to vector<1x32xf32>
    %177 = vector.broadcast %176 : vector<1x32xf32> to vector<32x32xf32>
    %178 = arith.addf %174, %177 : vector<32x32xf32>
    %c1 = arith.constant 1 : index
    %c0_78 = arith.constant 0 : index
    %c0_79 = arith.constant 0 : index
    %179 = vector.load %arg6[%c1, %c0_78, %c0_79] : memref<2x1x32xf32, #tpu.memory_space<vmem>>, vector<1x1x32xf32>
    %180 = vector.shape_cast %179 : vector<1x1x32xf32> to vector<1x32xf32>
    %c1_80 = arith.constant 1 : index
    %c0_81 = arith.constant 0 : index
    %c0_82 = arith.constant 0 : index
    %181 = vector.load %arg7[%c1_80, %c0_81, %c0_82] : memref<2x1x32xf32, #tpu.memory_space<vmem>>, vector<1x1x32xf32>
    %182 = vector.shape_cast %181 : vector<1x1x32xf32> to vector<1x32xf32>
    %cst_83 = arith.constant dense<0.000000e+00> : vector<32xf32>
    %183 = vector.multi_reduction <add>, %178, %cst_83 [1] : vector<32x32xf32> to vector<32xf32>
    %184 = vector.shape_cast %183 : vector<32xf32> to vector<32x1xf32>
    %cst_84 = arith.constant 3.200000e+01 : f32
    %185 = vector.broadcast %cst_84 : f32 to vector<32x1xf32>
    %186 = arith.divf %184, %185 : vector<32x1xf32>
    %187 = vector.broadcast %186 : vector<32x1xf32> to vector<32x32xf32>
    %188 = arith.subf %178, %187 : vector<32x32xf32>
    %189 = arith.mulf %188, %188 : vector<32x32xf32>
    %cst_85 = arith.constant dense<0.000000e+00> : vector<32xf32>
    %190 = vector.multi_reduction <add>, %189, %cst_85 [1] : vector<32x32xf32> to vector<32xf32>
    %191 = vector.shape_cast %190 : vector<32xf32> to vector<32x1xf32>
    %cst_86 = arith.constant 3.200000e+01 : f32
    %192 = vector.broadcast %cst_86 : f32 to vector<32x1xf32>
    %193 = arith.divf %191, %192 : vector<32x1xf32>
    %194 = vector.broadcast %186 : vector<32x1xf32> to vector<32x32xf32>
    %195 = arith.subf %178, %194 : vector<32x32xf32>
    %cst_87 = arith.constant 9.99999974E-6 : f32
    %196 = vector.broadcast %cst_87 : f32 to vector<32x1xf32>
    %197 = arith.addf %193, %196 : vector<32x1xf32>
    %198 = math.rsqrt %197 : vector<32x1xf32>
    %199 = vector.broadcast %198 : vector<32x1xf32> to vector<32x32xf32>
    %200 = arith.mulf %195, %199 : vector<32x32xf32>
    %201 = vector.broadcast %180 : vector<1x32xf32> to vector<32x32xf32>
    %202 = arith.mulf %200, %201 : vector<32x32xf32>
    %203 = vector.broadcast %182 : vector<1x32xf32> to vector<32x32xf32>
    %204 = arith.addf %202, %203 : vector<32x32xf32>
    %205 = arith.truncf %204 : vector<32x32xf32> to vector<32x32xbf16>
    %c1_88 = arith.constant 1 : index
    %c0_89 = arith.constant 0 : index
    %c0_90 = arith.constant 0 : index
    %206 = vector.load %arg8[%c1_88, %c0_89, %c0_90] : memref<2x32x96xbf16, #tpu.memory_space<vmem>>, vector<1x32x96xbf16>
    %207 = vector.shape_cast %206 : vector<1x32x96xbf16> to vector<32x96xbf16>
    %cst_91 = arith.constant dense<0.000000e+00> : vector<32x96xf32>
    %208 = tpu.matmul %205, %207, %cst_91 {dimension_numbers = #tpu.dot_dimension_numbers<[1], [0], [0], [1], [0, 0, 1, 1], [], []>} : vector<32x32xbf16>, vector<32x96xbf16>, vector<32x96xf32> -> vector<32x96xf32>
    %209 = arith.truncf %208 : vector<32x96xf32> to vector<32x96xbf16>
    %210 = vector.extract_strided_slice %209 {offsets = [0, 0], sizes = [32, 8], strides = [1, 1]} : vector<32x96xbf16> to vector<32x8xbf16>
    %211 = vector.extract_strided_slice %209 {offsets = [0, 32], sizes = [32, 8], strides = [1, 1]} : vector<32x96xbf16> to vector<32x8xbf16>
    %212 = vector.extract_strided_slice %209 {offsets = [0, 64], sizes = [32, 8], strides = [1, 1]} : vector<32x96xbf16> to vector<32x8xbf16>
    %cst_92 = arith.constant dense<0.000000e+00> : vector<32x32xf32>
    %213 = tpu.matmul %210, %211, %cst_92 {dimension_numbers = #tpu.dot_dimension_numbers<[1], [1], [0], [0], [0, 0, 1, 0], [], []>} : vector<32x8xbf16>, vector<32x8xbf16>, vector<32x32xf32> -> vector<32x32xf32>
    %cst_93 = arith.constant 0.353553385 : f32
    %214 = vector.broadcast %cst_93 : f32 to vector<32x32xf32>
    %215 = arith.mulf %213, %214 : vector<32x32xf32>
    %216 = arith.addf %215, %5 : vector<32x32xf32>
    %cst_94 = arith.constant dense<0xFF800000> : vector<32xf32>
    %217 = vector.multi_reduction <maximumf>, %216, %cst_94 [1] : vector<32x32xf32> to vector<32xf32>
    %218 = vector.shape_cast %217 : vector<32xf32> to vector<32x1xf32>
    %219 = vector.broadcast %218 : vector<32x1xf32> to vector<32x32xf32>
    %220 = arith.subf %216, %219 : vector<32x32xf32>
    %221 = math.exp %220 : vector<32x32xf32>
    %cst_95 = arith.constant dense<0.000000e+00> : vector<32xf32>
    %222 = vector.multi_reduction <add>, %221, %cst_95 [1] : vector<32x32xf32> to vector<32xf32>
    %223 = vector.shape_cast %222 : vector<32xf32> to vector<32x1xf32>
    %224 = tpu.reciprocal %223 {approx = true} : vector<32x1xf32> -> vector<32x1xf32>
    %225 = vector.broadcast %224 : vector<32x1xf32> to vector<32x32xf32>
    %226 = arith.mulf %221, %225 : vector<32x32xf32>
    %227 = arith.truncf %226 : vector<32x32xf32> to vector<32x32xbf16>
    %cst_96 = arith.constant dense<0.000000e+00> : vector<32x8xf32>
    %228 = tpu.matmul %227, %212, %cst_96 {dimension_numbers = #tpu.dot_dimension_numbers<[1], [0], [0], [1], [0, 0, 1, 1], [], []>} : vector<32x32xbf16>, vector<32x8xbf16>, vector<32x8xf32> -> vector<32x8xf32>
    %229 = vector.extract_strided_slice %209 {offsets = [0, 8], sizes = [32, 8], strides = [1, 1]} : vector<32x96xbf16> to vector<32x8xbf16>
    %230 = vector.extract_strided_slice %209 {offsets = [0, 40], sizes = [32, 8], strides = [1, 1]} : vector<32x96xbf16> to vector<32x8xbf16>
    %231 = vector.extract_strided_slice %209 {offsets = [0, 72], sizes = [32, 8], strides = [1, 1]} : vector<32x96xbf16> to vector<32x8xbf16>
    %cst_97 = arith.constant dense<0.000000e+00> : vector<32x32xf32>
    %232 = tpu.matmul %229, %230, %cst_97 {dimension_numbers = #tpu.dot_dimension_numbers<[1], [1], [0], [0], [0, 0, 1, 0], [], []>} : vector<32x8xbf16>, vector<32x8xbf16>, vector<32x32xf32> -> vector<32x32xf32>
    %cst_98 = arith.constant 0.353553385 : f32
    %233 = vector.broadcast %cst_98 : f32 to vector<32x32xf32>
    %234 = arith.mulf %232, %233 : vector<32x32xf32>
    %235 = arith.addf %234, %5 : vector<32x32xf32>
    %cst_99 = arith.constant dense<0xFF800000> : vector<32xf32>
    %236 = vector.multi_reduction <maximumf>, %235, %cst_99 [1] : vector<32x32xf32> to vector<32xf32>
    %237 = vector.shape_cast %236 : vector<32xf32> to vector<32x1xf32>
    %238 = vector.broadcast %237 : vector<32x1xf32> to vector<32x32xf32>
    %239 = arith.subf %235, %238 : vector<32x32xf32>
    %240 = math.exp %239 : vector<32x32xf32>
    %cst_100 = arith.constant dense<0.000000e+00> : vector<32xf32>
    %241 = vector.multi_reduction <add>, %240, %cst_100 [1] : vector<32x32xf32> to vector<32xf32>
    %242 = vector.shape_cast %241 : vector<32xf32> to vector<32x1xf32>
    %243 = tpu.reciprocal %242 {approx = true} : vector<32x1xf32> -> vector<32x1xf32>
    %244 = vector.broadcast %243 : vector<32x1xf32> to vector<32x32xf32>
    %245 = arith.mulf %240, %244 : vector<32x32xf32>
    %246 = arith.truncf %245 : vector<32x32xf32> to vector<32x32xbf16>
    %cst_101 = arith.constant dense<0.000000e+00> : vector<32x8xf32>
    %247 = tpu.matmul %246, %231, %cst_101 {dimension_numbers = #tpu.dot_dimension_numbers<[1], [0], [0], [1], [0, 0, 1, 1], [], []>} : vector<32x32xbf16>, vector<32x8xbf16>, vector<32x8xf32> -> vector<32x8xf32>
    %248 = vector.extract_strided_slice %209 {offsets = [0, 16], sizes = [32, 8], strides = [1, 1]} : vector<32x96xbf16> to vector<32x8xbf16>
    %249 = vector.extract_strided_slice %209 {offsets = [0, 48], sizes = [32, 8], strides = [1, 1]} : vector<32x96xbf16> to vector<32x8xbf16>
    %250 = vector.extract_strided_slice %209 {offsets = [0, 80], sizes = [32, 8], strides = [1, 1]} : vector<32x96xbf16> to vector<32x8xbf16>
    %cst_102 = arith.constant dense<0.000000e+00> : vector<32x32xf32>
    %251 = tpu.matmul %248, %249, %cst_102 {dimension_numbers = #tpu.dot_dimension_numbers<[1], [1], [0], [0], [0, 0, 1, 0], [], []>} : vector<32x8xbf16>, vector<32x8xbf16>, vector<32x32xf32> -> vector<32x32xf32>
    %cst_103 = arith.constant 0.353553385 : f32
    %252 = vector.broadcast %cst_103 : f32 to vector<32x32xf32>
    %253 = arith.mulf %251, %252 : vector<32x32xf32>
    %254 = arith.addf %253, %5 : vector<32x32xf32>
    %cst_104 = arith.constant dense<0xFF800000> : vector<32xf32>
    %255 = vector.multi_reduction <maximumf>, %254, %cst_104 [1] : vector<32x32xf32> to vector<32xf32>
    %256 = vector.shape_cast %255 : vector<32xf32> to vector<32x1xf32>
    %257 = vector.broadcast %256 : vector<32x1xf32> to vector<32x32xf32>
    %258 = arith.subf %254, %257 : vector<32x32xf32>
    %259 = math.exp %258 : vector<32x32xf32>
    %cst_105 = arith.constant dense<0.000000e+00> : vector<32xf32>
    %260 = vector.multi_reduction <add>, %259, %cst_105 [1] : vector<32x32xf32> to vector<32xf32>
    %261 = vector.shape_cast %260 : vector<32xf32> to vector<32x1xf32>
    %262 = tpu.reciprocal %261 {approx = true} : vector<32x1xf32> -> vector<32x1xf32>
    %263 = vector.broadcast %262 : vector<32x1xf32> to vector<32x32xf32>
    %264 = arith.mulf %259, %263 : vector<32x32xf32>
    %265 = arith.truncf %264 : vector<32x32xf32> to vector<32x32xbf16>
    %cst_106 = arith.constant dense<0.000000e+00> : vector<32x8xf32>
    %266 = tpu.matmul %265, %250, %cst_106 {dimension_numbers = #tpu.dot_dimension_numbers<[1], [0], [0], [1], [0, 0, 1, 1], [], []>} : vector<32x32xbf16>, vector<32x8xbf16>, vector<32x8xf32> -> vector<32x8xf32>
    %267 = vector.extract_strided_slice %209 {offsets = [0, 24], sizes = [32, 8], strides = [1, 1]} : vector<32x96xbf16> to vector<32x8xbf16>
    %268 = vector.extract_strided_slice %209 {offsets = [0, 56], sizes = [32, 8], strides = [1, 1]} : vector<32x96xbf16> to vector<32x8xbf16>
    %269 = vector.extract_strided_slice %209 {offsets = [0, 88], sizes = [32, 8], strides = [1, 1]} : vector<32x96xbf16> to vector<32x8xbf16>
    %cst_107 = arith.constant dense<0.000000e+00> : vector<32x32xf32>
    %270 = tpu.matmul %267, %268, %cst_107 {dimension_numbers = #tpu.dot_dimension_numbers<[1], [1], [0], [0], [0, 0, 1, 0], [], []>} : vector<32x8xbf16>, vector<32x8xbf16>, vector<32x32xf32> -> vector<32x32xf32>
    %cst_108 = arith.constant 0.353553385 : f32
    %271 = vector.broadcast %cst_108 : f32 to vector<32x32xf32>
    %272 = arith.mulf %270, %271 : vector<32x32xf32>
    %273 = arith.addf %272, %5 : vector<32x32xf32>
    %cst_109 = arith.constant dense<0xFF800000> : vector<32xf32>
    %274 = vector.multi_reduction <maximumf>, %273, %cst_109 [1] : vector<32x32xf32> to vector<32xf32>
    %275 = vector.shape_cast %274 : vector<32xf32> to vector<32x1xf32>
    %276 = vector.broadcast %275 : vector<32x1xf32> to vector<32x32xf32>
    %277 = arith.subf %273, %276 : vector<32x32xf32>
    %278 = math.exp %277 : vector<32x32xf32>
    %cst_110 = arith.constant dense<0.000000e+00> : vector<32xf32>
    %279 = vector.multi_reduction <add>, %278, %cst_110 [1] : vector<32x32xf32> to vector<32xf32>
    %280 = vector.shape_cast %279 : vector<32xf32> to vector<32x1xf32>
    %281 = tpu.reciprocal %280 {approx = true} : vector<32x1xf32> -> vector<32x1xf32>
    %282 = vector.broadcast %281 : vector<32x1xf32> to vector<32x32xf32>
    %283 = arith.mulf %278, %282 : vector<32x32xf32>
    %284 = arith.truncf %283 : vector<32x32xf32> to vector<32x32xbf16>
    %cst_111 = arith.constant dense<0.000000e+00> : vector<32x8xf32>
    %285 = tpu.matmul %284, %269, %cst_111 {dimension_numbers = #tpu.dot_dimension_numbers<[1], [0], [0], [1], [0, 0, 1, 1], [], []>} : vector<32x32xbf16>, vector<32x8xbf16>, vector<32x8xf32> -> vector<32x8xf32>
    %286 = tpu.concatenate %228, %247, %266, %285 in 1 : vector<32x8xf32>, vector<32x8xf32>, vector<32x8xf32>, vector<32x8xf32> -> vector<32x32xf32>
    %287 = arith.truncf %286 : vector<32x32xf32> to vector<32x32xbf16>
    %c1_112 = arith.constant 1 : index
    %c0_113 = arith.constant 0 : index
    %c0_114 = arith.constant 0 : index
    %288 = vector.load %arg9[%c1_112, %c0_113, %c0_114] : memref<2x32x32xbf16, #tpu.memory_space<vmem>>, vector<1x32x32xbf16>
    %289 = vector.shape_cast %288 : vector<1x32x32xbf16> to vector<32x32xbf16>
    %cst_115 = arith.constant dense<0.000000e+00> : vector<32x32xf32>
    %290 = tpu.matmul %287, %289, %cst_115 {dimension_numbers = #tpu.dot_dimension_numbers<[1], [0], [0], [1], [0, 0, 1, 1], [], []>} : vector<32x32xbf16>, vector<32x32xbf16>, vector<32x32xf32> -> vector<32x32xf32>
    %291 = arith.addf %178, %290 : vector<32x32xf32>
    %c1_116 = arith.constant 1 : index
    %c0_117 = arith.constant 0 : index
    %c0_118 = arith.constant 0 : index
    %292 = vector.load %arg10[%c1_116, %c0_117, %c0_118] : memref<2x1x32xf32, #tpu.memory_space<vmem>>, vector<1x1x32xf32>
    %293 = vector.shape_cast %292 : vector<1x1x32xf32> to vector<1x32xf32>
    %294 = vector.broadcast %293 : vector<1x32xf32> to vector<32x32xf32>
    %295 = arith.addf %291, %294 : vector<32x32xf32>
    %c1_119 = arith.constant 1 : index
    %c0_120 = arith.constant 0 : index
    %c0_121 = arith.constant 0 : index
    %296 = vector.load %arg11[%c1_119, %c0_120, %c0_121] : memref<2x1x32xf32, #tpu.memory_space<vmem>>, vector<1x1x32xf32>
    %297 = vector.shape_cast %296 : vector<1x1x32xf32> to vector<1x32xf32>
    %c1_122 = arith.constant 1 : index
    %c0_123 = arith.constant 0 : index
    %c0_124 = arith.constant 0 : index
    %298 = vector.load %arg12[%c1_122, %c0_123, %c0_124] : memref<2x1x32xf32, #tpu.memory_space<vmem>>, vector<1x1x32xf32>
    %299 = vector.shape_cast %298 : vector<1x1x32xf32> to vector<1x32xf32>
    %cst_125 = arith.constant dense<0.000000e+00> : vector<32xf32>
    %300 = vector.multi_reduction <add>, %295, %cst_125 [1] : vector<32x32xf32> to vector<32xf32>
    %301 = vector.shape_cast %300 : vector<32xf32> to vector<32x1xf32>
    %cst_126 = arith.constant 3.200000e+01 : f32
    %302 = vector.broadcast %cst_126 : f32 to vector<32x1xf32>
    %303 = arith.divf %301, %302 : vector<32x1xf32>
    %304 = vector.broadcast %303 : vector<32x1xf32> to vector<32x32xf32>
    %305 = arith.subf %295, %304 : vector<32x32xf32>
    %306 = arith.mulf %305, %305 : vector<32x32xf32>
    %cst_127 = arith.constant dense<0.000000e+00> : vector<32xf32>
    %307 = vector.multi_reduction <add>, %306, %cst_127 [1] : vector<32x32xf32> to vector<32xf32>
    %308 = vector.shape_cast %307 : vector<32xf32> to vector<32x1xf32>
    %cst_128 = arith.constant 3.200000e+01 : f32
    %309 = vector.broadcast %cst_128 : f32 to vector<32x1xf32>
    %310 = arith.divf %308, %309 : vector<32x1xf32>
    %311 = vector.broadcast %303 : vector<32x1xf32> to vector<32x32xf32>
    %312 = arith.subf %295, %311 : vector<32x32xf32>
    %cst_129 = arith.constant 9.99999974E-6 : f32
    %313 = vector.broadcast %cst_129 : f32 to vector<32x1xf32>
    %314 = arith.addf %310, %313 : vector<32x1xf32>
    %315 = math.rsqrt %314 : vector<32x1xf32>
    %316 = vector.broadcast %315 : vector<32x1xf32> to vector<32x32xf32>
    %317 = arith.mulf %312, %316 : vector<32x32xf32>
    %318 = vector.broadcast %297 : vector<1x32xf32> to vector<32x32xf32>
    %319 = arith.mulf %317, %318 : vector<32x32xf32>
    %320 = vector.broadcast %299 : vector<1x32xf32> to vector<32x32xf32>
    %321 = arith.addf %319, %320 : vector<32x32xf32>
    %322 = arith.truncf %321 : vector<32x32xf32> to vector<32x32xbf16>
    %c1_130 = arith.constant 1 : index
    %c0_131 = arith.constant 0 : index
    %c0_132 = arith.constant 0 : index
    %323 = vector.load %arg13[%c1_130, %c0_131, %c0_132] : memref<2x32x64xbf16, #tpu.memory_space<vmem>>, vector<1x32x64xbf16>
    %324 = vector.shape_cast %323 : vector<1x32x64xbf16> to vector<32x64xbf16>
    %cst_133 = arith.constant dense<0.000000e+00> : vector<32x64xf32>
    %325 = tpu.matmul %322, %324, %cst_133 {dimension_numbers = #tpu.dot_dimension_numbers<[1], [0], [0], [1], [0, 0, 1, 1], [], []>} : vector<32x32xbf16>, vector<32x64xbf16>, vector<32x64xf32> -> vector<32x64xf32>
    %c1_134 = arith.constant 1 : index
    %c0_135 = arith.constant 0 : index
    %c0_136 = arith.constant 0 : index
    %326 = vector.load %arg14[%c1_134, %c0_135, %c0_136] : memref<2x1x64xf32, #tpu.memory_space<vmem>>, vector<1x1x64xf32>
    %327 = vector.shape_cast %326 : vector<1x1x64xf32> to vector<1x64xf32>
    %328 = vector.broadcast %327 : vector<1x64xf32> to vector<32x64xf32>
    %329 = arith.addf %325, %328 : vector<32x64xf32>
    %cst_137 = arith.constant 5.000000e-01 : f32
    %330 = vector.broadcast %cst_137 : f32 to vector<32x64xf32>
    %331 = arith.mulf %330, %329 : vector<32x64xf32>
    %cst_138 = arith.constant 4.471500e-02 : f32
    %332 = vector.broadcast %cst_138 : f32 to vector<32x64xf32>
    %333 = arith.mulf %332, %329 : vector<32x64xf32>
    %334 = arith.mulf %333, %329 : vector<32x64xf32>
    %335 = arith.mulf %334, %329 : vector<32x64xf32>
    %336 = arith.addf %329, %335 : vector<32x64xf32>
    %cst_139 = arith.constant 0.797884583 : f32
    %337 = vector.broadcast %cst_139 : f32 to vector<32x64xf32>
    %338 = arith.mulf %337, %336 : vector<32x64xf32>
    %339 = math.tanh %338 : vector<32x64xf32>
    %cst_140 = arith.constant 1.000000e+00 : f32
    %340 = vector.broadcast %cst_140 : f32 to vector<32x64xf32>
    %341 = arith.addf %340, %339 : vector<32x64xf32>
    %342 = arith.mulf %331, %341 : vector<32x64xf32>
    %343 = arith.truncf %342 : vector<32x64xf32> to vector<32x64xbf16>
    %c1_141 = arith.constant 1 : index
    %c0_142 = arith.constant 0 : index
    %c0_143 = arith.constant 0 : index
    %344 = vector.load %arg15[%c1_141, %c0_142, %c0_143] : memref<2x64x32xbf16, #tpu.memory_space<vmem>>, vector<1x64x32xbf16>
    %345 = vector.shape_cast %344 : vector<1x64x32xbf16> to vector<64x32xbf16>
    %cst_144 = arith.constant dense<0.000000e+00> : vector<32x32xf32>
    %346 = tpu.matmul %343, %345, %cst_144 {dimension_numbers = #tpu.dot_dimension_numbers<[1], [0], [0], [1], [0, 0, 1, 1], [], []>} : vector<32x64xbf16>, vector<64x32xbf16>, vector<32x32xf32> -> vector<32x32xf32>
    %347 = arith.addf %295, %346 : vector<32x32xf32>
    %c1_145 = arith.constant 1 : index
    %c0_146 = arith.constant 0 : index
    %c0_147 = arith.constant 0 : index
    %348 = vector.load %arg16[%c1_145, %c0_146, %c0_147] : memref<2x1x32xf32, #tpu.memory_space<vmem>>, vector<1x1x32xf32>
    %349 = vector.shape_cast %348 : vector<1x1x32xf32> to vector<1x32xf32>
    %350 = vector.broadcast %349 : vector<1x32xf32> to vector<32x32xf32>
    %351 = arith.addf %347, %350 : vector<32x32xf32>
    %c0_148 = arith.constant 0 : index
    %c0_149 = arith.constant 0 : index
    %352 = vector.load %arg19[%c0_148, %c0_149] : memref<32x32xf32, #tpu.memory_space<vmem>>, vector<32x32xf32>
    tpu.vector_store %arg19[%c0_148, %c0_149], %351 {strides = array<i32>} : memref<32x32xf32, #tpu.memory_space<vmem>>, vector<32x32xf32>,
    %c0_150 = arith.constant 0 : index
    %c0_151 = arith.constant 0 : index
    %353 = vector.load %arg5[%c0_150, %c0_151] : memref<2x32xf32, #tpu.memory_space<vmem>>, vector<2x32xf32>
    %cst_152 = arith.constant dense<0.000000e+00> : vector<2x32xf32>
    %354 = tpu.matmul %353, %351, %cst_152 {dimension_numbers = #tpu.dot_dimension_numbers<[1], [0], [0], [1], [0, 0, 1, 1], [], []>} : vector<2x32xf32>, vector<32x32xf32>, vector<2x32xf32> -> vector<2x32xf32>
    %c0_153 = arith.constant 0 : index
    %c0_154 = arith.constant 0 : index
    %355 = vector.load %arg17[%c0_153, %c0_154] : memref<32x1xf32, #tpu.memory_space<vmem>>, vector<32x1xf32>
    %cst_155 = arith.constant dense<0.000000e+00> : vector<2x1xf32>
    %356 = tpu.matmul %354, %355, %cst_155 {dimension_numbers = #tpu.dot_dimension_numbers<[1], [0], [0], [1], [0, 0, 1, 1], [], []>} : vector<2x32xf32>, vector<32x1xf32>, vector<2x1xf32> -> vector<2x1xf32>
    %c0_156 = arith.constant 0 : index
    %c0_157 = arith.constant 0 : index
    %357 = vector.load %arg18[%c0_156, %c0_157] : memref<1x1xf32, #tpu.memory_space<vmem>>, vector<1x1xf32>
    %358 = vector.broadcast %357 : vector<1x1xf32> to vector<2x1xf32>
    %359 = arith.addf %356, %358 : vector<2x1xf32>
    %c0_158 = arith.constant 0 : index
    %c0_159 = arith.constant 0 : index
    %360 = vector.load %arg20[%c0_158, %c0_159] : memref<2x1xf32, #tpu.memory_space<vmem>>, vector<2x1xf32>
    tpu.vector_store %arg20[%c0_158, %c0_159], %359 {strides = array<i32>} : memref<2x1xf32, #tpu.memory_space<vmem>>, vector<2x1xf32>,
    return
  }
  func.func @transform_0(%arg0: i32) -> (i32, i32) {
    %c0_i32 = arith.constant 0 : i32
    %c0_i32_0 = arith.constant 0 : i32
    %c0_i32_1 = arith.constant 0 : i32
    return %c0_i32, %c0_i32_0 : i32, i32
  }
  func.func @transform_1(%arg0: i32) -> (i32, i32) {
    %c0_i32 = arith.constant 0 : i32
    %c0_i32_0 = arith.constant 0 : i32
    %c0_i32_1 = arith.constant 0 : i32
    return %c0_i32, %c0_i32_0 : i32, i32
  }
  func.func @transform_2(%arg0: i32) -> (i32, i32) {
    %c0_i32 = arith.constant 0 : i32
    %c0_i32_0 = arith.constant 0 : i32
    %c0_i32_1 = arith.constant 0 : i32
    return %c0_i32, %c0_i32_0 : i32, i32
  }
  func.func @transform_3(%arg0: i32) -> (i32, i32) {
    %c0_i32 = arith.constant 0 : i32
    %c0_i32_0 = arith.constant 0 : i32
    %c0_i32_1 = arith.constant 0 : i32
    return %c0_i32, %c0_i32_0 : i32, i32
  }
  func.func @transform_4(%arg0: i32) -> (i32, i32) {
    %c0_i32 = arith.constant 0 : i32
    %c0_i32_0 = arith.constant 0 : i32
    %c0_i32_1 = arith.constant 0 : i32
    return %c0_i32, %c0_i32_0 : i32, i32
  }
  func.func @transform_5(%arg0: i32) -> (i32, i32, i32) {
    %c0_i32 = arith.constant 0 : i32
    %c0_i32_0 = arith.constant 0 : i32
    %c0_i32_1 = arith.constant 0 : i32
    %c0_i32_2 = arith.constant 0 : i32
    return %c0_i32, %c0_i32_0, %c0_i32_1 : i32, i32, i32
  }
  func.func @transform_6(%arg0: i32) -> (i32, i32, i32) {
    %c0_i32 = arith.constant 0 : i32
    %c0_i32_0 = arith.constant 0 : i32
    %c0_i32_1 = arith.constant 0 : i32
    %c0_i32_2 = arith.constant 0 : i32
    return %c0_i32, %c0_i32_0, %c0_i32_1 : i32, i32, i32
  }
  func.func @transform_7(%arg0: i32) -> (i32, i32, i32) {
    %c0_i32 = arith.constant 0 : i32
    %c0_i32_0 = arith.constant 0 : i32
    %c0_i32_1 = arith.constant 0 : i32
    %c0_i32_2 = arith.constant 0 : i32
    return %c0_i32, %c0_i32_0, %c0_i32_1 : i32, i32, i32
  }
  func.func @transform_8(%arg0: i32) -> (i32, i32, i32) {
    %c0_i32 = arith.constant 0 : i32
    %c0_i32_0 = arith.constant 0 : i32
    %c0_i32_1 = arith.constant 0 : i32
    %c0_i32_2 = arith.constant 0 : i32
    return %c0_i32, %c0_i32_0, %c0_i32_1 : i32, i32, i32
  }
  func.func @transform_9(%arg0: i32) -> (i32, i32, i32) {
    %c0_i32 = arith.constant 0 : i32
    %c0_i32_0 = arith.constant 0 : i32
    %c0_i32_1 = arith.constant 0 : i32
    %c0_i32_2 = arith.constant 0 : i32
    return %c0_i32, %c0_i32_0, %c0_i32_1 : i32, i32, i32
  }
  func.func @transform_10(%arg0: i32) -> (i32, i32, i32) {
    %c0_i32 = arith.constant 0 : i32
    %c0_i32_0 = arith.constant 0 : i32
    %c0_i32_1 = arith.constant 0 : i32
    %c0_i32_2 = arith.constant 0 : i32
    return %c0_i32, %c0_i32_0, %c0_i32_1 : i32, i32, i32
  }
  func.func @transform_11(%arg0: i32) -> (i32, i32, i32) {
    %c0_i32 = arith.constant 0 : i32
    %c0_i32_0 = arith.constant 0 : i32
    %c0_i32_1 = arith.constant 0 : i32
    %c0_i32_2 = arith.constant 0 : i32
    return %c0_i32, %c0_i32_0, %c0_i32_1 : i32, i32, i32
  }
  func.func @transform_12(%arg0: i32) -> (i32, i32, i32) {
    %c0_i32 = arith.constant 0 : i32
    %c0_i32_0 = arith.constant 0 : i32
    %c0_i32_1 = arith.constant 0 : i32
    %c0_i32_2 = arith.constant 0 : i32
    return %c0_i32, %c0_i32_0, %c0_i32_1 : i32, i32, i32
  }
  func.func @transform_13(%arg0: i32) -> (i32, i32, i32) {
    %c0_i32 = arith.constant 0 : i32
    %c0_i32_0 = arith.constant 0 : i32
    %c0_i32_1 = arith.constant 0 : i32
    %c0_i32_2 = arith.constant 0 : i32
    return %c0_i32, %c0_i32_0, %c0_i32_1 : i32, i32, i32
  }
  func.func @transform_14(%arg0: i32) -> (i32, i32, i32) {
    %c0_i32 = arith.constant 0 : i32
    %c0_i32_0 = arith.constant 0 : i32
    %c0_i32_1 = arith.constant 0 : i32
    %c0_i32_2 = arith.constant 0 : i32
    return %c0_i32, %c0_i32_0, %c0_i32_1 : i32, i32, i32
  }
  func.func @transform_15(%arg0: i32) -> (i32, i32, i32) {
    %c0_i32 = arith.constant 0 : i32
    %c0_i32_0 = arith.constant 0 : i32
    %c0_i32_1 = arith.constant 0 : i32
    %c0_i32_2 = arith.constant 0 : i32
    return %c0_i32, %c0_i32_0, %c0_i32_1 : i32, i32, i32
  }
  func.func @transform_16(%arg0: i32) -> (i32, i32) {
    %c0_i32 = arith.constant 0 : i32
    %c0_i32_0 = arith.constant 0 : i32
    %c0_i32_1 = arith.constant 0 : i32
    return %c0_i32, %c0_i32_0 : i32, i32
  }
  func.func @transform_17(%arg0: i32) -> (i32, i32) {
    %c0_i32 = arith.constant 0 : i32
    %c0_i32_0 = arith.constant 0 : i32
    %c0_i32_1 = arith.constant 0 : i32
    return %c0_i32, %c0_i32_0 : i32, i32
  }
  func.func @transform_18(%arg0: i32) -> (i32, i32) {
    %c0_i32 = arith.constant 0 : i32
    %c0_i32_0 = arith.constant 0 : i32
    %c0_i32_1 = arith.constant 0 : i32
    return %c0_i32, %c0_i32_0 : i32, i32
  }
  func.func @transform_19(%arg0: i32) -> (i32, i32) {
    %c0_i32 = arith.constant 0 : i32
    %c0_i32_0 = arith.constant 0 : i32
    %c0_i32_1 = arith.constant 0 : i32
    return %c0_i32, %c0_i32_0 : i32, i32
  }
}

</mosaic_0001>

<llo_original>
// kernel: transforensics_forward.1
$region0: #{transforensics_forward.1}
  #allocation0 [shape = 'u32[]', space=smem, size = 0x4, offset = 0x4, fixed_abs, tag = 'smem constant byte address 0x4 - core index']
  #allocation1 [shape = 'u32[144,128]{1,0:T(1,128)}', space=vmem, size = 0x12000, scoped, tag = 'internal scratch']
  #allocation2 [shape = 'f32[1,1]{1,0:T(1,128)S(1)}', space=vmem, size = 0x200, scoped, tag = 'scoped memory for transforensics_forward.1']
  %s0 = inlined_call_operand.vmem [shape: bf16[32,3072], index: 0, kind: input, shape index: {}]
  %s1 = inlined_call_operand.vmem [shape: bf16[3072,32], index: 1, kind: input, shape index: {}]
  %s2 = inlined_call_operand.vmem [shape: f32[32,32], index: 2, kind: input, shape index: {}]
  %s3 = inlined_call_operand.vmem [shape: f32[32,32], index: 3, kind: input, shape index: {}]
  %s4 = inlined_call_operand.vmem [shape: f32[2,32], index: 4, kind: input, shape index: {}]
  %s5 = inlined_call_operand.vmem [shape: f32[2,1,32], index: 5, kind: input, shape index: {}]
  %s6 = inlined_call_operand.vmem [shape: f32[2,1,32], index: 6, kind: input, shape index: {}]
  %s7 = inlined_call_operand.vmem [shape: bf16[2,32,96], index: 7, kind: input, shape index: {}]
  %s8 = inlined_call_operand.vmem [shape: bf16[2,32,32], index: 8, kind: input, shape index: {}]
  %s9 = inlined_call_operand.vmem [shape: f32[2,1,32], index: 9, kind: input, shape index: {}]
  %s10 = inlined_call_operand.vmem [shape: f32[2,1,32], index: 10, kind: input, shape index: {}]
  %s11 = inlined_call_operand.vmem [shape: f32[2,1,32], index: 11, kind: input, shape index: {}]
  %s12 = inlined_call_operand.vmem [shape: bf16[2,32,64], index: 12, kind: input, shape index: {}]
  %s13 = inlined_call_operand.vmem [shape: f32[2,1,64], index: 13, kind: input, shape index: {}]
  %s14 = inlined_call_operand.vmem [shape: bf16[2,64,32], index: 14, kind: input, shape index: {}]
  %s15 = inlined_call_operand.vmem [shape: f32[2,1,32], index: 15, kind: input, shape index: {}]
  %s16 = inlined_call_operand.vmem [shape: f32[32,1], index: 16, kind: input, shape index: {}]
  %s17 = inlined_call_operand.<no memory space> [shape: f32[1,1], index: 17, kind: input, shape index: {}]
  %s18 = inlined_call_operand.vmem [shape: f32[32,32], index: 18, kind: output, shape index: {0}]
  %s19 = inlined_call_operand.vmem [shape: f32[2,1], index: 19, kind: output, shape index: {1}]
  %20 = xla_tuple %s18, %s19
  %s21 = sld [smem:[#allocation0]]
  $region90: #{transforensics_forward.1} parent=0
    _
  %s23 = ssub.s32 1, %s21
  %s24 = scalar_select 0, %s23, %s21
  %v25 = vstv %s17
  %26 = vst [vmem:[#allocation2] sm:$0x1] %v25
  // Predicated region
  $region2: #{transforensics_forward.1} parent=0 // pred_check
    _
  $region3: #{transforensics_forward.1} parent=0 // pred_check_branch
    %28 = sbr.rel (0) target = $region5
  $region4: #{transforensics_forward.1} parent=0 // pred_region
    _
  $region5: #{transforensics_forward.1} parent=0 // pred_fallthru
    _
  // Predicated region
  $region6: #{transforensics_forward.1} parent=0 // pred_check
    _
  $region7: #{transforensics_forward.1} parent=0 // pred_check_branch
    %30 = sbr.rel (0) target = $region9
  $region8: #{transforensics_forward.1} parent=0 // pred_region
    _
  $region9: #{transforensics_forward.1} parent=0 // pred_fallthru
    _
  // Predicated region
  $region10: #{transforensics_forward.1} parent=0 // pred_check
    _
  $region11: #{transforensics_forward.1} parent=0 // pred_check_branch
    %32 = sbr.rel (0) target = $region13
  $region12: #{transforensics_forward.1} parent=0 // pred_region
    _
  $region13: #{transforensics_forward.1} parent=0 // pred_fallthru
    _
  // Predicated region
  $region14: #{transforensics_forward.1} parent=0 // pred_check
    _
  $region15: #{transforensics_forward.1} parent=0 // pred_check_branch
    %34 = sbr.rel (0) target = $region17
  $region16: #{transforensics_forward.1} parent=0 // pred_region
    _
  $region17: #{transforensics_forward.1} parent=0 // pred_fallthru
    _
  // Predicated region
  $region18: #{transforensics_forward.1} parent=0 // pred_check
    _
  $region19: #{transforensics_forward.1} parent=0 // pred_check_branch
    %36 = sbr.rel (0) target = $region21
  $region20: #{transforensics_forward.1} parent=0 // pred_region
    _
  $region21: #{transforensics_forward.1} parent=0 // pred_fallthru
    _
  // Predicated region
  $region22: #{transforensics_forward.1} parent=0 // pred_check
    _
  $region23: #{transforensics_forward.1} parent=0 // pred_check_branch
    %38 = sbr.rel (0) target = $region25
  $region24: #{transforensics_forward.1} parent=0 // pred_region
    _
  $region25: #{transforensics_forward.1} parent=0 // pred_fallthru
    _
  // Predicated region
  $region26: #{transforensics_forward.1} parent=0 // pred_check
    _
  $region27: #{transforensics_forward.1} parent=0 // pred_check_branch
    %40 = sbr.rel (0) target = $region29
  $region28: #{transforensics_forward.1} parent=0 // pred_region
    _
  $region29: #{transforensics_forward.1} parent=0 // pred_fallthru
    _
  // Predicated region
  $region30: #{transforensics_forward.1} parent=0 // pred_check
    _
  $region31: #{transforensics_forward.1} parent=0 // pred_check_branch
    %42 = sbr.rel (0) target = $region33
  $region32: #{transforensics_forward.1} parent=0 // pred_region
    _
  $region33: #{transforensics_forward.1} parent=0 // pred_fallthru
    _
  // Predicated region
  $region34: #{transforensics_forward.1} parent=0 // pred_check
    _
  $region35: #{transforensics_forward.1} parent=0 // pred_check_branch
    %44 = sbr.rel (0) target = $region37
  $region36: #{transforensics_forward.1} parent=0 // pred_region
    _
  $region37: #{transforensics_forward.1} parent=0 // pred_fallthru
    _
  // Predicated region
  $region38: #{transforensics_forward.1} parent=0 // pred_check
    _
  $region39: #{transforensics_forward.1} parent=0 // pred_check_branch
    %46 = sbr.rel (0) target = $region41
  $region40: #{transforensics_forward.1} parent=0 // pred_region
    _
  $region41: #{transforensics_forward.1} parent=0 // pred_fallthru
    _
  // Predicated region
  $region42: #{transforensics_forward.1} parent=0 // pred_check
    _
  $region43: #{transforensics_forward.1} parent=0 // pred_check_branch
    %48 = sbr.rel (0) target = $region45
  $region44: #{transforensics_forward.1} parent=0 // pred_region
    _
  $region45: #{transforensics_forward.1} parent=0 // pred_fallthru
    _
  // Predicated region
  $region46: #{transforensics_forward.1} parent=0 // pred_check
    _
  $region47: #{transforensics_forward.1} parent=0 // pred_check_branch
    %50 = sbr.rel (0) target = $region49
  $region48: #{transforensics_forward.1} parent=0 // pred_region
    _
  $region49: #{transforensics_forward.1} parent=0 // pred_fallthru
    _
  // Predicated region
  $region50: #{transforensics_forward.1} parent=0 // pred_check
    _
  $region51: #{transforensics_forward.1} parent=0 // pred_check_branch
    %52 = sbr.rel (0) target = $region53
  $region52: #{transforensics_forward.1} parent=0 // pred_region
    _
  $region53: #{transforensics_forward.1} parent=0 // pred_fallthru
    _
  // Predicated region
  $region54: #{transforensics_forward.1} parent=0 // pred_check
    _
  $region55: #{transforensics_forward.1} parent=0 // pred_check_branch
    %54 = sbr.rel (0) target = $region57
  $region56: #{transforensics_forward.1} parent=0 // pred_region
    _
  $region57: #{transforensics_forward.1} parent=0 // pred_fallthru
    _
  // Predicated region
  $region58: #{transforensics_forward.1} parent=0 // pred_check
    _
  $region59: #{transforensics_forward.1} parent=0 // pred_check_branch
    %56 = sbr.rel (0) target = $region61
  $region60: #{transforensics_forward.1} parent=0 // pred_region
    _
  $region61: #{transforensics_forward.1} parent=0 // pred_fallthru
    _
  // Predicated region
  $region62: #{transforensics_forward.1} parent=0 // pred_check
    _
  $region63: #{transforensics_forward.1} parent=0 // pred_check_branch
    %58 = sbr.rel (0) target = $region65
  $region64: #{transforensics_forward.1} parent=0 // pred_region
    _
  $region65: #{transforensics_forward.1} parent=0 // pred_fallthru
    _
  // Predicated region
  $region66: #{transforensics_forward.1} parent=0 // pred_check
    _
  $region67: #{transforensics_forward.1} parent=0 // pred_check_branch
    %60 = sbr.rel (0) target = $region69
  $region68: #{transforensics_forward.1} parent=0 // pred_region
    _
  $region69: #{transforensics_forward.1} parent=0 // pred_fallthru
    _
  // Predicated region
  $region70: #{transforensics_forward.1} parent=0 // pred_check
    _
  $region71: #{transforensics_forward.1} parent=0 // pred_check_branch
    %62 = sbr.rel (0) target = $region73
  $region72: #{transforensics_forward.1} parent=0 // pred_region
    _
  $region73: #{transforensics_forward.1} parent=0 // pred_fallthru
    _
  %v64 = vld [vmem:[%s0] sm:$0xff]
  %v65 = vld [vmem:[%s0 + $0x8] sm:$0xff]
  %v66 = vld [vmem:[%s0 + $0x10] sm:$0xff]
  %v67 = vld [vmem:[%s0 + $0x18] sm:$0xff]
  %v68 = vld [vmem:[%s0 + $0x20] sm:$0xff]
  %v69 = vld [vmem:[%s0 + $0x28] sm:$0xff]
  %v70 = vld [vmem:[%s0 + $0x30] sm:$0xff]
  %v71 = vld [vmem:[%s0 + $0x38] sm:$0xff]
  %v72 = vld [vmem:[%s0 + $0x40] sm:$0xff]
  %v73 = vld [vmem:[%s0 + $0x48] sm:$0xff]
  %v74 = vld [vmem:[%s0 + $0x50] sm:$0xff]
  %v75 = vld [vmem:[%s0 + $0x58] sm:$0xff]
  %v76 = vld [vmem:[%s0 + $0x60] sm:$0xff]
  %v77 = vld [vmem:[%s0 + $0x68] sm:$0xff]
  %v78 = vld [vmem:[%s0 + $0x70] sm:$0xff]
  %v79 = vld [vmem:[%s0 + $0x78] sm:$0xff]
  %v80 = vld [vmem:[%s0 + $0x80] sm:$0xff]
  %v81 = vld [vmem:[%s0 + $0x88] sm:$0xff]
  %v82 = vld [vmem:[%s0 + $0x90] sm:$0xff]
  %v83 = vld [vmem:[%s0 + $0x98] sm:$0xff]
  %v84 = vld [vmem:[%s0 + $0xa0] sm:$0xff]
  %v85 = vld [vmem:[%s0 + $0xa8] sm:$0xff]
  %v86 = vld [vmem:[%s0 + $0xb0] sm:$0xff]
  %v87 = vld [vmem:[%s0 + $0xb8] sm:$0xff]
  %v88 = vld [vmem:[%s0 + $0xc0] sm:$0xff]
  %v89 = vld [vmem:[%s0 + $0xc8] sm:$0xff]
  %v90 = vld [vmem:[%s0 + $0xd0] sm:$0xff]
  %v91 = vld [vmem:[%s0 + $0xd8] sm:$0xff]
  %v92 = vld [vmem:[%s0 + $0xe0] sm:$0xff]
  %v93 = vld [vmem:[%s0 + $0xe8] sm:$0xff]
  %v94 = vld [vmem:[%s0 + $0xf0] sm:$0xff]
  %v95 = vld [vmem:[%s0 + $0xf8] sm:$0xff]
  %v96 = vld [vmem:[%s0 + $0x100] sm:$0xff]
  %v97 = vld [vmem:[%s0 + $0x108] sm:$0xff]
  %v98 = vld [vmem:[%s0 + $0x110] sm:$0xff]
  %v99 = vld [vmem:[%s0 + $0x118] sm:$0xff]
  %v100 = vld [vmem:[%s0 + $0x120] sm:$0xff]
  %v101 = vld [vmem:[%s0 + $0x128] sm:$0xff]
  %v102 = vld [vmem:[%s0 + $0x130] sm:$0xff]
  %v103 = vld [vmem:[%s0 + $0x138] sm:$0xff]
  %v104 = vld [vmem:[%s0 + $0x140] sm:$0xff]
  %v105 = vld [vmem:[%s0 + $0x148] sm:$0xff]
  %v106 = vld [vmem:[%s0 + $0x150] sm:$0xff]
  %v107 = vld [vmem:[%s0 + $0x158] sm:$0xff]
  %v108 = vld [vmem:[%s0 + $0x160] sm:$0xff]
  %v109 = vld [vmem:[%s0 + $0x168] sm:$0xff]
  %v110 = vld [vmem:[%s0 + $0x170] sm:$0xff]
  %v111 = vld [vmem:[%s0 + $0x178] sm:$0xff]
  %v112 = vld [vmem:[%s1] sm:$0xf]
  %v113 = vld [vmem:[%s1 + $0x4] sm:$0xf]
  %v114 = vld [vmem:[%s1 + $0x8] sm:$0xf]
  %v115 = vld [vmem:[%s1 + $0xc] sm:$0xf]
  %v116 = vld [vmem:[%s1 + $0x10] sm:$0xf]
  %v117 = vld [vmem:[%s1 + $0x14] sm:$0xf]
  %v118 = vld [vmem:[%s1 + $0x18] sm:$0xf]
  %v119 = vld [vmem:[%s1 + $0x1c] sm:$0xf]
  %v120 = vld [vmem:[%s1 + $0x20] sm:$0xf]
  %v121 = vld [vmem:[%s1 + $0x24] sm:$0xf]
  %v122 = vld [vmem:[%s1 + $0x28] sm:$0xf]
  %v123 = vld [vmem:[%s1 + $0x2c] sm:$0xf]
  %v124 = vld [vmem:[%s1 + $0x30] sm:$0xf]
  %v125 = vld [vmem:[%s1 + $0x34] sm:$0xf]
  %v126 = vld [vmem:[%s1 + $0x38] sm:$0xf]
  %v127 = vld [vmem:[%s1 + $0x3c] sm:$0xf]
  %v128 = vld [vmem:[%s1 + $0x40] sm:$0xf]
  %v129 = vld [vmem:[%s1 + $0x44] sm:$0xf]
  %v130 = vld [vmem:[%s1 + $0x48] sm:$0xf]
  %v131 = vld [vmem:[%s1 + $0x4c] sm:$0xf]
  %v132 = vld [vmem:[%s1 + $0x50] sm:$0xf]
  %v133 = vld [vmem:[%s1 + $0x54] sm:$0xf]
  %v134 = vld [vmem:[%s1 + $0x58] sm:$0xf]
  %v135 = vld [vmem:[%s1 + $0x5c] sm:$0xf]
  %v136 = vld [vmem:[%s1 + $0x60] sm:$0xf]
  %v137 = vld [vmem:[%s1 + $0x64] sm:$0xf]
  %v138 = vld [vmem:[%s1 + $0x68] sm:$0xf]
  %v139 = vld [vmem:[%s1 + $0x6c] sm:$0xf]
  %v140 = vld [vmem:[%s1 + $0x70] sm:$0xf]
  %v141 = vld [vmem:[%s1 + $0x74] sm:$0xf]
  %v142 = vld [vmem:[%s1 + $0x78] sm:$0xf]
  %v143 = vld [vmem:[%s1 + $0x7c] sm:$0xf]
  %v144 = vld [vmem:[%s1 + $0x80] sm:$0xf]
  %v145 = vld [vmem:[%s1 + $0x84] sm:$0xf]
  %v146 = vld [vmem:[%s1 + $0x88] sm:$0xf]
  %v147 = vld [vmem:[%s1 + $0x8c] sm:$0xf]
  %v148 = vld [vmem:[%s1 + $0x90] sm:$0xf]
  %v149 = vld [vmem:[%s1 + $0x94] sm:$0xf]
  %v150 = vld [vmem:[%s1 + $0x98] sm:$0xf]
  %v151 = vld [vmem:[%s1 + $0x9c] sm:$0xf]
  %v152 = vld [vmem:[%s1 + $0xa0] sm:$0xf]
  %v153 = vld [vmem:[%s1 + $0xa4] sm:$0xf]
  %v154 = vld [vmem:[%s1 + $0xa8] sm:$0xf]
  %v155 = vld [vmem:[%s1 + $0xac] sm:$0xf]
  %v156 = vld [vmem:[%s1 + $0xb0] sm:$0xf]
  %v157 = vld [vmem:[%s1 + $0xb4] sm:$0xf]
  %v158 = vld [vmem:[%s1 + $0xb8] sm:$0xf]
  %v159 = vld [vmem:[%s1 + $0xbc] sm:$0xf]
  %v160 = vld [vmem:[%s1 + $0xc0] sm:$0xf]
  %v161 = vld [vmem:[%s1 + $0xc4] sm:$0xf]
  %v162 = vld [vmem:[%s1 + $0xc8] sm:$0xf]
  %v163 = vld [vmem:[%s1 + $0xcc] sm:$0xf]
  %v164 = vld [vmem:[%s1 + $0xd0] sm:$0xf]
  %v165 = vld [vmem:[%s1 + $0xd4] sm:$0xf]
  %v166 = vld [vmem:[%s1 + $0xd8] sm:$0xf]
  %v167 = vld [vmem:[%s1 + $0xdc] sm:$0xf]
  %v168 = vld [vmem:[%s1 + $0xe0] sm:$0xf]
  %v169 = vld [vmem:[%s1 + $0xe4] sm:$0xf]
  %v170 = vld [vmem:[%s1 + $0xe8] sm:$0xf]
  %v171 = vld [vmem:[%s1 + $0xec] sm:$0xf]
  %v172 = vld [vmem:[%s1 + $0xf0] sm:$0xf]
  %v173 = vld [vmem:[%s1 + $0xf4] sm:$0xf]
  %v174 = vld [vmem:[%s1 + $0xf8] sm:$0xf]
  %v175 = vld [vmem:[%s1 + $0xfc] sm:$0xf]
  %v176 = vld [vmem:[%s1 + $0x100] sm:$0xf]
  %v177 = vld [vmem:[%s1 + $0x104] sm:$0xf]
  %v178 = vld [vmem:[%s1 + $0x108] sm:$0xf]
  %v179 = vld [vmem:[%s1 + $0x10c] sm:$0xf]
  %v180 = vld [vmem:[%s1 + $0x110] sm:$0xf]
  %v181 = vld [vmem:[%s1 + $0x114] sm:$0xf]
  %v182 = vld [vmem:[%s1 + $0x118] sm:$0xf]
  %v183 = vld [vmem:[%s1 + $0x11c] sm:$0xf]
  %v184 = vld [vmem:[%s1 + $0x120] sm:$0xf]
  %v185 = vld [vmem:[%s1 + $0x124] sm:$0xf]
  %v186 = vld [vmem:[%s1 + $0x128] sm:$0xf]
  %v187 = vld [vmem:[%s1 + $0x12c] sm:$0xf]
  %v188 = vld [vmem:[%s1 + $0x130] sm:$0xf]
  %v189 = vld [vmem:[%s1 + $0x134] sm:$0xf]
  %v190 = vld [vmem:[%s1 + $0x138] sm:$0xf]
  %v191 = vld [vmem:[%s1 + $0x13c] sm:$0xf]
  %v192 = vld [vmem:[%s1 + $0x140] sm:$0xf]
  %v193 = vld [vmem:[%s1 + $0x144] sm:$0xf]
  %v194 = vld [vmem:[%s1 + $0x148] sm:$0xf]
  %v195 = vld [vmem:[%s1 + $0x14c] sm:$0xf]
  %v196 = vld [vmem:[%s1 + $0x150] sm:$0xf]
  %v197 = vld [vmem:[%s1 + $0x154] sm:$0xf]
  %v198 = vld [vmem:[%s1 + $0x158] sm:$0xf]
  %v199 = vld [vmem:[%s1 + $0x15c] sm:$0xf]
  %v200 = vld [vmem:[%s1 + $0x160] sm:$0xf]
  %v201 = vld [vmem:[%s1 + $0x164] sm:$0xf]
  %v202 = vld [vmem:[%s1 + $0x168] sm:$0xf]
  %v203 = vld [vmem:[%s1 + $0x16c] sm:$0xf]
  %v204 = vld [vmem:[%s1 + $0x170] sm:$0xf]
  %v205 = vld [vmem:[%s1 + $0x174] sm:$0xf]
  %v206 = vld [vmem:[%s1 + $0x178] sm:$0xf]
  %v207 = vld [vmem:[%s1 + $0x17c] sm:$0xf]
  %v208 = vld [vmem:[%s1 + $0x180] sm:$0xf]
  %v209 = vld [vmem:[%s1 + $0x184] sm:$0xf]
  %v210 = vld [vmem:[%s1 + $0x188] sm:$0xf]
  %v211 = vld [vmem:[%s1 + $0x18c] sm:$0xf]
  %v212 = vld [vmem:[%s1 + $0x190] sm:$0xf]
  %v213 = vld [vmem:[%s1 + $0x194] sm:$0xf]
  %v214 = vld [vmem:[%s1 + $0x198] sm:$0xf]
  %v215 = vld [vmem:[%s1 + $0x19c] sm:$0xf]
  %v216 = vld [vmem:[%s1 + $0x1a0] sm:$0xf]
  %v217 = vld [vmem:[%s1 + $0x1a4] sm:$0xf]
  %v218 = vld [vmem:[%s1 + $0x1a8] sm:$0xf]
  %v219 = vld [vmem:[%s1 + $0x1ac] sm:$0xf]
  %v220 = vld [vmem:[%s1 + $0x1b0] sm:$0xf]
  %v221 = vld [vmem:[%s1 + $0x1b4] sm:$0xf]
  %v222 = vld [vmem:[%s1 + $0x1b8] sm:$0xf]
  %v223 = vld [vmem:[%s1 + $0x1bc] sm:$0xf]
  %v224 = vld [vmem:[%s1 + $0x1c0] sm:$0xf]
  %v225 = vld [vmem:[%s1 + $0x1c4] sm:$0xf]
  %v226 = vld [vmem:[%s1 + $0x1c8] sm:$0xf]
  %v227 = vld [vmem:[%s1 + $0x1cc] sm:$0xf]
  %v228 = vld [vmem:[%s1 + $0x1d0] sm:$0xf]
  %v229 = vld [vmem:[%s1 + $0x1d4] sm:$0xf]
  %v230 = vld [vmem:[%s1 + $0x1d8] sm:$0xf]
  %v231 = vld [vmem:[%s1 + $0x1dc] sm:$0xf]
  %v232 = vld [vmem:[%s1 + $0x1e0] sm:$0xf]
  %v233 = vld [vmem:[%s1 + $0x1e4] sm:$0xf]
  %v234 = vld [vmem:[%s1 + $0x1e8] sm:$0xf]
  %v235 = vld [vmem:[%s1 + $0x1ec] sm:$0xf]
  %v236 = vld [vmem:[%s1 + $0x1f0] sm:$0xf]
  %v237 = vld [vmem:[%s1 + $0x1f4] sm:$0xf]
  %v238 = vld [vmem:[%s1 + $0x1f8] sm:$0xf]
  %v239 = vld [vmem:[%s1 + $0x1fc] sm:$0xf]
  %v240 = vld [vmem:[%s1 + $0x200] sm:$0xf]
  %v241 = vld [vmem:[%s1 + $0x204] sm:$0xf]
  %v242 = vld [vmem:[%s1 + $0x208] sm:$0xf]
  %v243 = vld [vmem:[%s1 + $0x20c] sm:$0xf]
  %v244 = vld [vmem:[%s1 + $0x210] sm:$0xf]
  %v245 = vld [vmem:[%s1 + $0x214] sm:$0xf]
  %v246 = vld [vmem:[%s1 + $0x218] sm:$0xf]
  %v247 = vld [vmem:[%s1 + $0x21c] sm:$0xf]
  %v248 = vld [vmem:[%s1 + $0x220] sm:$0xf]
  %v249 = vld [vmem:[%s1 + $0x224] sm:$0xf]
  %v250 = vld [vmem:[%s1 + $0x228] sm:$0xf]
  %v251 = vld [vmem:[%s1 + $0x22c] sm:$0xf]
  %v252 = vld [vmem:[%s1 + $0x230] sm:$0xf]
  %v253 = vld [vmem:[%s1 + $0x234] sm:$0xf]
  %v254 = vld [vmem:[%s1 + $0x238] sm:$0xf]
  %v255 = vld [vmem:[%s1 + $0x23c] sm:$0xf]
  %v256 = vld [vmem:[%s1 + $0x240] sm:$0xf]
  %v257 = vld [vmem:[%s1 + $0x244] sm:$0xf]
  %v258 = vld [vmem:[%s1 + $0x248] sm:$0xf]
  %v259 = vld [vmem:[%s1 + $0x24c] sm:$0xf]
  %v260 = vld [vmem:[%s1 + $0x250] sm:$0xf]
  %v261 = vld [vmem:[%s1 + $0x254] sm:$0xf]
  %v262 = vld [vmem:[%s1 + $0x258] sm:$0xf]
  %v263 = vld [vmem:[%s1 + $0x25c] sm:$0xf]
  %v264 = vld [vmem:[%s1 + $0x260] sm:$0xf]
  %v265 = vld [vmem:[%s1 + $0x264] sm:$0xf]
  %v266 = vld [vmem:[%s1 + $0x268] sm:$0xf]
  %v267 = vld [vmem:[%s1 + $0x26c] sm:$0xf]
  %v268 = vld [vmem:[%s1 + $0x270] sm:$0xf]
  %v269 = vld [vmem:[%s1 + $0x274] sm:$0xf]
  %v270 = vld [vmem:[%s1 + $0x278] sm:$0xf]
  %v271 = vld [vmem:[%s1 + $0x27c] sm:$0xf]
  %v272 = vld [vmem:[%s1 + $0x280] sm:$0xf]
  %v273 = vld [vmem:[%s1 + $0x284] sm:$0xf]
  %v274 = vld [vmem:[%s1 + $0x288] sm:$0xf]
  %v275 = vld [vmem:[%s1 + $0x28c] sm:$0xf]
  %v276 = vld [vmem:[%s1 + $0x290] sm:$0xf]
  %v277 = vld [vmem:[%s1 + $0x294] sm:$0xf]
  %v278 = vld [vmem:[%s1 + $0x298] sm:$0xf]
  %v279 = vld [vmem:[%s1 + $0x29c] sm:$0xf]
  %v280 = vld [vmem:[%s1 + $0x2a0] sm:$0xf]
  %v281 = vld [vmem:[%s1 + $0x2a4] sm:$0xf]
  %v282 = vld [vmem:[%s1 + $0x2a8] sm:$0xf]
  %v283 = vld [vmem:[%s1 + $0x2ac] sm:$0xf]
  %v284 = vld [vmem:[%s1 + $0x2b0] sm:$0xf]
  %v285 = vld [vmem:[%s1 + $0x2b4] sm:$0xf]
  %v286 = vld [vmem:[%s1 + $0x2b8] sm:$0xf]
  %v287 = vld [vmem:[%s1 + $0x2bc] sm:$0xf]
  %v288 = vld [vmem:[%s1 + $0x2c0] sm:$0xf]
  %v289 = vld [vmem:[%s1 + $0x2c4] sm:$0xf]
  %v290 = vld [vmem:[%s1 + $0x2c8] sm:$0xf]
  %v291 = vld [vmem:[%s1 + $0x2cc] sm:$0xf]
  %v292 = vld [vmem:[%s1 + $0x2d0] sm:$0xf]
  %v293 = vld [vmem:[%s1 + $0x2d4] sm:$0xf]
  %v294 = vld [vmem:[%s1 + $0x2d8] sm:$0xf]
  %v295 = vld [vmem:[%s1 + $0x2dc] sm:$0xf]
  %v296 = vld [vmem:[%s1 + $0x2e0] sm:$0xf]
  %v297 = vld [vmem:[%s1 + $0x2e4] sm:$0xf]
  %v298 = vld [vmem:[%s1 + $0x2e8] sm:$0xf]
  %v299 = vld [vmem:[%s1 + $0x2ec] sm:$0xf]
  %v300 = vld [vmem:[%s1 + $0x2f0] sm:$0xf]
  %v301 = vld [vmem:[%s1 + $0x2f4] sm:$0xf]
  %v302 = vld [vmem:[%s1 + $0x2f8] sm:$0xf]
  %v303 = vld [vmem:[%s1 + $0x2fc] sm:$0xf]
  %v304 = vld [vmem:[%s1 + $0x300] sm:$0xf]
  %v305 = vld [vmem:[%s1 + $0x304] sm:$0xf]
  %v306 = vld [vmem:[%s1 + $0x308] sm:$0xf]
  %v307 = vld [vmem:[%s1 + $0x30c] sm:$0xf]
  %v308 = vld [vmem:[%s1 + $0x310] sm:$0xf]
  %v309 = vld [vmem:[%s1 + $0x314] sm:$0xf]
  %v310 = vld [vmem:[%s1 + $0x318] sm:$0xf]
  %v311 = vld [vmem:[%s1 + $0x31c] sm:$0xf]
  %v312 = vld [vmem:[%s1 + $0x320] sm:$0xf]
  %v313 = vld [vmem:[%s1 + $0x324] sm:$0xf]
  %v314 = vld [vmem:[%s1 + $0x328] sm:$0xf]
  %v315 = vld [vmem:[%s1 + $0x32c] sm:$0xf]
  %v316 = vld [vmem:[%s1 + $0x330] sm:$0xf]
  %v317 = vld [vmem:[%s1 + $0x334] sm:$0xf]
  %v318 = vld [vmem:[%s1 + $0x338] sm:$0xf]
  %v319 = vld [vmem:[%s1 + $0x33c] sm:$0xf]
  %v320 = vld [vmem:[%s1 + $0x340] sm:$0xf]
  %v321 = vld [vmem:[%s1 + $0x344] sm:$0xf]
  %v322 = vld [vmem:[%s1 + $0x348] sm:$0xf]
  %v323 = vld [vmem:[%s1 + $0x34c] sm:$0xf]
  %v324 = vld [vmem:[%s1 + $0x350] sm:$0xf]
  %v325 = vld [vmem:[%s1 + $0x354] sm:$0xf]
  %v326 = vld [vmem:[%s1 + $0x358] sm:$0xf]
  %v327 = vld [vmem:[%s1 + $0x35c] sm:$0xf]
  %v328 = vld [vmem:[%s1 + $0x360] sm:$0xf]
  %v329 = vld [vmem:[%s1 + $0x364] sm:$0xf]
  %v330 = vld [vmem:[%s1 + $0x368] sm:$0xf]
  %v331 = vld [vmem:[%s1 + $0x36c] sm:$0xf]
  %v332 = vld [vmem:[%s1 + $0x370] sm:$0xf]
  %v333 = vld [vmem:[%s1 + $0x374] sm:$0xf]
  %v334 = vld [vmem:[%s1 + $0x378] sm:$0xf]
  %v335 = vld [vmem:[%s1 + $0x37c] sm:$0xf]
  %v336 = vld [vmem:[%s1 + $0x380] sm:$0xf]
  %v337 = vld [vmem:[%s1 + $0x384] sm:$0xf]
  %v338 = vld [vmem:[%s1 + $0x388] sm:$0xf]
  %v339 = vld [vmem:[%s1 + $0x38c] sm:$0xf]
  %v340 = vld [vmem:[%s1 + $0x390] sm:$0xf]
  %v341 = vld [vmem:[%s1 + $0x394] sm:$0xf]
  %v342 = vld [vmem:[%s1 + $0x398] sm:$0xf]
  %v343 = vld [vmem:[%s1 + $0x39c] sm:$0xf]
  %v344 = vld [vmem:[%s1 + $0x3a0] sm:$0xf]
  %v345 = vld [vmem:[%s1 + $0x3a4] sm:$0xf]
  %v346 = vld [vmem:[%s1 + $0x3a8] sm:$0xf]
  %v347 = vld [vmem:[%s1 + $0x3ac] sm:$0xf]
  %v348 = vld [vmem:[%s1 + $0x3b0] sm:$0xf]
  %v349 = vld [vmem:[%s1 + $0x3b4] sm:$0xf]
  %v350 = vld [vmem:[%s1 + $0x3b8] sm:$0xf]
  %v351 = vld [vmem:[%s1 + $0x3bc] sm:$0xf]
  %v352 = vld [vmem:[%s1 + $0x3c0] sm:$0xf]
  %v353 = vld [vmem:[%s1 + $0x3c4] sm:$0xf]
  %v354 = vld [vmem:[%s1 + $0x3c8] sm:$0xf]
  %v355 = vld [vmem:[%s1 + $0x3cc] sm:$0xf]
  %v356 = vld [vmem:[%s1 + $0x3d0] sm:$0xf]
  %v357 = vld [vmem:[%s1 + $0x3d4] sm:$0xf]
  %v358 = vld [vmem:[%s1 + $0x3d8] sm:$0xf]
  %v359 = vld [vmem:[%s1 + $0x3dc] sm:$0xf]
  %v360 = vld [vmem:[%s1 + $0x3e0] sm:$0xf]
  %v361 = vld [vmem:[%s1 + $0x3e4] sm:$0xf]
  %v362 = vld [vmem:[%s1 + $0x3e8] sm:$0xf]
  %v363 = vld [vmem:[%s1 + $0x3ec] sm:$0xf]
  %v364 = vld [vmem:[%s1 + $0x3f0] sm:$0xf]
  %v365 = vld [vmem:[%s1 + $0x3f4] sm:$0xf]
  %v366 = vld [vmem:[%s1 + $0x3f8] sm:$0xf]
  %v367 = vld [vmem:[%s1 + $0x3fc] sm:$0xf]
  %v368 = vld [vmem:[%s1 + $0x400] sm:$0xf]
  %v369 = vld [vmem:[%s1 + $0x404] sm:$0xf]
  %v370 = vld [vmem:[%s1 + $0x408] sm:$0xf]
  %v371 = vld [vmem:[%s1 + $0x40c] sm:$0xf]
  %v372 = vld [vmem:[%s1 + $0x410] sm:$0xf]
  %v373 = vld [vmem:[%s1 + $0x414] sm:$0xf]
  %v374 = vld [vmem:[%s1 + $0x418] sm:$0xf]
  %v375 = vld [vmem:[%s1 + $0x41c] sm:$0xf]
  %v376 = vld [vmem:[%s1 + $0x420] sm:$0xf]
  %v377 = vld [vmem:[%s1 + $0x424] sm:$0xf]
  %v378 = vld [vmem:[%s1 + $0x428] sm:$0xf]
  %v379 = vld [vmem:[%s1 + $0x42c] sm:$0xf]
  %v380 = vld [vmem:[%s1 + $0x430] sm:$0xf]
  %v381 = vld [vmem:[%s1 + $0x434] sm:$0xf]
  %v382 = vld [vmem:[%s1 + $0x438] sm:$0xf]
  %v383 = vld [vmem:[%s1 + $0x43c] sm:$0xf]
  %v384 = vld [vmem:[%s1 + $0x440] sm:$0xf]
  %v385 = vld [vmem:[%s1 + $0x444] sm:$0xf]
  %v386 = vld [vmem:[%s1 + $0x448] sm:$0xf]
  %v387 = vld [vmem:[%s1 + $0x44c] sm:$0xf]
  %v388 = vld [vmem:[%s1 + $0x450] sm:$0xf]
  %v389 = vld [vmem:[%s1 + $0x454] sm:$0xf]
  %v390 = vld [vmem:[%s1 + $0x458] sm:$0xf]
  %v391 = vld [vmem:[%s1 + $0x45c] sm:$0xf]
  %v392 = vld [vmem:[%s1 + $0x460] sm:$0xf]
  %v393 = vld [vmem:[%s1 + $0x464] sm:$0xf]
  %v394 = vld [vmem:[%s1 + $0x468] sm:$0xf]
  %v395 = vld [vmem:[%s1 + $0x46c] sm:$0xf]
  %v396 = vld [vmem:[%s1 + $0x470] sm:$0xf]
  %v397 = vld [vmem:[%s1 + $0x474] sm:$0xf]
  %v398 = vld [vmem:[%s1 + $0x478] sm:$0xf]
  %v399 = vld [vmem:[%s1 + $0x47c] sm:$0xf]
  %v400 = vld [vmem:[%s1 + $0x480] sm:$0xf]
  %v401 = vld [vmem:[%s1 + $0x484] sm:$0xf]
  %v402 = vld [vmem:[%s1 + $0x488] sm:$0xf]
  %v403 = vld [vmem:[%s1 + $0x48c] sm:$0xf]
  %v404 = vld [vmem:[%s1 + $0x490] sm:$0xf]
  %v405 = vld [vmem:[%s1 + $0x494] sm:$0xf]
  %v406 = vld [vmem:[%s1 + $0x498] sm:$0xf]
  %v407 = vld [vmem:[%s1 + $0x49c] sm:$0xf]
  %v408 = vld [vmem:[%s1 + $0x4a0] sm:$0xf]
  %v409 = vld [vmem:[%s1 + $0x4a4] sm:$0xf]
  %v410 = vld [vmem:[%s1 + $0x4a8] sm:$0xf]
  %v411 = vld [vmem:[%s1 + $0x4ac] sm:$0xf]
  %v412 = vld [vmem:[%s1 + $0x4b0] sm:$0xf]
  %v413 = vld [vmem:[%s1 + $0x4b4] sm:$0xf]
  %v414 = vld [vmem:[%s1 + $0x4b8] sm:$0xf]
  %v415 = vld [vmem:[%s1 + $0x4bc] sm:$0xf]
  %v416 = vld [vmem:[%s1 + $0x4c0] sm:$0xf]
  %v417 = vld [vmem:[%s1 + $0x4c4] sm:$0xf]
  %v418 = vld [vmem:[%s1 + $0x4c8] sm:$0xf]
  %v419 = vld [vmem:[%s1 + $0x4cc] sm:$0xf]
  %v420 = vld [vmem:[%s1 + $0x4d0] sm:$0xf]
  %v421 = vld [vmem:[%s1 + $0x4d4] sm:$0xf]
  %v422 = vld [vmem:[%s1 + $0x4d8] sm:$0xf]
  %v423 = vld [vmem:[%s1 + $0x4dc] sm:$0xf]
  %v424 = vld [vmem:[%s1 + $0x4e0] sm:$0xf]
  %v425 = vld [vmem:[%s1 + $0x4e4] sm:$0xf]
  %v426 = vld [vmem:[%s1 + $0x4e8] sm:$0xf]
  %v427 = vld [vmem:[%s1 + $0x4ec] sm:$0xf]
  %v428 = vld [vmem:[%s1 + $0x4f0] sm:$0xf]
  %v429 = vld [vmem:[%s1 + $0x4f4] sm:$0xf]
  %v430 = vld [vmem:[%s1 + $0x4f8] sm:$0xf]
  %v431 = vld [vmem:[%s1 + $0x4fc] sm:$0xf]
  %v432 = vld [vmem:[%s1 + $0x500] sm:$0xf]
  %v433 = vld [vmem:[%s1 + $0x504] sm:$0xf]
  %v434 = vld [vmem:[%s1 + $0x508] sm:$0xf]
  %v435 = vld [vmem:[%s1 + $0x50c] sm:$0xf]
  %v436 = vld [vmem:[%s1 + $0x510] sm:$0xf]
  %v437 = vld [vmem:[%s1 + $0x514] sm:$0xf]
  %v438 = vld [vmem:[%s1 + $0x518] sm:$0xf]
  %v439 = vld [vmem:[%s1 + $0x51c] sm:$0xf]
  %v440 = vld [vmem:[%s1 + $0x520] sm:$0xf]
  %v441 = vld [vmem:[%s1 + $0x524] sm:$0xf]
  %v442 = vld [vmem:[%s1 + $0x528] sm:$0xf]
  %v443 = vld [vmem:[%s1 + $0x52c] sm:$0xf]
  %v444 = vld [vmem:[%s1 + $0x530] sm:$0xf]
  %v445 = vld [vmem:[%s1 + $0x534] sm:$0xf]
  %v446 = vld [vmem:[%s1 + $0x538] sm:$0xf]
  %v447 = vld [vmem:[%s1 + $0x53c] sm:$0xf]
  %v448 = vld [vmem:[%s1 + $0x540] sm:$0xf]
  %v449 = vld [vmem:[%s1 + $0x544] sm:$0xf]
  %v450 = vld [vmem:[%s1 + $0x548] sm:$0xf]
  %v451 = vld [vmem:[%s1 + $0x54c] sm:$0xf]
  %v452 = vld [vmem:[%s1 + $0x550] sm:$0xf]
  %v453 = vld [vmem:[%s1 + $0x554] sm:$0xf]
  %v454 = vld [vmem:[%s1 + $0x558] sm:$0xf]
  %v455 = vld [vmem:[%s1 + $0x55c] sm:$0xf]
  %v456 = vld [vmem:[%s1 + $0x560] sm:$0xf]
  %v457 = vld [vmem:[%s1 + $0x564] sm:$0xf]
  %v458 = vld [vmem:[%s1 + $0x568] sm:$0xf]
  %v459 = vld [vmem:[%s1 + $0x56c] sm:$0xf]
  %v460 = vld [vmem:[%s1 + $0x570] sm:$0xf]
  %v461 = vld [vmem:[%s1 + $0x574] sm:$0xf]
  %v462 = vld [vmem:[%s1 + $0x578] sm:$0xf]
  %v463 = vld [vmem:[%s1 + $0x57c] sm:$0xf]
  %v464 = vld [vmem:[%s1 + $0x580] sm:$0xf]
  %v465 = vld [vmem:[%s1 + $0x584] sm:$0xf]
  %v466 = vld [vmem:[%s1 + $0x588] sm:$0xf]
  %v467 = vld [vmem:[%s1 + $0x58c] sm:$0xf]
  %v468 = vld [vmem:[%s1 + $0x590] sm:$0xf]
  %v469 = vld [vmem:[%s1 + $0x594] sm:$0xf]
  %v470 = vld [vmem:[%s1 + $0x598] sm:$0xf]
  %v471 = vld [vmem:[%s1 + $0x59c] sm:$0xf]
  %v472 = vld [vmem:[%s1 + $0x5a0] sm:$0xf]
  %v473 = vld [vmem:[%s1 + $0x5a4] sm:$0xf]
  %v474 = vld [vmem:[%s1 + $0x5a8] sm:$0xf]
  %v475 = vld [vmem:[%s1 + $0x5ac] sm:$0xf]
  %v476 = vld [vmem:[%s1 + $0x5b0] sm:$0xf]
  %v477 = vld [vmem:[%s1 + $0x5b4] sm:$0xf]
  %v478 = vld [vmem:[%s1 + $0x5b8] sm:$0xf]
  %v479 = vld [vmem:[%s1 + $0x5bc] sm:$0xf]
  %v480 = vld [vmem:[%s1 + $0x5c0] sm:$0xf]
  %v481 = vld [vmem:[%s1 + $0x5c4] sm:$0xf]
  %v482 = vld [vmem:[%s1 + $0x5c8] sm:$0xf]
  %v483 = vld [vmem:[%s1 + $0x5cc] sm:$0xf]
  %v484 = vld [vmem:[%s1 + $0x5d0] sm:$0xf]
  %v485 = vld [vmem:[%s1 + $0x5d4] sm:$0xf]
  %v486 = vld [vmem:[%s1 + $0x5d8] sm:$0xf]
  %v487 = vld [vmem:[%s1 + $0x5dc] sm:$0xf]
  %v488 = vld [vmem:[%s1 + $0x5e0] sm:$0xf]
  %v489 = vld [vmem:[%s1 + $0x5e4] sm:$0xf]
  %v490 = vld [vmem:[%s1 + $0x5e8] sm:$0xf]
  %v491 = vld [vmem:[%s1 + $0x5ec] sm:$0xf]
  %v492 = vld [vmem:[%s1 + $0x5f0] sm:$0xf]
  %v493 = vld [vmem:[%s1 + $0x5f4] sm:$0xf]
  %v494 = vld [vmem:[%s1 + $0x5f8] sm:$0xf]
  %v495 = vld [vmem:[%s1 + $0x5fc] sm:$0xf]
  %v496 = vld [vmem:[%s2] sm:$0xff]
  %v497 = vld [vmem:[%s2 + $0x8] sm:$0xff]
  %v498 = vld [vmem:[%s2 + $0x10] sm:$0xff]
  %v499 = vld [vmem:[%s2 + $0x18] sm:$0xff]
  %v548 = vunpack.c.l.b16 %v64
  %v549 = vunpack.c.h.b16 %v64
  %v550 = vunpack.c.l.b16 %v65
  %v551 = vunpack.c.h.b16 %v65
  %v552 = vunpack.c.l.b16 %v66
  %v553 = vunpack.c.h.b16 %v66
  %v554 = vunpack.c.l.b16 %v67
  %v555 = vunpack.c.h.b16 %v67
  %v556 = vunpack.c.l.b16 %v68
  %v557 = vunpack.c.h.b16 %v68
  %v558 = vunpack.c.l.b16 %v69
  %v559 = vunpack.c.h.b16 %v69
  %v560 = vunpack.c.l.b16 %v70
  %v561 = vunpack.c.h.b16 %v70
  %v562 = vunpack.c.l.b16 %v71
  %v563 = vunpack.c.h.b16 %v71
  %v564 = vunpack.c.l.b16 %v72
  %v565 = vunpack.c.h.b16 %v72
  %v566 = vunpack.c.l.b16 %v73
  %v567 = vunpack.c.h.b16 %v73
  %v568 = vunpack.c.l.b16 %v74
  %v569 = vunpack.c.h.b16 %v74
  %v570 = vunpack.c.l.b16 %v75
  %v571 = vunpack.c.h.b16 %v75
  %v572 = vunpack.c.l.b16 %v76
  %v573 = vunpack.c.h.b16 %v76
  %v574 = vunpack.c.l.b16 %v77
  %v575 = vunpack.c.h.b16 %v77
  %v576 = vunpack.c.l.b16 %v78
  %v577 = vunpack.c.h.b16 %v78
  %v578 = vunpack.c.l.b16 %v79
  %v579 = vunpack.c.h.b16 %v79
  %v580 = vunpack.c.l.b16 %v80
  %v581 = vunpack.c.h.b16 %v80
  %v582 = vunpack.c.l.b16 %v81
  %v583 = vunpack.c.h.b16 %v81
  %v584 = vunpack.c.l.b16 %v82
  %v585 = vunpack.c.h.b16 %v82
  %v586 = vunpack.c.l.b16 %v83
  %v587 = vunpack.c.h.b16 %v83
  %v588 = vunpack.c.l.b16 %v84
  %v589 = vunpack.c.h.b16 %v84
  %v590 = vunpack.c.l.b16 %v85
  %v591 = vunpack.c.h.b16 %v85
  %v592 = vunpack.c.l.b16 %v86
  %v593 = vunpack.c.h.b16 %v86
  %v594 = vunpack.c.l.b16 %v87
  %v595 = vunpack.c.h.b16 %v87
  %v596 = vunpack.c.l.b16 %v88
  %v597 = vunpack.c.h.b16 %v88
  %v598 = vunpack.c.l.b16 %v89
  %v599 = vunpack.c.h.b16 %v89
  %v600 = vunpack.c.l.b16 %v90
  %v601 = vunpack.c.h.b16 %v90
  %v602 = vunpack.c.l.b16 %v91
  %v603 = vunpack.c.h.b16 %v91
  %v604 = vunpack.c.l.b16 %v92
  %v605 = vunpack.c.h.b16 %v92
  %v606 = vunpack.c.l.b16 %v93
  %v607 = vunpack.c.h.b16 %v93
  %v608 = vunpack.c.l.b16 %v94
  %v609 = vunpack.c.h.b16 %v94
  %v610 = vunpack.c.l.b16 %v95
  %v611 = vunpack.c.h.b16 %v95
  %v612 = vunpack.c.l.b16 %v96
  %v613 = vunpack.c.h.b16 %v96
  %v614 = vunpack.c.l.b16 %v97
  %v615 = vunpack.c.h.b16 %v97
  %v616 = vunpack.c.l.b16 %v98
  %v617 = vunpack.c.h.b16 %v98
  %v618 = vunpack.c.l.b16 %v99
  %v619 = vunpack.c.h.b16 %v99
  %v620 = vunpack.c.l.b16 %v100
  %v621 = vunpack.c.h.b16 %v100
  %v622 = vunpack.c.l.b16 %v101
  %v623 = vunpack.c.h.b16 %v101
  %v624 = vunpack.c.l.b16 %v102
  %v625 = vunpack.c.h.b16 %v102
  %v626 = vunpack.c.l.b16 %v103
  %v627 = vunpack.c.h.b16 %v103
  %v628 = vunpack.c.l.b16 %v104
  %v629 = vunpack.c.h.b16 %v104
  %v630 = vunpack.c.l.b16 %v105
  %v631 = vunpack.c.h.b16 %v105
  %v632 = vunpack.c.l.b16 %v106
  %v633 = vunpack.c.h.b16 %v106
  %v634 = vunpack.c.l.b16 %v107
  %v635 = vunpack.c.h.b16 %v107
  %v636 = vunpack.c.l.b16 %v108
  %v637 = vunpack.c.h.b16 %v108
  %v638 = vunpack.c.l.b16 %v109
  %v639 = vunpack.c.h.b16 %v109
  %v640 = vunpack.c.l.b16 %v110
  %v641 = vunpack.c.h.b16 %v110
  %v642 = vunpack.c.l.b16 %v111
  %v643 = vunpack.c.h.b16 %v111
  %v644 = vpack.c.b16 %v572, %v548
  %v645 = vpack.c.b16 %v573, %v549
  %v646 = vpack.c.b16 %v574, %v550
  %v647 = vpack.c.b16 %v575, %v551
  %v648 = vpack.c.b16 %v576, %v552
  %v649 = vpack.c.b16 %v577, %v553
  %v650 = vpack.c.b16 %v578, %v554
  %v651 = vpack.c.b16 %v579, %v555
  %v652 = vpack.c.b16 %v580, %v556
  %v653 = vpack.c.b16 %v581, %v557
  %v654 = vpack.c.b16 %v582, %v558
  %v655 = vpack.c.b16 %v583, %v559
  %v656 = vpack.c.b16 %v584, %v560
  %v657 = vpack.c.b16 %v585, %v561
  %v658 = vpack.c.b16 %v586, %v562
  %v659 = vpack.c.b16 %v587, %v563
  %v660 = vpack.c.b16 %v588, %v564
  %v661 = vpack.c.b16 %v589, %v565
  %v662 = vpack.c.b16 %v590, %v566
  %v663 = vpack.c.b16 %v591, %v567
  %v664 = vpack.c.b16 %v592, %v568
  %v665 = vpack.c.b16 %v593, %v569
  %v666 = vpack.c.b16 %v594, %v570
  %v667 = vpack.c.b16 %v595, %v571
  %v668 = vpack.c.b16 %v620, %v596
  %v669 = vpack.c.b16 %v621, %v597
  %v670 = vpack.c.b16 %v622, %v598
  %v671 = vpack.c.b16 %v623, %v599
  %v672 = vpack.c.b16 %v624, %v600
  %v673 = vpack.c.b16 %v625, %v601
  %v674 = vpack.c.b16 %v626, %v602
  %v675 = vpack.c.b16 %v627, %v603
  %v676 = vpack.c.b16 %v628, %v604
  %v677 = vpack.c.b16 %v629, %v605
  %v678 = vpack.c.b16 %v630, %v606
  %v679 = vpack.c.b16 %v631, %v607
  %v680 = vpack.c.b16 %v632, %v608
  %v681 = vpack.c.b16 %v633, %v609
  %v682 = vpack.c.b16 %v634, %v610
  %v683 = vpack.c.b16 %v635, %v611
  %v684 = vpack.c.b16 %v636, %v612
  %v685 = vpack.c.b16 %v637, %v613
  %v686 = vpack.c.b16 %v638, %v614
  %v687 = vpack.c.b16 %v639, %v615
  %v688 = vpack.c.b16 %v640, %v616
  %v689 = vpack.c.b16 %v641, %v617
  %v690 = vpack.c.b16 %v642, %v618
  %v691 = vpack.c.b16 %v643, %v619
  %v1124 = vunpack.c.l.b16 %v112
  %v1125 = vunpack.c.l.b16 %v113
  %v1126 = vunpack.c.l.b16 %v114
  %v1127 = vunpack.c.l.b16 %v115
  %v1128 = vunpack.c.l.b16 %v116
  %v1129 = vunpack.c.l.b16 %v117
  %v1130 = vunpack.c.l.b16 %v118
  %v1131 = vunpack.c.l.b16 %v119
  %v1132 = vunpack.c.l.b16 %v120
  %v1133 = vunpack.c.l.b16 %v121
  %v1134 = vunpack.c.l.b16 %v122
  %v1135 = vunpack.c.l.b16 %v123
  %v1136 = vunpack.c.l.b16 %v124
  %v1137 = vunpack.c.l.b16 %v125
  %v1138 = vunpack.c.l.b16 %v126
  %v1139 = vunpack.c.l.b16 %v127
  %v1140 = vunpack.c.l.b16 %v128
  %v1141 = vunpack.c.l.b16 %v129
  %v1142 = vunpack.c.l.b16 %v130
  %v1143 = vunpack.c.l.b16 %v131
  %v1144 = vunpack.c.l.b16 %v132
  %v1145 = vunpack.c.l.b16 %v133
  %v1146 = vunpack.c.l.b16 %v134
  %v1147 = vunpack.c.l.b16 %v135
  %v1148 = vunpack.c.l.b16 %v136
  %v1149 = vunpack.c.l.b16 %v137
  %v1150 = vunpack.c.l.b16 %v138
  %v1151 = vunpack.c.l.b16 %v139
  %v1152 = vunpack.c.l.b16 %v140
  %v1153 = vunpack.c.l.b16 %v141
  %v1154 = vunpack.c.l.b16 %v142
  %v1155 = vunpack.c.l.b16 %v143
  %v1156 = vunpack.c.l.b16 %v144
  %v1157 = vunpack.c.l.b16 %v145
  %v1158 = vunpack.c.l.b16 %v146
  %v1159 = vunpack.c.l.b16 %v147
  %v1160 = vunpack.c.l.b16 %v148
  %v1161 = vunpack.c.l.b16 %v149
  %v1162 = vunpack.c.l.b16 %v150
  %v1163 = vunpack.c.l.b16 %v151
  %v1164 = vunpack.c.l.b16 %v152
  %v1165 = vunpack.c.l.b16 %v153
  %v1166 = vunpack.c.l.b16 %v154
  %v1167 = vunpack.c.l.b16 %v155
  %v1168 = vunpack.c.l.b16 %v156
  %v1169 = vunpack.c.l.b16 %v157
  %v1170 = vunpack.c.l.b16 %v158
  %v1171 = vunpack.c.l.b16 %v159
  %v1172 = vunpack.c.l.b16 %v160
  %v1173 = vunpack.c.l.b16 %v161
  %v1174 = vunpack.c.l.b16 %v162
  %v1175 = vunpack.c.l.b16 %v163
  %v1176 = vunpack.c.l.b16 %v164
  %v1177 = vunpack.c.l.b16 %v165
  %v1178 = vunpack.c.l.b16 %v166
  %v1179 = vunpack.c.l.b16 %v167
  %v1180 = vunpack.c.l.b16 %v168
  %v1181 = vunpack.c.l.b16 %v169
  %v1182 = vunpack.c.l.b16 %v170
  %v1183 = vunpack.c.l.b16 %v171
  %v1184 = vunpack.c.l.b16 %v172
  %v1185 = vunpack.c.l.b16 %v173
  %v1186 = vunpack.c.l.b16 %v174
  %v1187 = vunpack.c.l.b16 %v175
  %v1188 = vunpack.c.l.b16 %v176
  %v1189 = vunpack.c.l.b16 %v177
  %v1190 = vunpack.c.l.b16 %v178
  %v1191 = vunpack.c.l.b16 %v179
  %v1192 = vunpack.c.l.b16 %v180
  %v1193 = vunpack.c.l.b16 %v181
  %v1194 = vunpack.c.l.b16 %v182
  %v1195 = vunpack.c.l.b16 %v183
  %v1196 = vunpack.c.l.b16 %v184
  %v1197 = vunpack.c.l.b16 %v185
  %v1198 = vunpack.c.l.b16 %v186
  %v1199 = vunpack.c.l.b16 %v187
  %v1200 = vunpack.c.l.b16 %v188
  %v1201 = vunpack.c.l.b16 %v189
  %v1202 = vunpack.c.l.b16 %v190
  %v1203 = vunpack.c.l.b16 %v191
  %v1204 = vunpack.c.l.b16 %v192
  %v1205 = vunpack.c.l.b16 %v193
  %v1206 = vunpack.c.l.b16 %v194
  %v1207 = vunpack.c.l.b16 %v195
  %v1208 = vunpack.c.l.b16 %v196
  %v1209 = vunpack.c.l.b16 %v197
  %v1210 = vunpack.c.l.b16 %v198
  %v1211 = vunpack.c.l.b16 %v199
  %v1212 = vunpack.c.l.b16 %v200
  %v1213 = vunpack.c.l.b16 %v201
  %v1214 = vunpack.c.l.b16 %v202
  %v1215 = vunpack.c.l.b16 %v203
  %v1216 = vunpack.c.l.b16 %v204
  %v1217 = vunpack.c.l.b16 %v205
  %v1218 = vunpack.c.l.b16 %v206
  %v1219 = vunpack.c.l.b16 %v207
  %v1220 = vunpack.c.l.b16 %v208
  %v1221 = vunpack.c.l.b16 %v209
  %v1222 = vunpack.c.l.b16 %v210
  %v1223 = vunpack.c.l.b16 %v211
  %v1224 = vunpack.c.l.b16 %v212
  %v1225 = vunpack.c.l.b16 %v213
  %v1226 = vunpack.c.l.b16 %v214
  %v1227 = vunpack.c.l.b16 %v215
  %v1228 = vunpack.c.l.b16 %v216
  %v1229 = vunpack.c.l.b16 %v217
  %v1230 = vunpack.c.l.b16 %v218
  %v1231 = vunpack.c.l.b16 %v219
  %v1232 = vunpack.c.l.b16 %v220
  %v1233 = vunpack.c.l.b16 %v221
  %v1234 = vunpack.c.l.b16 %v222
  %v1235 = vunpack.c.l.b16 %v223
  %v1236 = vunpack.c.l.b16 %v224
  %v1237 = vunpack.c.l.b16 %v225
  %v1238 = vunpack.c.l.b16 %v226
  %v1239 = vunpack.c.l.b16 %v227
  %v1240 = vunpack.c.l.b16 %v228
  %v1241 = vunpack.c.l.b16 %v229
  %v1242 = vunpack.c.l.b16 %v230
  %v1243 = vunpack.c.l.b16 %v231
  %v1244 = vunpack.c.l.b16 %v232
  %v1245 = vunpack.c.l.b16 %v233
  %v1246 = vunpack.c.l.b16 %v234
  %v1247 = vunpack.c.l.b16 %v235
  %v1248 = vunpack.c.l.b16 %v236
  %v1249 = vunpack.c.l.b16 %v237
  %v1250 = vunpack.c.l.b16 %v238
  %v1251 = vunpack.c.l.b16 %v239
  %v1252 = vunpack.c.l.b16 %v240
  %v1253 = vunpack.c.l.b16 %v241
  %v1254 = vunpack.c.l.b16 %v242
  %v1255 = vunpack.c.l.b16 %v243
  %v1256 = vunpack.c.l.b16 %v244
  %v1257 = vunpack.c.l.b16 %v245
  %v1258 = vunpack.c.l.b16 %v246
  %v1259 = vunpack.c.l.b16 %v247
  %v1260 = vunpack.c.l.b16 %v248
  %v1261 = vunpack.c.l.b16 %v249
  %v1262 = vunpack.c.l.b16 %v250
  %v1263 = vunpack.c.l.b16 %v251
  %v1264 = vunpack.c.l.b16 %v252
  %v1265 = vunpack.c.l.b16 %v253
  %v1266 = vunpack.c.l.b16 %v254
  %v1267 = vunpack.c.l.b16 %v255
  %v1268 = vunpack.c.l.b16 %v256
  %v1269 = vunpack.c.l.b16 %v257
  %v1270 = vunpack.c.l.b16 %v258
  %v1271 = vunpack.c.l.b16 %v259
  %v1272 = vunpack.c.l.b16 %v260
  %v1273 = vunpack.c.l.b16 %v261
  %v1274 = vunpack.c.l.b16 %v262
  %v1275 = vunpack.c.l.b16 %v263
  %v1276 = vunpack.c.l.b16 %v264
  %v1277 = vunpack.c.l.b16 %v265
  %v1278 = vunpack.c.l.b16 %v266
  %v1279 = vunpack.c.l.b16 %v267
  %v1280 = vunpack.c.l.b16 %v268
  %v1281 = vunpack.c.l.b16 %v269
  %v1282 = vunpack.c.l.b16 %v270
  %v1283 = vunpack.c.l.b16 %v271
  %v1284 = vunpack.c.l.b16 %v272
  %v1285 = vunpack.c.l.b16 %v273
  %v1286 = vunpack.c.l.b16 %v274
  %v1287 = vunpack.c.l.b16 %v275
  %v1288 = vunpack.c.l.b16 %v276
  %v1289 = vunpack.c.l.b16 %v277
  %v1290 = vunpack.c.l.b16 %v278
  %v1291 = vunpack.c.l.b16 %v279
  %v1292 = vunpack.c.l.b16 %v280
  %v1293 = vunpack.c.l.b16 %v281
  %v1294 = vunpack.c.l.b16 %v282
  %v1295 = vunpack.c.l.b16 %v283
  %v1296 = vunpack.c.l.b16 %v284
  %v1297 = vunpack.c.l.b16 %v285
  %v1298 = vunpack.c.l.b16 %v286
  %v1299 = vunpack.c.l.b16 %v287
  %v1300 = vunpack.c.l.b16 %v288
  %v1301 = vunpack.c.l.b16 %v289
  %v1302 = vunpack.c.l.b16 %v290
  %v1303 = vunpack.c.l.b16 %v291
  %v1304 = vunpack.c.l.b16 %v292
  %v1305 = vunpack.c.l.b16 %v293
  %v1306 = vunpack.c.l.b16 %v294
  %v1307 = vunpack.c.l.b16 %v295
  %v1308 = vunpack.c.l.b16 %v296
  %v1309 = vunpack.c.l.b16 %v297
  %v1310 = vunpack.c.l.b16 %v298
  %v1311 = vunpack.c.l.b16 %v299
  %v1312 = vunpack.c.l.b16 %v300
  %v1313 = vunpack.c.l.b16 %v301
  %v1314 = vunpack.c.l.b16 %v302
  %v1315 = vunpack.c.l.b16 %v303
  %v1316 = vunpack.c.l.b16 %v304
  %v1317 = vunpack.c.l.b16 %v305
  %v1318 = vunpack.c.l.b16 %v306
  %v1319 = vunpack.c.l.b16 %v307
  %v1320 = vunpack.c.l.b16 %v308
  %v1321 = vunpack.c.l.b16 %v309
  %v1322 = vunpack.c.l.b16 %v310
  %v1323 = vunpack.c.l.b16 %v311
  %v1324 = vunpack.c.l.b16 %v312
  %v1325 = vunpack.c.l.b16 %v313
  %v1326 = vunpack.c.l.b16 %v314
  %v1327 = vunpack.c.l.b16 %v315
  %v1328 = vunpack.c.l.b16 %v316
  %v1329 = vunpack.c.l.b16 %v317
  %v1330 = vunpack.c.l.b16 %v318
  %v1331 = vunpack.c.l.b16 %v319
  %v1332 = vunpack.c.l.b16 %v320
  %v1333 = vunpack.c.l.b16 %v321
  %v1334 = vunpack.c.l.b16 %v322
  %v1335 = vunpack.c.l.b16 %v323
  %v1336 = vunpack.c.l.b16 %v324
  %v1337 = vunpack.c.l.b16 %v325
  %v1338 = vunpack.c.l.b16 %v326
  %v1339 = vunpack.c.l.b16 %v327
  %v1340 = vunpack.c.l.b16 %v328
  %v1341 = vunpack.c.l.b16 %v329
  %v1342 = vunpack.c.l.b16 %v330
  %v1343 = vunpack.c.l.b16 %v331
  %v1344 = vunpack.c.l.b16 %v332
  %v1345 = vunpack.c.l.b16 %v333
  %v1346 = vunpack.c.l.b16 %v334
  %v1347 = vunpack.c.l.b16 %v335
  %v1348 = vunpack.c.l.b16 %v336
  %v1349 = vunpack.c.l.b16 %v337
  %v1350 = vunpack.c.l.b16 %v338
  %v1351 = vunpack.c.l.b16 %v339
  %v1352 = vunpack.c.l.b16 %v340
  %v1353 = vunpack.c.l.b16 %v341
  %v1354 = vunpack.c.l.b16 %v342
  %v1355 = vunpack.c.l.b16 %v343
  %v1356 = vunpack.c.l.b16 %v344
  %v1357 = vunpack.c.l.b16 %v345
  %v1358 = vunpack.c.l.b16 %v346
  %v1359 = vunpack.c.l.b16 %v347
  %v1360 = vunpack.c.l.b16 %v348
  %v1361 = vunpack.c.l.b16 %v349
  %v1362 = vunpack.c.l.b16 %v350
  %v1363 = vunpack.c.l.b16 %v351
  %v1364 = vunpack.c.l.b16 %v352
  %v1365 = vunpack.c.l.b16 %v353
  %v1366 = vunpack.c.l.b16 %v354
  %v1367 = vunpack.c.l.b16 %v355
  %v1368 = vunpack.c.l.b16 %v356
  %v1369 = vunpack.c.l.b16 %v357
  %v1370 = vunpack.c.l.b16 %v358
  %v1371 = vunpack.c.l.b16 %v359
  %v1372 = vunpack.c.l.b16 %v360
  %v1373 = vunpack.c.l.b16 %v361
  %v1374 = vunpack.c.l.b16 %v362
  %v1375 = vunpack.c.l.b16 %v363
  %v1376 = vunpack.c.l.b16 %v364
  %v1377 = vunpack.c.l.b16 %v365
  %v1378 = vunpack.c.l.b16 %v366
  %v1379 = vunpack.c.l.b16 %v367
  %v1380 = vunpack.c.l.b16 %v368
  %v1381 = vunpack.c.l.b16 %v369
  %v1382 = vunpack.c.l.b16 %v370
  %v1383 = vunpack.c.l.b16 %v371
  %v1384 = vunpack.c.l.b16 %v372
  %v1385 = vunpack.c.l.b16 %v373
  %v1386 = vunpack.c.l.b16 %v374
  %v1387 = vunpack.c.l.b16 %v375
  %v1388 = vunpack.c.l.b16 %v376
  %v1389 = vunpack.c.l.b16 %v377
  %v1390 = vunpack.c.l.b16 %v378
  %v1391 = vunpack.c.l.b16 %v379
  %v1392 = vunpack.c.l.b16 %v380
  %v1393 = vunpack.c.l.b16 %v381
  %v1394 = vunpack.c.l.b16 %v382
  %v1395 = vunpack.c.l.b16 %v383
  %v1396 = vunpack.c.l.b16 %v384
  %v1397 = vunpack.c.l.b16 %v385
  %v1398 = vunpack.c.l.b16 %v386
  %v1399 = vunpack.c.l.b16 %v387
  %v1400 = vunpack.c.l.b16 %v388
  %v1401 = vunpack.c.l.b16 %v389
  %v1402 = vunpack.c.l.b16 %v390
  %v1403 = vunpack.c.l.b16 %v391
  %v1404 = vunpack.c.l.b16 %v392
  %v1405 = vunpack.c.l.b16 %v393
  %v1406 = vunpack.c.l.b16 %v394
  %v1407 = vunpack.c.l.b16 %v395
  %v1408 = vunpack.c.l.b16 %v396
  %v1409 = vunpack.c.l.b16 %v397
  %v1410 = vunpack.c.l.b16 %v398
  %v1411 = vunpack.c.l.b16 %v399
  %v1412 = vunpack.c.l.b16 %v400
  %v1413 = vunpack.c.l.b16 %v401
  %v1414 = vunpack.c.l.b16 %v402
  %v1415 = vunpack.c.l.b16 %v403
  %v1416 = vunpack.c.l.b16 %v404
  %v1417 = vunpack.c.l.b16 %v405
  %v1418 = vunpack.c.l.b16 %v406
  %v1419 = vunpack.c.l.b16 %v407
  %v1420 = vunpack.c.l.b16 %v408
  %v1421 = vunpack.c.l.b16 %v409
  %v1422 = vunpack.c.l.b16 %v410
  %v1423 = vunpack.c.l.b16 %v411
  %v1424 = vunpack.c.l.b16 %v412
  %v1425 = vunpack.c.l.b16 %v413
  %v1426 = vunpack.c.l.b16 %v414
  %v1427 = vunpack.c.l.b16 %v415
  %v1428 = vunpack.c.l.b16 %v416
  %v1429 = vunpack.c.l.b16 %v417
  %v1430 = vunpack.c.l.b16 %v418
  %v1431 = vunpack.c.l.b16 %v419
  %v1432 = vunpack.c.l.b16 %v420
  %v1433 = vunpack.c.l.b16 %v421
  %v1434 = vunpack.c.l.b16 %v422
  %v1435 = vunpack.c.l.b16 %v423
  %v1436 = vunpack.c.l.b16 %v424
  %v1437 = vunpack.c.l.b16 %v425
  %v1438 = vunpack.c.l.b16 %v426
  %v1439 = vunpack.c.l.b16 %v427
  %v1440 = vunpack.c.l.b16 %v428
  %v1441 = vunpack.c.l.b16 %v429
  %v1442 = vunpack.c.l.b16 %v430
  %v1443 = vunpack.c.l.b16 %v431
  %v1444 = vunpack.c.l.b16 %v432
  %v1445 = vunpack.c.l.b16 %v433
  %v1446 = vunpack.c.l.b16 %v434
  %v1447 = vunpack.c.l.b16 %v435
  %v1448 = vunpack.c.l.b16 %v436
  %v1449 = vunpack.c.l.b16 %v437
  %v1450 = vunpack.c.l.b16 %v438
  %v1451 = vunpack.c.l.b16 %v439
  %v1452 = vunpack.c.l.b16 %v440
  %v1453 = vunpack.c.l.b16 %v441
  %v1454 = vunpack.c.l.b16 %v442
  %v1455 = vunpack.c.l.b16 %v443
  %v1456 = vunpack.c.l.b16 %v444
  %v1457 = vunpack.c.l.b16 %v445
  %v1458 = vunpack.c.l.b16 %v446
  %v1459 = vunpack.c.l.b16 %v447
  %v1460 = vunpack.c.l.b16 %v448
  %v1461 = vunpack.c.l.b16 %v449
  %v1462 = vunpack.c.l.b16 %v450
  %v1463 = vunpack.c.l.b16 %v451
  %v1464 = vunpack.c.l.b16 %v452
  %v1465 = vunpack.c.l.b16 %v453
  %v1466 = vunpack.c.l.b16 %v454
  %v1467 = vunpack.c.l.b16 %v455
  %v1468 = vunpack.c.l.b16 %v456
  %v1469 = vunpack.c.l.b16 %v457
  %v1470 = vunpack.c.l.b16 %v458
  %v1471 = vunpack.c.l.b16 %v459
  %v1472 = vunpack.c.l.b16 %v460
  %v1473 = vunpack.c.l.b16 %v461
  %v1474 = vunpack.c.l.b16 %v462
  %v1475 = vunpack.c.l.b16 %v463
  %v1476 = vunpack.c.l.b16 %v464
  %v1477 = vunpack.c.l.b16 %v465
  %v1478 = vunpack.c.l.b16 %v466
  %v1479 = vunpack.c.l.b16 %v467
  %v1480 = vunpack.c.l.b16 %v468
  %v1481 = vunpack.c.l.b16 %v469
  %v1482 = vunpack.c.l.b16 %v470
  %v1483 = vunpack.c.l.b16 %v471
  %v1484 = vunpack.c.l.b16 %v472
  %v1485 = vunpack.c.l.b16 %v473
  %v1486 = vunpack.c.l.b16 %v474
  %v1487 = vunpack.c.l.b16 %v475
  %v1488 = vunpack.c.l.b16 %v476
  %v1489 = vunpack.c.l.b16 %v477
  %v1490 = vunpack.c.l.b16 %v478
  %v1491 = vunpack.c.l.b16 %v479
  %v1492 = vunpack.c.l.b16 %v480
  %v1493 = vunpack.c.l.b16 %v481
  %v1494 = vunpack.c.l.b16 %v482
  %v1495 = vunpack.c.l.b16 %v483
  %v1496 = vunpack.c.l.b16 %v484
  %v1497 = vunpack.c.l.b16 %v485
  %v1498 = vunpack.c.l.b16 %v486
  %v1499 = vunpack.c.l.b16 %v487
  %v1500 = vunpack.c.l.b16 %v488
  %v1501 = vunpack.c.l.b16 %v489
  %v1502 = vunpack.c.l.b16 %v490
  %v1503 = vunpack.c.l.b16 %v491
  %v1504 = vunpack.c.l.b16 %v492
  %v1505 = vunpack.c.l.b16 %v493
  %v1506 = vunpack.c.l.b16 %v494
  %v1507 = vunpack.c.l.b16 %v495
  %v1508 = vpack.c.b16 %v1125, %v1124
  %v1509 = vpack.c.b16 %v1127, %v1126
  %v1510 = vpack.c.b16 %v1129, %v1128
  %v1511 = vpack.c.b16 %v1131, %v1130
  %v1512 = vpack.c.b16 %v1133, %v1132
  %v1513 = vpack.c.b16 %v1135, %v1134
  %v1514 = vpack.c.b16 %v1137, %v1136
  %v1515 = vpack.c.b16 %v1139, %v1138
  %v1516 = vpack.c.b16 %v1141, %v1140
  %v1517 = vpack.c.b16 %v1143, %v1142
  %v1518 = vpack.c.b16 %v1145, %v1144
  %v1519 = vpack.c.b16 %v1147, %v1146
  %v1520 = vpack.c.b16 %v1149, %v1148
  %v1521 = vpack.c.b16 %v1151, %v1150
  %v1522 = vpack.c.b16 %v1153, %v1152
  %v1523 = vpack.c.b16 %v1155, %v1154
  %v1524 = vpack.c.b16 %v1157, %v1156
  %v1525 = vpack.c.b16 %v1159, %v1158
  %v1526 = vpack.c.b16 %v1161, %v1160
  %v1527 = vpack.c.b16 %v1163, %v1162
  %v1528 = vpack.c.b16 %v1165, %v1164
  %v1529 = vpack.c.b16 %v1167, %v1166
  %v1530 = vpack.c.b16 %v1169, %v1168
  %v1531 = vpack.c.b16 %v1171, %v1170
  %v1532 = vpack.c.b16 %v1173, %v1172
  %v1533 = vpack.c.b16 %v1175, %v1174
  %v1534 = vpack.c.b16 %v1177, %v1176
  %v1535 = vpack.c.b16 %v1179, %v1178
  %v1536 = vpack.c.b16 %v1181, %v1180
  %v1537 = vpack.c.b16 %v1183, %v1182
  %v1538 = vpack.c.b16 %v1185, %v1184
  %v1539 = vpack.c.b16 %v1187, %v1186
  %v1540 = vpack.c.b16 %v1189, %v1188
  %v1541 = vpack.c.b16 %v1191, %v1190
  %v1542 = vpack.c.b16 %v1193, %v1192
  %v1543 = vpack.c.b16 %v1195, %v1194
  %v1544 = vpack.c.b16 %v1197, %v1196
  %v1545 = vpack.c.b16 %v1199, %v1198
  %v1546 = vpack.c.b16 %v1201, %v1200
  %v1547 = vpack.c.b16 %v1203, %v1202
  %v1548 = vpack.c.b16 %v1205, %v1204
  %v1549 = vpack.c.b16 %v1207, %v1206
  %v1550 = vpack.c.b16 %v1209, %v1208
  %v1551 = vpack.c.b16 %v1211, %v1210
  %v1552 = vpack.c.b16 %v1213, %v1212
  %v1553 = vpack.c.b16 %v1215, %v1214
  %v1554 = vpack.c.b16 %v1217, %v1216
  %v1555 = vpack.c.b16 %v1219, %v1218
  %v1556 = vpack.c.b16 %v1221, %v1220
  %v1557 = vpack.c.b16 %v1223, %v1222
  %v1558 = vpack.c.b16 %v1225, %v1224
  %v1559 = vpack.c.b16 %v1227, %v1226
  %v1560 = vpack.c.b16 %v1229, %v1228
  %v1561 = vpack.c.b16 %v1231, %v1230
  %v1562 = vpack.c.b16 %v1233, %v1232
  %v1563 = vpack.c.b16 %v1235, %v1234
  %v1564 = vpack.c.b16 %v1237, %v1236
  %v1565 = vpack.c.b16 %v1239, %v1238
  %v1566 = vpack.c.b16 %v1241, %v1240
  %v1567 = vpack.c.b16 %v1243, %v1242
  %v1568 = vpack.c.b16 %v1245, %v1244
  %v1569 = vpack.c.b16 %v1247, %v1246
  %v1570 = vpack.c.b16 %v1249, %v1248
  %v1571 = vpack.c.b16 %v1251, %v1250
  %v1572 = vpack.c.b16 %v1253, %v1252
  %v1573 = vpack.c.b16 %v1255, %v1254
  %v1574 = vpack.c.b16 %v1257, %v1256
  %v1575 = vpack.c.b16 %v1259, %v1258
  %v1576 = vpack.c.b16 %v1261, %v1260
  %v1577 = vpack.c.b16 %v1263, %v1262
  %v1578 = vpack.c.b16 %v1265, %v1264
  %v1579 = vpack.c.b16 %v1267, %v1266
  %v1580 = vpack.c.b16 %v1269, %v1268
  %v1581 = vpack.c.b16 %v1271, %v1270
  %v1582 = vpack.c.b16 %v1273, %v1272
  %v1583 = vpack.c.b16 %v1275, %v1274
  %v1584 = vpack.c.b16 %v1277, %v1276
  %v1585 = vpack.c.b16 %v1279, %v1278
  %v1586 = vpack.c.b16 %v1281, %v1280
  %v1587 = vpack.c.b16 %v1283, %v1282
  %v1588 = vpack.c.b16 %v1285, %v1284
  %v1589 = vpack.c.b16 %v1287, %v1286
  %v1590 = vpack.c.b16 %v1289, %v1288
  %v1591 = vpack.c.b16 %v1291, %v1290
  %v1592 = vpack.c.b16 %v1293, %v1292
  %v1593 = vpack.c.b16 %v1295, %v1294
  %v1594 = vpack.c.b16 %v1297, %v1296
  %v1595 = vpack.c.b16 %v1299, %v1298
  %v1596 = vpack.c.b16 %v1301, %v1300
  %v1597 = vpack.c.b16 %v1303, %v1302
  %v1598 = vpack.c.b16 %v1305, %v1304
  %v1599 = vpack.c.b16 %v1307, %v1306
  %v1600 = vpack.c.b16 %v1309, %v1308
  %v1601 = vpack.c.b16 %v1311, %v1310
  %v1602 = vpack.c.b16 %v1313, %v1312
  %v1603 = vpack.c.b16 %v1315, %v1314
  %v1604 = vpack.c.b16 %v1317, %v1316
  %v1605 = vpack.c.b16 %v1319, %v1318
  %v1606 = vpack.c.b16 %v1321, %v1320
  %v1607 = vpack.c.b16 %v1323, %v1322
  %v1608 = vpack.c.b16 %v1325, %v1324
  %v1609 = vpack.c.b16 %v1327, %v1326
  %v1610 = vpack.c.b16 %v1329, %v1328
  %v1611 = vpack.c.b16 %v1331, %v1330
  %v1612 = vpack.c.b16 %v1333, %v1332
  %v1613 = vpack.c.b16 %v1335, %v1334
  %v1614 = vpack.c.b16 %v1337, %v1336
  %v1615 = vpack.c.b16 %v1339, %v1338
  %v1616 = vpack.c.b16 %v1341, %v1340
  %v1617 = vpack.c.b16 %v1343, %v1342
  %v1618 = vpack.c.b16 %v1345, %v1344
  %v1619 = vpack.c.b16 %v1347, %v1346
  %v1620 = vpack.c.b16 %v1349, %v1348
  %v1621 = vpack.c.b16 %v1351, %v1350
  %v1622 = vpack.c.b16 %v1353, %v1352
  %v1623 = vpack.c.b16 %v1355, %v1354
  %v1624 = vpack.c.b16 %v1357, %v1356
  %v1625 = vpack.c.b16 %v1359, %v1358
  %v1626 = vpack.c.b16 %v1361, %v1360
  %v1627 = vpack.c.b16 %v1363, %v1362
  %v1628 = vpack.c.b16 %v1365, %v1364
  %v1629 = vpack.c.b16 %v1367, %v1366
  %v1630 = vpack.c.b16 %v1369, %v1368
  %v1631 = vpack.c.b16 %v1371, %v1370
  %v1632 = vpack.c.b16 %v1373, %v1372
  %v1633 = vpack.c.b16 %v1375, %v1374
  %v1634 = vpack.c.b16 %v1377, %v1376
  %v1635 = vpack.c.b16 %v1379, %v1378
  %v1636 = vpack.c.b16 %v1381, %v1380
  %v1637 = vpack.c.b16 %v1383, %v1382
  %v1638 = vpack.c.b16 %v1385, %v1384
  %v1639 = vpack.c.b16 %v1387, %v1386
  %v1640 = vpack.c.b16 %v1389, %v1388
  %v1641 = vpack.c.b16 %v1391, %v1390
  %v1642 = vpack.c.b16 %v1393, %v1392
  %v1643 = vpack.c.b16 %v1395, %v1394
  %v1644 = vpack.c.b16 %v1397, %v1396
  %v1645 = vpack.c.b16 %v1399, %v1398
  %v1646 = vpack.c.b16 %v1401, %v1400
  %v1647 = vpack.c.b16 %v1403, %v1402
  %v1648 = vpack.c.b16 %v1405, %v1404
  %v1649 = vpack.c.b16 %v1407, %v1406
  %v1650 = vpack.c.b16 %v1409, %v1408
  %v1651 = vpack.c.b16 %v1411, %v1410
  %v1652 = vpack.c.b16 %v1413, %v1412
  %v1653 = vpack.c.b16 %v1415, %v1414
  %v1654 = vpack.c.b16 %v1417, %v1416
  %v1655 = vpack.c.b16 %v1419, %v1418
  %v1656 = vpack.c.b16 %v1421, %v1420
  %v1657 = vpack.c.b16 %v1423, %v1422
  %v1658 = vpack.c.b16 %v1425, %v1424
  %v1659 = vpack.c.b16 %v1427, %v1426
  %v1660 = vpack.c.b16 %v1429, %v1428
  %v1661 = vpack.c.b16 %v1431, %v1430
  %v1662 = vpack.c.b16 %v1433, %v1432
  %v1663 = vpack.c.b16 %v1435, %v1434
  %v1664 = vpack.c.b16 %v1437, %v1436
  %v1665 = vpack.c.b16 %v1439, %v1438
  %v1666 = vpack.c.b16 %v1441, %v1440
  %v1667 = vpack.c.b16 %v1443, %v1442
  %v1668 = vpack.c.b16 %v1445, %v1444
  %v1669 = vpack.c.b16 %v1447, %v1446
  %v1670 = vpack.c.b16 %v1449, %v1448
  %v1671 = vpack.c.b16 %v1451, %v1450
  %v1672 = vpack.c.b16 %v1453, %v1452
  %v1673 = vpack.c.b16 %v1455, %v1454
  %v1674 = vpack.c.b16 %v1457, %v1456
  %v1675 = vpack.c.b16 %v1459, %v1458
  %v1676 = vpack.c.b16 %v1461, %v1460
  %v1677 = vpack.c.b16 %v1463, %v1462
  %v1678 = vpack.c.b16 %v1465, %v1464
  %v1679 = vpack.c.b16 %v1467, %v1466
  %v1680 = vpack.c.b16 %v1469, %v1468
  %v1681 = vpack.c.b16 %v1471, %v1470
  %v1682 = vpack.c.b16 %v1473, %v1472
  %v1683 = vpack.c.b16 %v1475, %v1474
  %v1684 = vpack.c.b16 %v1477, %v1476
  %v1685 = vpack.c.b16 %v1479, %v1478
  %v1686 = vpack.c.b16 %v1481, %v1480
  %v1687 = vpack.c.b16 %v1483, %v1482
  %v1688 = vpack.c.b16 %v1485, %v1484
  %v1689 = vpack.c.b16 %v1487, %v1486
  %v1690 = vpack.c.b16 %v1489, %v1488
  %v1691 = vpack.c.b16 %v1491, %v1490
  %v1692 = vpack.c.b16 %v1493, %v1492
  %v1693 = vpack.c.b16 %v1495, %v1494
  %v1694 = vpack.c.b16 %v1497, %v1496
  %v1695 = vpack.c.b16 %v1499, %v1498
  %v1696 = vpack.c.b16 %v1501, %v1500
  %v1697 = vpack.c.b16 %v1503, %v1502
  %v1698 = vpack.c.b16 %v1505, %v1504
  %v1699 = vpack.c.b16 %v1507, %v1506
  %1892 = vmatprep.subr.bf16.mxu0 0
  %1893 = vmatpush1.bf16.msra.mxu0 %v1515
  %1894 = vmatprep.subr.bf16.mxu0 0
  %1895 = vmatpush1.bf16.msra.mxu0 %v1514
  %1896 = vmatprep.subr.bf16.mxu0 0
  %1897 = vmatpush1.bf16.msra.mxu0 %v1513
  %1898 = vmatprep.subr.bf16.mxu0 0
  %1899 = vmatpush1.bf16.msra.mxu0 %v1512
  %1900 = vmatprep.subr.bf16.mxu0 0
  %1901 = vmatpush1.bf16.msra.mxu0 %v1511
  %1902 = vmatprep.subr.bf16.mxu0 0
  %1903 = vmatpush1.bf16.msra.mxu0 %v1510
  %1904 = vmatprep.subr.bf16.mxu0 0
  %1905 = vmatpush1.bf16.msra.mxu0 %v1509
  %1906 = vmatprep.subr.bf16.mxu0 0
  %1907 = vmatpush1.bf16.msra.mxu0 %v1508
  %1908 = vmatprep.subr.bf16.mxu0 0
  %1909 = vmatpush2.bf16.msra.mxu0 %v1523
  %1910 = vmatprep.subr.bf16.mxu0 0
  %1911 = vmatpush2.bf16.msra.mxu0 %v1522
  %1912 = vmatprep.subr.bf16.mxu0 0
  %1913 = vmatpush2.bf16.msra.mxu0 %v1521
  %1914 = vmatprep.subr.bf16.mxu0 0
  %1915 = vmatpush2.bf16.msra.mxu0 %v1520
  %1916 = vmatprep.subr.bf16.mxu0 0
  %1917 = vmatpush2.bf16.msra.mxu0 %v1519
  %1918 = vmatprep.subr.bf16.mxu0 0
  %1919 = vmatpush2.bf16.msra.mxu0 %v1518
  %1920 = vmatprep.subr.bf16.mxu0 0
  %1921 = vmatpush2.bf16.msra.mxu0 %v1517
  %1922 = vmatprep.subr.bf16.mxu0 0
  %1923 = vmatpush2.bf16.msra.mxu0 %v1516
  %1924 = vmatprep.mubr.bf16.mxu0 %v645
  %1925 = vmatmul.mubr.bf16.gmra.mxu0 %v644
  %v1926 = vpop.f32.mrf.mxu0
  %v1927 = vadd.f32 %v496, %v1926
  %v1928 = vpop.f32.mrf.mxu0
  %v1929 = vpop.f32.mrf.mxu0
  %v1930 = vadd.f32 %v497, %v1929
  %v1931 = vpop.f32.mrf.mxu0
  %1932 = vmatprep.mubr.bf16.mxu0 %v669
  %1933 = vmatmul.mubr.bf16.gmra.mxu0 %v668
  %v1934 = vpop.f32.mrf.mxu0
  %v1935 = vadd.f32 %v498, %v1934
  %v1936 = vpop.f32.mrf.mxu0
  %v1937 = vpop.f32.mrf.mxu0
  %v1938 = vadd.f32 %v499, %v1937
  %v1939 = vpop.f32.mrf.mxu0
  %1940 = vdwg.mxu0
  %1941 = vmatprep.subr.bf16.mxu0 0
  %1942 = vmatpush1.bf16.msra.mxu0 %v1531
  %1943 = vmatprep.subr.bf16.mxu0 0
  %1944 = vmatpush1.bf16.msra.mxu0 %v1530
  %1945 = vmatprep.subr.bf16.mxu0 0
  %1946 = vmatpush1.bf16.msra.mxu0 %v1529
  %1947 = vmatprep.subr.bf16.mxu0 0
  %1948 = vmatpush1.bf16.msra.mxu0 %v1528
  %1949 = vmatprep.subr.bf16.mxu0 0
  %1950 = vmatpush1.bf16.msra.mxu0 %v1527
  %1951 = vmatprep.subr.bf16.mxu0 0
  %1952 = vmatpush1.bf16.msra.mxu0 %v1526
  %1953 = vmatprep.subr.bf16.mxu0 0
  %1954 = vmatpush1.bf16.msra.mxu0 %v1525
  %1955 = vmatprep.subr.bf16.mxu0 0
  %1956 = vmatpush1.bf16.msra.mxu0 %v1524
  %1957 = vmatprep.subr.bf16.mxu0 0
  %1958 = vmatpush2.bf16.msra.mxu0 %v1539
  %1959 = vmatprep.subr.bf16.mxu0 0
  %1960 = vmatpush2.bf16.msra.mxu0 %v1538
  %1961 = vmatprep.subr.bf16.mxu0 0
  %1962 = vmatpush2.bf16.msra.mxu0 %v1537
  %1963 = vmatprep.subr.bf16.mxu0 0
  %1964 = vmatpush2.bf16.msra.mxu0 %v1536
  %1965 = vmatprep.subr.bf16.mxu0 0
  %1966 = vmatpush2.bf16.msra.mxu0 %v1535
  %1967 = vmatprep.subr.bf16.mxu0 0
  %1968 = vmatpush2.bf16.msra.mxu0 %v1534
  %1969 = vmatprep.subr.bf16.mxu0 0
  %1970 = vmatpush2.bf16.msra.mxu0 %v1533
  %1971 = vmatprep.subr.bf16.mxu0 0
  %1972 = vmatpush2.bf16.msra.mxu0 %v1532
  %1973 = vmatprep.mubr.bf16.mxu0 %v647
  %1974 = vmatmul.mubr.bf16.gmra.mxu0 %v646
  %v1975 = vpop.f32.mrf.mxu0
  %v1976 = vadd.f32 %v1927, %v1975
  %v1977 = vpop.f32.mrf.mxu0
  %v1978 = vpop.f32.mrf.mxu0
  %v1979 = vadd.f32 %v1930, %v1978
  %v1980 = vpop.f32.mrf.mxu0
  %1981 = vmatprep.mubr.bf16.mxu0 %v671
  %1982 = vmatmul.mubr.bf16.gmra.mxu0 %v670
  %v1983 = vpop.f32.mrf.mxu0
  %v1984 = vadd.f32 %v1935, %v1983
  %v1985 = vpop.f32.mrf.mxu0
  %v1986 = vpop.f32.mrf.mxu0
  %v1987 = vadd.f32 %v1938, %v1986
  %v1988 = vpop.f32.mrf.mxu0
  %1989 = vdwg.mxu0
  %1990 = vmatprep.subr.bf16.mxu0 0
  %1991 = vmatpush1.bf16.msra.mxu0 %v1547
  %1992 = vmatprep.subr.bf16.mxu0 0
  %1993 = vmatpush1.bf16.msra.mxu0 %v1546
  %1994 = vmatprep.subr.bf16.mxu0 0
  %1995 = vmatpush1.bf16.msra.mxu0 %v1545
  %1996 = vmatprep.subr.bf16.mxu0 0
  %1997 = vmatpush1.bf16.msra.mxu0 %v1544
  %1998 = vmatprep.subr.bf16.mxu0 0
  %1999 = vmatpush1.bf16.msra.mxu0 %v1543
  %2000 = vmatprep.subr.bf16.mxu0 0
  %2001 = vmatpush1.bf16.msra.mxu0 %v1542
  %2002 = vmatprep.subr.bf16.mxu0 0
  %2003 = vmatpush1.bf16.msra.mxu0 %v1541
  %2004 = vmatprep.subr.bf16.mxu0 0
  %2005 = vmatpush1.bf16.msra.mxu0 %v1540
  %2006 = vmatprep.subr.bf16.mxu0 0
  %2007 = vmatpush2.bf16.msra.mxu0 %v1555
  %2008 = vmatprep.subr.bf16.mxu0 0
  %2009 = vmatpush2.bf16.msra.mxu0 %v1554
  %2010 = vmatprep.subr.bf16.mxu0 0
  %2011 = vmatpush2.bf16.msra.mxu0 %v1553
  %2012 = vmatprep.subr.bf16.mxu0 0
  %2013 = vmatpush2.bf16.msra.mxu0 %v1552
  %2014 = vmatprep.subr.bf16.mxu0 0
  %2015 = vmatpush2.bf16.msra.mxu0 %v1551
  %2016 = vmatprep.subr.bf16.mxu0 0
  %2017 = vmatpush2.bf16.msra.mxu0 %v1550
  %2018 = vmatprep.subr.bf16.mxu0 0
  %2019 = vmatpush2.bf16.msra.mxu0 %v1549
  %2020 = vmatprep.subr.bf16.mxu0 0
  %2021 = vmatpush2.bf16.msra.mxu0 %v1548
  %2022 = vmatprep.mubr.bf16.mxu0 %v649
  %2023 = vmatmul.mubr.bf16.gmra.mxu0 %v648
  %v2024 = vpop.f32.mrf.mxu0
  %v2025 = vadd.f32 %v1976, %v2024
  %v2026 = vpop.f32.mrf.mxu0
  %v2027 = vpop.f32.mrf.mxu0
  %v2028 = vadd.f32 %v1979, %v2027
  %v2029 = vpop.f32.mrf.mxu0
  %2030 = vmatprep.mubr.bf16.mxu0 %v673
  %2031 = vmatmul.mubr.bf16.gmra.mxu0 %v672
  %v2032 = vpop.f32.mrf.mxu0
  %v2033 = vadd.f32 %v1984, %v2032
  %v2034 = vpop.f32.mrf.mxu0
  %v2035 = vpop.f32.mrf.mxu0
  %v2036 = vadd.f32 %v1987, %v2035
  %v2037 = vpop.f32.mrf.mxu0
  %2038 = vdwg.mxu0
  %2039 = vmatprep.subr.bf16.mxu0 0
  %2040 = vmatpush1.bf16.msra.mxu0 %v1563
  %2041 = vmatprep.subr.bf16.mxu0 0
  %2042 = vmatpush1.bf16.msra.mxu0 %v1562
  %2043 = vmatprep.subr.bf16.mxu0 0
  %2044 = vmatpush1.bf16.msra.mxu0 %v1561
  %2045 = vmatprep.subr.bf16.mxu0 0
  %2046 = vmatpush1.bf16.msra.mxu0 %v1560
  %2047 = vmatprep.subr.bf16.mxu0 0
  %2048 = vmatpush1.bf16.msra.mxu0 %v1559
  %2049 = vmatprep.subr.bf16.mxu0 0
  %2050 = vmatpush1.bf16.msra.mxu0 %v1558
  %2051 = vmatprep.subr.bf16.mxu0 0
  %2052 = vmatpush1.bf16.msra.mxu0 %v1557
  %2053 = vmatprep.subr.bf16.mxu0 0
  %2054 = vmatpush1.bf16.msra.mxu0 %v1556
  %2055 = vmatprep.subr.bf16.mxu0 0
  %2056 = vmatpush2.bf16.msra.mxu0 %v1571
  %2057 = vmatprep.subr.bf16.mxu0 0
  %2058 = vmatpush2.bf16.msra.mxu0 %v1570
  %2059 = vmatprep.subr.bf16.mxu0 0
  %2060 = vmatpush2.bf16.msra.mxu0 %v1569
  %2061 = vmatprep.subr.bf16.mxu0 0
  %2062 = vmatpush2.bf16.msra.mxu0 %v1568
  %2063 = vmatprep.subr.bf16.mxu0 0
  %2064 = vmatpush2.bf16.msra.mxu0 %v1567
  %2065 = vmatprep.subr.bf16.mxu0 0
  %2066 = vmatpush2.bf16.msra.mxu0 %v1566
  %2067 = vmatprep.subr.bf16.mxu0 0
  %2068 = vmatpush2.bf16.msra.mxu0 %v1565
  %2069 = vmatprep.subr.bf16.mxu0 0
  %2070 = vmatpush2.bf16.msra.mxu0 %v1564
  %2071 = vmatprep.mubr.bf16.mxu0 %v651
  %2072 = vmatmul.mubr.bf16.gmra.mxu0 %v650
  %v2073 = vpop.f32.mrf.mxu0
  %v2074 = vadd.f32 %v2025, %v2073
  %v2075 = vpop.f32.mrf.mxu0
  %v2076 = vpop.f32.mrf.mxu0
  %v2077 = vadd.f32 %v2028, %v2076
  %v2078 = vpop.f32.mrf.mxu0
  %2079 = vmatprep.mubr.bf16.mxu0 %v675
  %2080 = vmatmul.mubr.bf16.gmra.mxu0 %v674
  %v2081 = vpop.f32.mrf.mxu0
  %v2082 = vadd.f32 %v2033, %v2081
  %v2083 = vpop.f32.mrf.mxu0
  %v2084 = vpop.f32.mrf.mxu0
  %v2085 = vadd.f32 %v2036, %v2084
  %v2086 = vpop.f32.mrf.mxu0
  %2087 = vdwg.mxu0
  %2088 = vmatprep.subr.bf16.mxu0 0
  %2089 = vmatpush1.bf16.msra.mxu0 %v1579
  %2090 = vmatprep.subr.bf16.mxu0 0
  %2091 = vmatpush1.bf16.msra.mxu0 %v1578
  %2092 = vmatprep.subr.bf16.mxu0 0
  %2093 = vmatpush1.bf16.msra.mxu0 %v1577
  %2094 = vmatprep.subr.bf16.mxu0 0
  %2095 = vmatpush1.bf16.msra.mxu0 %v1576
  %2096 = vmatprep.subr.bf16.mxu0 0
  %2097 = vmatpush1.bf16.msra.mxu0 %v1575
  %2098 = vmatprep.subr.bf16.mxu0 0
  %2099 = vmatpush1.bf16.msra.mxu0 %v1574
  %2100 = vmatprep.subr.bf16.mxu0 0
  %2101 = vmatpush1.bf16.msra.mxu0 %v1573
  %2102 = vmatprep.subr.bf16.mxu0 0
  %2103 = vmatpush1.bf16.msra.mxu0 %v1572
  %2104 = vmatprep.subr.bf16.mxu0 0
  %2105 = vmatpush2.bf16.msra.mxu0 %v1587
  %2106 = vmatprep.subr.bf16.mxu0 0
  %2107 = vmatpush2.bf16.msra.mxu0 %v1586
  %2108 = vmatprep.subr.bf16.mxu0 0
  %2109 = vmatpush2.bf16.msra.mxu0 %v1585
  %2110 = vmatprep.subr.bf16.mxu0 0
  %2111 = vmatpush2.bf16.msra.mxu0 %v1584
  %2112 = vmatprep.subr.bf16.mxu0 0
  %2113 = vmatpush2.bf16.msra.mxu0 %v1583
  %2114 = vmatprep.subr.bf16.mxu0 0
  %2115 = vmatpush2.bf16.msra.mxu0 %v1582
  %2116 = vmatprep.subr.bf16.mxu0 0
  %2117 = vmatpush2.bf16.msra.mxu0 %v1581
  %2118 = vmatprep.subr.bf16.mxu0 0
  %2119 = vmatpush2.bf16.msra.mxu0 %v1580
  %2120 = vmatprep.mubr.bf16.mxu0 %v653
  %2121 = vmatmul.mubr.bf16.gmra.mxu0 %v652
  %v2122 = vpop.f32.mrf.mxu0
  %v2123 = vadd.f32 %v2074, %v2122
  %v2124 = vpop.f32.mrf.mxu0
  %v2125 = vpop.f32.mrf.mxu0
  %v2126 = vadd.f32 %v2077, %v2125
  %v2127 = vpop.f32.mrf.mxu0
  %2128 = vmatprep.mubr.bf16.mxu0 %v677
  %2129 = vmatmul.mubr.bf16.gmra.mxu0 %v676
  %v2130 = vpop.f32.mrf.mxu0
  %v2131 = vadd.f32 %v2082, %v2130
  %v2132 = vpop.f32.mrf.mxu0
  %v2133 = vpop.f32.mrf.mxu0
  %v2134 = vadd.f32 %v2085, %v2133
  %v2135 = vpop.f32.mrf.mxu0
  %2136 = vdwg.mxu0
  %2137 = vmatprep.subr.bf16.mxu0 0
  %2138 = vmatpush1.bf16.msra.mxu0 %v1595
  %2139 = vmatprep.subr.bf16.mxu0 0
  %2140 = vmatpush1.bf16.msra.mxu0 %v1594
  %2141 = vmatprep.subr.bf16.mxu0 0
  %2142 = vmatpush1.bf16.msra.mxu0 %v1593
  %2143 = vmatprep.subr.bf16.mxu0 0
  %2144 = vmatpush1.bf16.msra.mxu0 %v1592
  %2145 = vmatprep.subr.bf16.mxu0 0
  %2146 = vmatpush1.bf16.msra.mxu0 %v1591
  %2147 = vmatprep.subr.bf16.mxu0 0
  %2148 = vmatpush1.bf16.msra.mxu0 %v1590
  %2149 = vmatprep.subr.bf16.mxu0 0
  %2150 = vmatpush1.bf16.msra.mxu0 %v1589
  %2151 = vmatprep.subr.bf16.mxu0 0
  %2152 = vmatpush1.bf16.msra.mxu0 %v1588
  %2153 = vmatprep.subr.bf16.mxu0 0
  %2154 = vmatpush2.bf16.msra.mxu0 %v1603
  %2155 = vmatprep.subr.bf16.mxu0 0
  %2156 = vmatpush2.bf16.msra.mxu0 %v1602
  %2157 = vmatprep.subr.bf16.mxu0 0
  %2158 = vmatpush2.bf16.msra.mxu0 %v1601
  %2159 = vmatprep.subr.bf16.mxu0 0
  %2160 = vmatpush2.bf16.msra.mxu0 %v1600
  %2161 = vmatprep.subr.bf16.mxu0 0
  %2162 = vmatpush2.bf16.msra.mxu0 %v1599
  %2163 = vmatprep.subr.bf16.mxu0 0
  %2164 = vmatpush2.bf16.msra.mxu0 %v1598
  %2165 = vmatprep.subr.bf16.mxu0 0
  %2166 = vmatpush2.bf16.msra.mxu0 %v1597
  %2167 = vmatprep.subr.bf16.mxu0 0
  %2168 = vmatpush2.bf16.msra.mxu0 %v1596
  %2169 = vmatprep.mubr.bf16.mxu0 %v655
  %2170 = vmatmul.mubr.bf16.gmra.mxu0 %v654
  %v2171 = vpop.f32.mrf.mxu0
  %v2172 = vadd.f32 %v2123, %v2171
  %v2173 = vpop.f32.mrf.mxu0
  %v2174 = vpop.f32.mrf.mxu0
  %v2175 = vadd.f32 %v2126, %v2174
  %v2176 = vpop.f32.mrf.mxu0
  %2177 = vmatprep.mubr.bf16.mxu0 %v679
  %2178 = vmatmul.mubr.bf16.gmra.mxu0 %v678
  %v2179 = vpop.f32.mrf.mxu0
  %v2180 = vadd.f32 %v2131, %v2179
  %v2181 = vpop.f32.mrf.mxu0
  %v2182 = vpop.f32.mrf.mxu0
  %v2183 = vadd.f32 %v2134, %v2182
  %v2184 = vpop.f32.mrf.mxu0
  %2185 = vdwg.mxu0
  %2186 = vmatprep.subr.bf16.mxu0 0
  %2187 = vmatpush1.bf16.msra.mxu0 %v1611
  %2188 = vmatprep.subr.bf16.mxu0 0
  %2189 = vmatpush1.bf16.msra.mxu0 %v1610
  %2190 = vmatprep.subr.bf16.mxu0 0
  %2191 = vmatpush1.bf16.msra.mxu0 %v1609
  %2192 = vmatprep.subr.bf16.mxu0 0
  %2193 = vmatpush1.bf16.msra.mxu0 %v1608
  %2194 = vmatprep.subr.bf16.mxu0 0
  %2195 = vmatpush1.bf16.msra.mxu0 %v1607
  %2196 = vmatprep.subr.bf16.mxu0 0
  %2197 = vmatpush1.bf16.msra.mxu0 %v1606
  %2198 = vmatprep.subr.bf16.mxu0 0
  %2199 = vmatpush1.bf16.msra.mxu0 %v1605
  %2200 = vmatprep.subr.bf16.mxu0 0
  %2201 = vmatpush1.bf16.msra.mxu0 %v1604
  %2202 = vmatprep.subr.bf16.mxu0 0
  %2203 = vmatpush2.bf16.msra.mxu0 %v1619
  %2204 = vmatprep.subr.bf16.mxu0 0
  %2205 = vmatpush2.bf16.msra.mxu0 %v1618
  %2206 = vmatprep.subr.bf16.mxu0 0
  %2207 = vmatpush2.bf16.msra.mxu0 %v1617
  %2208 = vmatprep.subr.bf16.mxu0 0
  %2209 = vmatpush2.bf16.msra.mxu0 %v1616
  %2210 = vmatprep.subr.bf16.mxu0 0
  %2211 = vmatpush2.bf16.msra.mxu0 %v1615
  %2212 = vmatprep.subr.bf16.mxu0 0
  %2213 = vmatpush2.bf16.msra.mxu0 %v1614
  %2214 = vmatprep.subr.bf16.mxu0 0
  %2215 = vmatpush2.bf16.msra.mxu0 %v1613
  %2216 = vmatprep.subr.bf16.mxu0 0
  %2217 = vmatpush2.bf16.msra.mxu0 %v1612
  %2218 = vmatprep.mubr.bf16.mxu0 %v657
  %2219 = vmatmul.mubr.bf16.gmra.mxu0 %v656
  %v2220 = vpop.f32.mrf.mxu0
  %v2221 = vadd.f32 %v2172, %v2220
  %v2222 = vpop.f32.mrf.mxu0
  %v2223 = vpop.f32.mrf.mxu0
  %v2224 = vadd.f32 %v2175, %v2223
  %v2225 = vpop.f32.mrf.mxu0
  %2226 = vmatprep.mubr.bf16.mxu0 %v681
  %2227 = vmatmul.mubr.bf16.gmra.mxu0 %v680
  %v2228 = vpop.f32.mrf.mxu0
  %v2229 = vadd.f32 %v2180, %v2228
  %v2230 = vpop.f32.mrf.mxu0
  %v2231 = vpop.f32.mrf.mxu0
  %v2232 = vadd.f32 %v2183, %v2231
  %v2233 = vpop.f32.mrf.mxu0
  %2234 = vdwg.mxu0
  %2235 = vmatprep.subr.bf16.mxu0 0
  %2236 = vmatpush1.bf16.msra.mxu0 %v1627
  %2237 = vmatprep.subr.bf16.mxu0 0
  %2238 = vmatpush1.bf16.msra.mxu0 %v1626
  %2239 = vmatprep.subr.bf16.mxu0 0
  %2240 = vmatpush1.bf16.msra.mxu0 %v1625
  %2241 = vmatprep.subr.bf16.mxu0 0
  %2242 = vmatpush1.bf16.msra.mxu0 %v1624
  %2243 = vmatprep.subr.bf16.mxu0 0
  %2244 = vmatpush1.bf16.msra.mxu0 %v1623
  %2245 = vmatprep.subr.bf16.mxu0 0
  %2246 = vmatpush1.bf16.msra.mxu0 %v1622
  %2247 = vmatprep.subr.bf16.mxu0 0
  %2248 = vmatpush1.bf16.msra.mxu0 %v1621
  %2249 = vmatprep.subr.bf16.mxu0 0
  %2250 = vmatpush1.bf16.msra.mxu0 %v1620
  %2251 = vmatprep.subr.bf16.mxu0 0
  %2252 = vmatpush2.bf16.msra.mxu0 %v1635
  %2253 = vmatprep.subr.bf16.mxu0 0
  %2254 = vmatpush2.bf16.msra.mxu0 %v1634
  %2255 = vmatprep.subr.bf16.mxu0 0
  %2256 = vmatpush2.bf16.msra.mxu0 %v1633
  %2257 = vmatprep.subr.bf16.mxu0 0
  %2258 = vmatpush2.bf16.msra.mxu0 %v1632
  %2259 = vmatprep.subr.bf16.mxu0 0
  %2260 = vmatpush2.bf16.msra.mxu0 %v1631
  %2261 = vmatprep.subr.bf16.mxu0 0
  %2262 = vmatpush2.bf16.msra.mxu0 %v1630
  %2263 = vmatprep.subr.bf16.mxu0 0
  %2264 = vmatpush2.bf16.msra.mxu0 %v1629
  %2265 = vmatprep.subr.bf16.mxu0 0
  %2266 = vmatpush2.bf16.msra.mxu0 %v1628
  %2267 = vmatprep.mubr.bf16.mxu0 %v659
  %2268 = vmatmul.mubr.bf16.gmra.mxu0 %v658
  %v2269 = vpop.f32.mrf.mxu0
  %v2270 = vadd.f32 %v2221, %v2269
  %v2271 = vpop.f32.mrf.mxu0
  %v2272 = vpop.f32.mrf.mxu0
  %v2273 = vadd.f32 %v2224, %v2272
  %v2274 = vpop.f32.mrf.mxu0
  %2275 = vmatprep.mubr.bf16.mxu0 %v683
  %2276 = vmatmul.mubr.bf16.gmra.mxu0 %v682
  %v2277 = vpop.f32.mrf.mxu0
  %v2278 = vadd.f32 %v2229, %v2277
  %v2279 = vpop.f32.mrf.mxu0
  %v2280 = vpop.f32.mrf.mxu0
  %v2281 = vadd.f32 %v2232, %v2280
  %v2282 = vpop.f32.mrf.mxu0
  %2283 = vdwg.mxu0
  %2284 = vmatprep.subr.bf16.mxu0 0
  %2285 = vmatpush1.bf16.msra.mxu0 %v1643
  %2286 = vmatprep.subr.bf16.mxu0 0
  %2287 = vmatpush1.bf16.msra.mxu0 %v1642
  %2288 = vmatprep.subr.bf16.mxu0 0
  %2289 = vmatpush1.bf16.msra.mxu0 %v1641
  %2290 = vmatprep.subr.bf16.mxu0 0
  %2291 = vmatpush1.bf16.msra.mxu0 %v1640
  %2292 = vmatprep.subr.bf16.mxu0 0
  %2293 = vmatpush1.bf16.msra.mxu0 %v1639
  %2294 = vmatprep.subr.bf16.mxu0 0
  %2295 = vmatpush1.bf16.msra.mxu0 %v1638
  %2296 = vmatprep.subr.bf16.mxu0 0
  %2297 = vmatpush1.bf16.msra.mxu0 %v1637
  %2298 = vmatprep.subr.bf16.mxu0 0
  %2299 = vmatpush1.bf16.msra.mxu0 %v1636
  %2300 = vmatprep.subr.bf16.mxu0 0
  %2301 = vmatpush2.bf16.msra.mxu0 %v1651
  %2302 = vmatprep.subr.bf16.mxu0 0
  %2303 = vmatpush2.bf16.msra.mxu0 %v1650
  %2304 = vmatprep.subr.bf16.mxu0 0
  %2305 = vmatpush2.bf16.msra.mxu0 %v1649
  %2306 = vmatprep.subr.bf16.mxu0 0
  %2307 = vmatpush2.bf16.msra.mxu0 %v1648
  %2308 = vmatprep.subr.bf16.mxu0 0
  %2309 = vmatpush2.bf16.msra.mxu0 %v1647
  %2310 = vmatprep.subr.bf16.mxu0 0
  %2311 = vmatpush2.bf16.msra.mxu0 %v1646
  %2312 = vmatprep.subr.bf16.mxu0 0
  %2313 = vmatpush2.bf16.msra.mxu0 %v1645
  %2314 = vmatprep.subr.bf16.mxu0 0
  %2315 = vmatpush2.bf16.msra.mxu0 %v1644
  %2316 = vmatprep.mubr.bf16.mxu0 %v661
  %2317 = vmatmul.mubr.bf16.gmra.mxu0 %v660
  %v2318 = vpop.f32.mrf.mxu0
  %v2319 = vadd.f32 %v2270, %v2318
  %v2320 = vpop.f32.mrf.mxu0
  %v2321 = vpop.f32.mrf.mxu0
  %v2322 = vadd.f32 %v2273, %v2321
  %v2323 = vpop.f32.mrf.mxu0
  %2324 = vmatprep.mubr.bf16.mxu0 %v685
  %2325 = vmatmul.mubr.bf16.gmra.mxu0 %v684
  %v2326 = vpop.f32.mrf.mxu0
  %v2327 = vadd.f32 %v2278, %v2326
  %v2328 = vpop.f32.mrf.mxu0
  %v2329 = vpop.f32.mrf.mxu0
  %v2330 = vadd.f32 %v2281, %v2329
  %v2331 = vpop.f32.mrf.mxu0
  %2332 = vdwg.mxu0
  %2333 = vmatprep.subr.bf16.mxu0 0
  %2334 = vmatpush1.bf16.msra.mxu0 %v1659
  %2335 = vmatprep.subr.bf16.mxu0 0
  %2336 = vmatpush1.bf16.msra.mxu0 %v1658
  %2337 = vmatprep.subr.bf16.mxu0 0
  %2338 = vmatpush1.bf16.msra.mxu0 %v1657
  %2339 = vmatprep.subr.bf16.mxu0 0
  %2340 = vmatpush1.bf16.msra.mxu0 %v1656
  %2341 = vmatprep.subr.bf16.mxu0 0
  %2342 = vmatpush1.bf16.msra.mxu0 %v1655
  %2343 = vmatprep.subr.bf16.mxu0 0
  %2344 = vmatpush1.bf16.msra.mxu0 %v1654
  %2345 = vmatprep.subr.bf16.mxu0 0
  %2346 = vmatpush1.bf16.msra.mxu0 %v1653
  %2347 = vmatprep.subr.bf16.mxu0 0
  %2348 = vmatpush1.bf16.msra.mxu0 %v1652
  %2349 = vmatprep.subr.bf16.mxu0 0
  %2350 = vmatpush2.bf16.msra.mxu0 %v1667
  %2351 = vmatprep.subr.bf16.mxu0 0
  %2352 = vmatpush2.bf16.msra.mxu0 %v1666
  %2353 = vmatprep.subr.bf16.mxu0 0
  %2354 = vmatpush2.bf16.msra.mxu0 %v1665
  %2355 = vmatprep.subr.bf16.mxu0 0
  %2356 = vmatpush2.bf16.msra.mxu0 %v1664
  %2357 = vmatprep.subr.bf16.mxu0 0
  %2358 = vmatpush2.bf16.msra.mxu0 %v1663
  %2359 = vmatprep.subr.bf16.mxu0 0
  %2360 = vmatpush2.bf16.msra.mxu0 %v1662
  %2361 = vmatprep.subr.bf16.mxu0 0
  %2362 = vmatpush2.bf16.msra.mxu0 %v1661
  %2363 = vmatprep.subr.bf16.mxu0 0
  %2364 = vmatpush2.bf16.msra.mxu0 %v1660
  %2365 = vmatprep.mubr.bf16.mxu0 %v663
  %2366 = vmatmul.mubr.bf16.gmra.mxu0 %v662
  %v2367 = vpop.f32.mrf.mxu0
  %v2368 = vadd.f32 %v2319, %v2367
  %v2369 = vpop.f32.mrf.mxu0
  %v2370 = vpop.f32.mrf.mxu0
  %v2371 = vadd.f32 %v2322, %v2370
  %v2372 = vpop.f32.mrf.mxu0
  %2373 = vmatprep.mubr.bf16.mxu0 %v687
  %2374 = vmatmul.mubr.bf16.gmra.mxu0 %v686
  %v2375 = vpop.f32.mrf.mxu0
  %v2376 = vadd.f32 %v2327, %v2375
  %v2377 = vpop.f32.mrf.mxu0
  %v2378 = vpop.f32.mrf.mxu0
  %v2379 = vadd.f32 %v2330, %v2378
  %v2380 = vpop.f32.mrf.mxu0
  %2381 = vdwg.mxu0
  %2382 = vmatprep.subr.bf16.mxu0 0
  %2383 = vmatpush1.bf16.msra.mxu0 %v1675
  %2384 = vmatprep.subr.bf16.mxu0 0
  %2385 = vmatpush1.bf16.msra.mxu0 %v1674
  %2386 = vmatprep.subr.bf16.mxu0 0
  %2387 = vmatpush1.bf16.msra.mxu0 %v1673
  %2388 = vmatprep.subr.bf16.mxu0 0
  %2389 = vmatpush1.bf16.msra.mxu0 %v1672
  %2390 = vmatprep.subr.bf16.mxu0 0
  %2391 = vmatpush1.bf16.msra.mxu0 %v1671
  %2392 = vmatprep.subr.bf16.mxu0 0
  %2393 = vmatpush1.bf16.msra.mxu0 %v1670
  %2394 = vmatprep.subr.bf16.mxu0 0
  %2395 = vmatpush1.bf16.msra.mxu0 %v1669
  %2396 = vmatprep.subr.bf16.mxu0 0
  %2397 = vmatpush1.bf16.msra.mxu0 %v1668
  %2398 = vmatprep.subr.bf16.mxu0 0
  %2399 = vmatpush2.bf16.msra.mxu0 %v1683
  %2400 = vmatprep.subr.bf16.mxu0 0
  %2401 = vmatpush2.bf16.msra.mxu0 %v1682
  %2402 = vmatprep.subr.bf16.mxu0 0
  %2403 = vmatpush2.bf16.msra.mxu0 %v1681
  %2404 = vmatprep.subr.bf16.mxu0 0
  %2405 = vmatpush2.bf16.msra.mxu0 %v1680
  %2406 = vmatprep.subr.bf16.mxu0 0
  %2407 = vmatpush2.bf16.msra.mxu0 %v1679
  %2408 = vmatprep.subr.bf16.mxu0 0
  %2409 = vmatpush2.bf16.msra.mxu0 %v1678
  %2410 = vmatprep.subr.bf16.mxu0 0
  %2411 = vmatpush2.bf16.msra.mxu0 %v1677
  %2412 = vmatprep.subr.bf16.mxu0 0
  %2413 = vmatpush2.bf16.msra.mxu0 %v1676
  %2414 = vmatprep.mubr.bf16.mxu0 %v665
  %2415 = vmatmul.mubr.bf16.gmra.mxu0 %v664
  %v2416 = vpop.f32.mrf.mxu0
  %v2417 = vadd.f32 %v2368, %v2416
  %v2418 = vpop.f32.mrf.mxu0
  %v2419 = vpop.f32.mrf.mxu0
  %v2420 = vadd.f32 %v2371, %v2419
  %v2421 = vpop.f32.mrf.mxu0
  %2422 = vmatprep.mubr.bf16.mxu0 %v689
  %2423 = vmatmul.mubr.bf16.gmra.mxu0 %v688
  %v2424 = vpop.f32.mrf.mxu0
  %v2425 = vadd.f32 %v2376, %v2424
  %v2426 = vpop.f32.mrf.mxu0
  %v2427 = vpop.f32.mrf.mxu0
  %v2428 = vadd.f32 %v2379, %v2427
  %v2429 = vpop.f32.mrf.mxu0
  %2430 = vdwg.mxu0
  %2431 = vmatprep.subr.bf16.mxu0 0
  %2432 = vmatpush1.bf16.msra.mxu0 %v1691
  %2433 = vmatprep.subr.bf16.mxu0 0
  %2434 = vmatpush1.bf16.msra.mxu0 %v1690
  %2435 = vmatprep.subr.bf16.mxu0 0
  %2436 = vmatpush1.bf16.msra.mxu0 %v1689
  %2437 = vmatprep.subr.bf16.mxu0 0
  %2438 = vmatpush1.bf16.msra.mxu0 %v1688
  %2439 = vmatprep.subr.bf16.mxu0 0
  %2440 = vmatpush1.bf16.msra.mxu0 %v1687
  %2441 = vmatprep.subr.bf16.mxu0 0
  %2442 = vmatpush1.bf16.msra.mxu0 %v1686
  %2443 = vmatprep.subr.bf16.mxu0 0
  %2444 = vmatpush1.bf16.msra.mxu0 %v1685
  %2445 = vmatprep.subr.bf16.mxu0 0
  %2446 = vmatpush1.bf16.msra.mxu0 %v1684
  %2447 = vmatprep.subr.bf16.mxu0 0
  %2448 = vmatpush2.bf16.msra.mxu0 %v1699
  %2449 = vmatprep.subr.bf16.mxu0 0
  %2450 = vmatpush2.bf16.msra.mxu0 %v1698
  %2451 = vmatprep.subr.bf16.mxu0 0
  %2452 = vmatpush2.bf16.msra.mxu0 %v1697
  %2453 = vmatprep.subr.bf16.mxu0 0
  %2454 = vmatpush2.bf16.msra.mxu0 %v1696
  %2455 = vmatprep.subr.bf16.mxu0 0
  %2456 = vmatpush2.bf16.msra.mxu0 %v1695
  %2457 = vmatprep.subr.bf16.mxu0 0
  %2458 = vmatpush2.bf16.msra.mxu0 %v1694
  %2459 = vmatprep.subr.bf16.mxu0 0
  %2460 = vmatpush2.bf16.msra.mxu0 %v1693
  %2461 = vmatprep.subr.bf16.mxu0 0
  %2462 = vmatpush2.bf16.msra.mxu0 %v1692
  %2463 = vmatprep.mubr.bf16.mxu0 %v667
  %2464 = vmatmul.mubr.bf16.gmra.mxu0 %v666
  %v2465 = vpop.f32.mrf.mxu0
  %v2466 = vadd.f32 %v2417, %v2465
  %v2467 = vpop.f32.mrf.mxu0
  %v2468 = vpop.f32.mrf.mxu0
  %v2469 = vadd.f32 %v2420, %v2468
  %v2470 = vpop.f32.mrf.mxu0
  %2471 = vmatprep.mubr.bf16.mxu0 %v691
  %2472 = vmatmul.mubr.bf16.gmra.mxu0 %v690
  %v2473 = vpop.f32.mrf.mxu0
  %v2474 = vadd.f32 %v2425, %v2473
  %v2475 = vpop.f32.mrf.mxu0
  %v2476 = vpop.f32.mrf.mxu0
  %v2477 = vadd.f32 %v2428, %v2476
  %v2478 = vpop.f32.mrf.mxu0
  %2479 = vdwg.mxu0
  %v2480 = vld [vmem:[%s3] sm:$0xff]
  %v2481 = vld [vmem:[%s3 + $0x8] sm:$0xff]
  %v2482 = vld [vmem:[%s3 + $0x10] sm:$0xff]
  %v2483 = vld [vmem:[%s3 + $0x18] sm:$0xff]
  %v2484 = vld [vmem:[%s5] sm:$0x1]
  %v2485 = vld [vmem:[%s6] sm:$0x1]
  %vm2486 = vcmask 261120
  %v2487 = vsel %vm2486, %v2466, 0.0
  %2488 = vadd.xlane.f32.xlu0 %v2487
  %v2489 = vpop.xlane.xlu0 %2488
  %v2490 = vsel %vm2486, %v2469, 0.0
  %2491 = vadd.xlane.f32.xlu0 %v2490
  %v2492 = vpop.xlane.xlu0 %2491
  %v2493 = vsel %vm2486, %v2474, 0.0
  %2494 = vadd.xlane.f32.xlu0 %v2493
  %v2495 = vpop.xlane.xlu0 %2494
  %v2496 = vsel %vm2486, %v2477, 0.0
  %2497 = vadd.xlane.f32.xlu0 %v2496
  %v2498 = vpop.xlane.xlu0 %2497
  %v2499 = vrcp.pop 32.0
  %v2500 = vmul.f32 %v2489, %v2499
  %v2501 = vmul.f32 %v2492, %v2499
  %v2502 = vmul.f32 %v2495, %v2499
  %v2503 = vmul.f32 %v2498, %v2499
  %v2504 = vsub.f32 %v2466, %v2500
  %v2505 = vsub.f32 %v2469, %v2501
  %v2506 = vsub.f32 %v2474, %v2502
  %v2507 = vsub.f32 %v2477, %v2503
  %v2508 = vmul.f32 %v2504, %v2504
  %v2509 = vmul.f32 %v2505, %v2505
  %v2510 = vmul.f32 %v2506, %v2506
  %v2511 = vmul.f32 %v2507, %v2507
  %v2512 = vsel %vm2486, %v2508, 0.0
  %2513 = vadd.xlane.f32.xlu0 %v2512
  %v2514 = vpop.xlane.xlu0 %2513
  %v2515 = vsel %vm2486, %v2509, 0.0
  %2516 = vadd.xlane.f32.xlu0 %v2515
  %v2517 = vpop.xlane.xlu0 %2516
  %v2518 = vsel %vm2486, %v2510, 0.0
  %2519 = vadd.xlane.f32.xlu0 %v2518
  %v2520 = vpop.xlane.xlu0 %2519
  %v2521 = vsel %vm2486, %v2511, 0.0
  %2522 = vadd.xlane.f32.xlu0 %v2521
  %v2523 = vpop.xlane.xlu0 %2522
  %v2524 = vmul.f32 %v2514, %v2499
  %v2525 = vmul.f32 %v2517, %v2499
  %v2526 = vmul.f32 %v2520, %v2499
  %v2527 = vmul.f32 %v2523, %v2499
  %v2528 = vadd.f32 %v2524, 1e-05
  %v2529 = vadd.f32 %v2525, 1e-05
  %v2530 = vadd.f32 %v2526, 1e-05
  %v2531 = vadd.f32 %v2527, 1e-05
  %v2532 = vrsqrt.pop %v2528
  %v2533 = vrsqrt.pop %v2529
  %v2534 = vrsqrt.pop %v2530
  %v2535 = vrsqrt.pop %v2531
  %v2536 = vmul.f32 %v2504, %v2532
  %v2537 = vmul.f32 %v2505, %v2533
  %v2538 = vmul.f32 %v2506, %v2534
  %v2539 = vmul.f32 %v2507, %v2535
  %v2541 = vlaneseq
  %v2542 = vshrl.u32 %v2541, 7
  %v2543 = vsub.s32 0, %v2542
  %v2544 = vrot.slane %v2484, %v2543
  %v2546 = vmul.f32 %v2536, %v2544
  %v2547 = vmul.f32 %v2537, %v2544
  %v2548 = vmul.f32 %v2538, %v2544
  %v2549 = vmul.f32 %v2539, %v2544
  %v2551 = vlaneseq
  %v2552 = vshrl.u32 %v2551, 7
  %v2553 = vsub.s32 0, %v2552
  %v2554 = vrot.slane %v2485, %v2553
  %v2556 = vadd.f32 %v2546, %v2554
  %v2557 = vadd.f32 %v2547, %v2554
  %v2558 = vadd.f32 %v2548, %v2554
  %v2559 = vadd.f32 %v2549, %v2554
  %v2560 = vpack.c.bf16 %v2557, %v2556
  %v2561 = vpack.c.bf16 %v2559, %v2558
  %v2562 = vld [vmem:[%s7] sm:$0xf]
  %v2563 = vld [vmem:[%s7 + $0x4] sm:$0xf]
  %v2564 = vld [vmem:[%s7 + $0x8] sm:$0xf]
  %v2565 = vld [vmem:[%s7 + $0xc] sm:$0xf]
  %v2570 = vunpack.c.l.b16 %v2562
  %v2571 = vunpack.c.l.b16 %v2563
  %v2572 = vunpack.c.l.b16 %v2564
  %v2573 = vunpack.c.l.b16 %v2565
  %v2574 = vpack.c.b16 %v2571, %v2570
  %v2575 = vpack.c.b16 %v2573, %v2572
  %v2579 = vsel %vm2486, %v2560, 0
  %v2582 = vsel %vm2486, %v2561, 0
  %2584 = vmatprep.subr.bf16.mxu0 0
  %2585 = vmatpush1.bf16.msra.mxu0 0
  %2586 = vmatprep.subr.bf16.mxu0 0
  %2587 = vmatpush1.bf16.msra.mxu0 0
  %2588 = vmatprep.subr.bf16.mxu0 0
  %2589 = vmatpush1.bf16.msra.mxu0 0
  %2590 = vmatprep.subr.bf16.mxu0 0
  %2591 = vmatpush1.bf16.msra.mxu0 0
  %2592 = vmatprep.subr.bf16.mxu0 0
  %2593 = vmatpush1.bf16.msra.mxu0 0
  %2594 = vmatprep.subr.bf16.mxu0 0
  %2595 = vmatpush1.bf16.msra.mxu0 0
  %2596 = vmatprep.subr.bf16.mxu0 0
  %2597 = vmatpush1.bf16.msra.mxu0 %v2575
  %2598 = vmatprep.subr.bf16.mxu0 0
  %2599 = vmatpush1.bf16.msra.mxu0 %v2574
  %2600 = vmatprep.subr.bf16.mxu0 0
  %2601 = vmatpush2.bf16.msra.mxu0 0
  %2602 = vmatprep.subr.bf16.mxu0 0
  %2603 = vmatpush2.bf16.msra.mxu0 0
  %2604 = vmatprep.subr.bf16.mxu0 0
  %2605 = vmatpush2.bf16.msra.mxu0 0
  %2606 = vmatprep.subr.bf16.mxu0 0
  %2607 = vmatpush2.bf16.msra.mxu0 0
  %2608 = vmatprep.subr.bf16.mxu0 0
  %2609 = vmatpush2.bf16.msra.mxu0 0
  %2610 = vmatprep.subr.bf16.mxu0 0
  %2611 = vmatpush2.bf16.msra.mxu0 0
  %2612 = vmatprep.subr.bf16.mxu0 0
  %2613 = vmatpush2.bf16.msra.mxu0 0
  %2614 = vmatprep.subr.bf16.mxu0 0
  %2615 = vmatpush2.bf16.msra.mxu0 0
  %2616 = vmatprep.mubr.bf16.mxu0 0
  %2617 = vmatmul.mubr.bf16.gmra.mxu0 %v2579
  %v2618 = vpop.f32.mrf.mxu0
  %v2619 = vadd.f32 0.0, %v2618
  %v2620 = vpop.f32.mrf.mxu0
  %v2621 = vpop.f32.mrf.mxu0
  %v2622 = vadd.f32 0.0, %v2621
  %v2623 = vpop.f32.mrf.mxu0
  %2624 = vmatprep.mubr.bf16.mxu0 0
  %2625 = vmatmul.mubr.bf16.gmra.mxu0 %v2582
  %v2626 = vpop.f32.mrf.mxu0
  %v2627 = vadd.f32 0.0, %v2626
  %v2628 = vpop.f32.mrf.mxu0
  %v2629 = vpop.f32.mrf.mxu0
  %v2630 = vadd.f32 0.0, %v2629
  %v2631 = vpop.f32.mrf.mxu0
  %2632 = vdwg.mxu0
  %v2633 = vpack.c.bf16 %v2622, %v2619
  %v2634 = vpack.c.bf16 %v2630, %v2627
  %2637 = vrot.lane.b32.xlu0 %v2633, 96
  %v2638 = vpop.permute.xlu0 %2637
  %2639 = vrot.lane.b32.xlu0 %v2634, 96
  %v2640 = vpop.permute.xlu0 %2639
  %vm2641 = vcmask 64512
  %v2643 = vsel %vm2641, %v2633, 0
  %v2646 = vsel %vm2641, %v2634, 0
  %v2649 = vsel %vm2641, %v2638, 0
  %v2652 = vsel %vm2641, %v2640, 0
  %2654 = vmatprep.subr.bf16.mxu0 0
  %2655 = vmatpush1.bf16.xpose.msra.mxu0 0
  %2656 = vmatprep.subr.bf16.mxu0 0
  %2657 = vmatpush1.bf16.xpose.msra.mxu0 0
  %2658 = vmatprep.subr.bf16.mxu0 0
  %2659 = vmatpush1.bf16.xpose.msra.mxu0 0
  %2660 = vmatprep.subr.bf16.mxu0 0
  %2661 = vmatpush1.bf16.xpose.msra.mxu0 0
  %2662 = vmatprep.subr.bf16.mxu0 0
  %2663 = vmatpush1.bf16.xpose.msra.mxu0 0
  %2664 = vmatprep.subr.bf16.mxu0 0
  %2665 = vmatpush1.bf16.xpose.msra.mxu0 0
  %2666 = vmatprep.subr.bf16.mxu0 0
  %2667 = vmatpush1.bf16.xpose.msra.mxu0 %v2652
  %2668 = vmatprep.subr.bf16.mxu0 0
  %2669 = vmatpush1.bf16.xpose.msra.mxu0 %v2649
  %2670 = vmatprep.subr.bf16.mxu0 0
  %2671 = vmatpush2.bf16.xpose.msra.mxu0 0
  %2672 = vmatprep.subr.bf16.mxu0 0
  %2673 = vmatpush2.bf16.xpose.msra.mxu0 0
  %2674 = vmatprep.subr.bf16.mxu0 0
  %2675 = vmatpush2.bf16.xpose.msra.mxu0 0
  %2676 = vmatprep.subr.bf16.mxu0 0
  %2677 = vmatpush2.bf16.xpose.msra.mxu0 0
  %2678 = vmatprep.subr.bf16.mxu0 0
  %2679 = vmatpush2.bf16.xpose.msra.mxu0 0
  %2680 = vmatprep.subr.bf16.mxu0 0
  %2681 = vmatpush2.bf16.xpose.msra.mxu0 0
  %2682 = vmatprep.subr.bf16.mxu0 0
  %2683 = vmatpush2.bf16.xpose.msra.mxu0 0
  %2684 = vmatprep.subr.bf16.mxu0 0
  %2685 = vmatpush2.bf16.xpose.msra.mxu0 0
  %2686 = vmatprep.mubr.bf16.mxu0 0
  %2687 = vmatmul.mubr.bf16.gmra.mxu0 %v2643
  %v2688 = vpop.f32.mrf.mxu0
  %v2689 = vadd.f32 0.0, %v2688
  %v2690 = vpop.f32.mrf.mxu0
  %v2691 = vpop.f32.mrf.mxu0
  %v2692 = vadd.f32 0.0, %v2691
  %v2693 = vpop.f32.mrf.mxu0
  %2694 = vmatprep.mubr.bf16.mxu0 0
  %2695 = vmatmul.mubr.bf16.gmra.mxu0 %v2646
  %v2696 = vpop.f32.mrf.mxu0
  %v2697 = vadd.f32 0.0, %v2696
  %v2698 = vpop.f32.mrf.mxu0
  %v2699 = vpop.f32.mrf.mxu0
  %v2700 = vadd.f32 0.0, %v2699
  %v2701 = vpop.f32.mrf.mxu0
  %2702 = vdwg.mxu0
  %v2703 = vmul.f32 %v2689, 0.35355338
  %v2704 = vmul.f32 %v2692, 0.35355338
  %v2705 = vmul.f32 %v2697, 0.35355338
  %v2706 = vmul.f32 %v2700, 0.35355338
  %v2707 = vadd.f32 %v2703, %v2480
  %v2708 = vadd.f32 %v2704, %v2481
  %v2709 = vadd.f32 %v2705, %v2482
  %v2710 = vadd.f32 %v2706, %v2483
  %v2711 = vsel %vm2486, %v2707, -inf
  %2712 = vmax.xlane.f32.xlu0 %v2711
  %v2713 = vpop.xlane.xlu0 %2712
  %v2714 = vsel %vm2486, %v2708, -inf
  %2715 = vmax.xlane.f32.xlu0 %v2714
  %v2716 = vpop.xlane.xlu0 %2715
  %v2717 = vsel %vm2486, %v2709, -inf
  %2718 = vmax.xlane.f32.xlu0 %v2717
  %v2719 = vpop.xlane.xlu0 %2718
  %v2720 = vsel %vm2486, %v2710, -inf
  %2721 = vmax.xlane.f32.xlu0 %v2720
  %v2722 = vpop.xlane.xlu0 %2721
  %v2723 = vsub.f32 %v2707, %v2713
  %v2724 = vsub.f32 %v2708, %v2716
  %v2725 = vsub.f32 %v2709, %v2719
  %v2726 = vsub.f32 %v2710, %v2722
  %v2727 = vmul.f32 %v2723, 1.442695
  %v2728 = vpow.pop %v2727
  %v2729 = vmul.f32 %v2724, 1.442695
  %v2730 = vpow.pop %v2729
  %v2731 = vmul.f32 %v2725, 1.442695
  %v2732 = vpow.pop %v2731
  %v2733 = vmul.f32 %v2726, 1.442695
  %v2734 = vpow.pop %v2733
  %v2735 = vsel %vm2486, %v2728, 0.0
  %2736 = vadd.xlane.f32.xlu0 %v2735
  %v2737 = vpop.xlane.xlu0 %2736
  %v2738 = vsel %vm2486, %v2730, 0.0
  %2739 = vadd.xlane.f32.xlu0 %v2738
  %v2740 = vpop.xlane.xlu0 %2739
  %v2741 = vsel %vm2486, %v2732, 0.0
  %2742 = vadd.xlane.f32.xlu0 %v2741
  %v2743 = vpop.xlane.xlu0 %2742
  %v2744 = vsel %vm2486, %v2734, 0.0
  %2745 = vadd.xlane.f32.xlu0 %v2744
  %v2746 = vpop.xlane.xlu0 %2745
  %v2747 = vrcp.pop %v2737
  %v2748 = vrcp.pop %v2740
  %v2749 = vrcp.pop %v2743
  %v2750 = vrcp.pop %v2746
  %v2751 = vmul.f32 %v2728, %v2747
  %v2752 = vmul.f32 %v2730, %v2748
  %v2753 = vmul.f32 %v2732, %v2749
  %v2754 = vmul.f32 %v2734, %v2750
  %v2755 = vpack.c.bf16 %v2752, %v2751
  %v2756 = vpack.c.bf16 %v2754, %v2753
  %2757 = vrot.lane.b32.xlu0 %v2633, 64
  %v2758 = vpop.permute.xlu0 %2757
  %2759 = vrot.lane.b32.xlu0 %v2634, 64
  %v2760 = vpop.permute.xlu0 %2759
  %v2764 = vsel %vm2486, %v2755, 0
  %v2767 = vsel %vm2486, %v2756, 0
  %2769 = vmatprep.subr.bf16.mxu0 0
  %2770 = vmatpush1.bf16.msra.mxu0 0
  %2771 = vmatprep.subr.bf16.mxu0 0
  %2772 = vmatpush1.bf16.msra.mxu0 0
  %2773 = vmatprep.subr.bf16.mxu0 0
  %2774 = vmatpush1.bf16.msra.mxu0 0
  %2775 = vmatprep.subr.bf16.mxu0 0
  %2776 = vmatpush1.bf16.msra.mxu0 0
  %2777 = vmatprep.subr.bf16.mxu0 0
  %2778 = vmatpush1.bf16.msra.mxu0 0
  %2779 = vmatprep.subr.bf16.mxu0 0
  %2780 = vmatpush1.bf16.msra.mxu0 0
  %2781 = vmatprep.subr.bf16.mxu0 0
  %2782 = vmatpush1.bf16.msra.mxu0 %v2760
  %2783 = vmatprep.subr.bf16.mxu0 0
  %2784 = vmatpush1.bf16.msra.mxu0 %v2758
  %2785 = vmatprep.subr.bf16.mxu0 0
  %2786 = vmatpush2.bf16.msra.mxu0 0
  %2787 = vmatprep.subr.bf16.mxu0 0
  %2788 = vmatpush2.bf16.msra.mxu0 0
  %2789 = vmatprep.subr.bf16.mxu0 0
  %2790 = vmatpush2.bf16.msra.mxu0 0
  %2791 = vmatprep.subr.bf16.mxu0 0
  %2792 = vmatpush2.bf16.msra.mxu0 0
  %2793 = vmatprep.subr.bf16.mxu0 0
  %2794 = vmatpush2.bf16.msra.mxu0 0
  %2795 = vmatprep.subr.bf16.mxu0 0
  %2796 = vmatpush2.bf16.msra.mxu0 0
  %2797 = vmatprep.subr.bf16.mxu0 0
  %2798 = vmatpush2.bf16.msra.mxu0 0
  %2799 = vmatprep.subr.bf16.mxu0 0
  %2800 = vmatpush2.bf16.msra.mxu0 0
  %2801 = vmatprep.mubr.bf16.mxu0 0
  %2802 = vmatmul.mubr.bf16.gmra.mxu0 %v2764
  %v2803 = vpop.f32.mrf.mxu0
  %v2804 = vadd.f32 0.0, %v2803
  %v2805 = vpop.f32.mrf.mxu0
  %v2806 = vpop.f32.mrf.mxu0
  %v2807 = vadd.f32 0.0, %v2806
  %v2808 = vpop.f32.mrf.mxu0
  %2809 = vmatprep.mubr.bf16.mxu0 0
  %2810 = vmatmul.mubr.bf16.gmra.mxu0 %v2767
  %v2811 = vpop.f32.mrf.mxu0
  %v2812 = vadd.f32 0.0, %v2811
  %v2813 = vpop.f32.mrf.mxu0
  %v2814 = vpop.f32.mrf.mxu0
  %v2815 = vadd.f32 0.0, %v2814
  %v2816 = vpop.f32.mrf.mxu0
  %2817 = vdwg.mxu0
  %2818 = vrot.lane.b32.xlu0 %v2633, 120
  %v2819 = vpop.permute.xlu0 %2818
  %2820 = vrot.lane.b32.xlu0 %v2634, 120
  %v2821 = vpop.permute.xlu0 %2820
  %2822 = vrot.lane.b32.xlu0 %v2633, 88
  %v2823 = vpop.permute.xlu0 %2822
  %2824 = vrot.lane.b32.xlu0 %v2634, 88
  %v2825 = vpop.permute.xlu0 %2824
  %v2827 = vsel %vm2641, %v2819, 0
  %v2830 = vsel %vm2641, %v2821, 0
  %v2833 = vsel %vm2641, %v2823, 0
  %v2836 = vsel %vm2641, %v2825, 0
  %2838 = vmatprep.subr.bf16.mxu0 0
  %2839 = vmatpush1.bf16.xpose.msra.mxu0 0
  %2840 = vmatprep.subr.bf16.mxu0 0
  %2841 = vmatpush1.bf16.xpose.msra.mxu0 0
  %2842 = vmatprep.subr.bf16.mxu0 0
  %2843 = vmatpush1.bf16.xpose.msra.mxu0 0
  %2844 = vmatprep.subr.bf16.mxu0 0
  %2845 = vmatpush1.bf16.xpose.msra.mxu0 0
  %2846 = vmatprep.subr.bf16.mxu0 0
  %2847 = vmatpush1.bf16.xpose.msra.mxu0 0
  %2848 = vmatprep.subr.bf16.mxu0 0
  %2849 = vmatpush1.bf16.xpose.msra.mxu0 0
  %2850 = vmatprep.subr.bf16.mxu0 0
  %2851 = vmatpush1.bf16.xpose.msra.mxu0 %v2836
  %2852 = vmatprep.subr.bf16.mxu0 0
  %2853 = vmatpush1.bf16.xpose.msra.mxu0 %v2833
  %2854 = vmatprep.subr.bf16.mxu0 0
  %2855 = vmatpush2.bf16.xpose.msra.mxu0 0
  %2856 = vmatprep.subr.bf16.mxu0 0
  %2857 = vmatpush2.bf16.xpose.msra.mxu0 0
  %2858 = vmatprep.subr.bf16.mxu0 0
  %2859 = vmatpush2.bf16.xpose.msra.mxu0 0
  %2860 = vmatprep.subr.bf16.mxu0 0
  %2861 = vmatpush2.bf16.xpose.msra.mxu0 0
  %2862 = vmatprep.subr.bf16.mxu0 0
  %2863 = vmatpush2.bf16.xpose.msra.mxu0 0
  %2864 = vmatprep.subr.bf16.mxu0 0
  %2865 = vmatpush2.bf16.xpose.msra.mxu0 0
  %2866 = vmatprep.subr.bf16.mxu0 0
  %2867 = vmatpush2.bf16.xpose.msra.mxu0 0
  %2868 = vmatprep.subr.bf16.mxu0 0
  %2869 = vmatpush2.bf16.xpose.msra.mxu0 0
  %2870 = vmatprep.mubr.bf16.mxu0 0
  %2871 = vmatmul.mubr.bf16.gmra.mxu0 %v2827
  %v2872 = vpop.f32.mrf.mxu0
  %v2873 = vadd.f32 0.0, %v2872
  %v2874 = vpop.f32.mrf.mxu0
  %v2875 = vpop.f32.mrf.mxu0
  %v2876 = vadd.f32 0.0, %v2875
  %v2877 = vpop.f32.mrf.mxu0
  %2878 = vmatprep.mubr.bf16.mxu0 0
  %2879 = vmatmul.mubr.bf16.gmra.mxu0 %v2830
  %v2880 = vpop.f32.mrf.mxu0
  %v2881 = vadd.f32 0.0, %v2880
  %v2882 = vpop.f32.mrf.mxu0
  %v2883 = vpop.f32.mrf.mxu0
  %v2884 = vadd.f32 0.0, %v2883
  %v2885 = vpop.f32.mrf.mxu0
  %2886 = vdwg.mxu0
  %v2887 = vmul.f32 %v2873, 0.35355338
  %v2888 = vmul.f32 %v2876, 0.35355338
  %v2889 = vmul.f32 %v2881, 0.35355338
  %v2890 = vmul.f32 %v2884, 0.35355338
  %v2891 = vadd.f32 %v2887, %v2480
  %v2892 = vadd.f32 %v2888, %v2481
  %v2893 = vadd.f32 %v2889, %v2482
  %v2894 = vadd.f32 %v2890, %v2483
  %v2895 = vsel %vm2486, %v2891, -inf
  %2896 = vmax.xlane.f32.xlu0 %v2895
  %v2897 = vpop.xlane.xlu0 %2896
  %v2898 = vsel %vm2486, %v2892, -inf
  %2899 = vmax.xlane.f32.xlu0 %v2898
  %v2900 = vpop.xlane.xlu0 %2899
  %v2901 = vsel %vm2486, %v2893, -inf
  %2902 = vmax.xlane.f32.xlu0 %v2901
  %v2903 = vpop.xlane.xlu0 %2902
  %v2904 = vsel %vm2486, %v2894, -inf
  %2905 = vmax.xlane.f32.xlu0 %v2904
  %v2906 = vpop.xlane.xlu0 %2905
  %v2907 = vsub.f32 %v2891, %v2897
  %v2908 = vsub.f32 %v2892, %v2900
  %v2909 = vsub.f32 %v2893, %v2903
  %v2910 = vsub.f32 %v2894, %v2906
  %v2911 = vmul.f32 %v2907, 1.442695
  %v2912 = vpow.pop %v2911
  %v2913 = vmul.f32 %v2908, 1.442695
  %v2914 = vpow.pop %v2913
  %v2915 = vmul.f32 %v2909, 1.442695
  %v2916 = vpow.pop %v2915
  %v2917 = vmul.f32 %v2910, 1.442695
  %v2918 = vpow.pop %v2917
  %v2919 = vsel %vm2486, %v2912, 0.0
  %2920 = vadd.xlane.f32.xlu0 %v2919
  %v2921 = vpop.xlane.xlu0 %2920
  %v2922 = vsel %vm2486, %v2914, 0.0
  %2923 = vadd.xlane.f32.xlu0 %v2922
  %v2924 = vpop.xlane.xlu0 %2923
  %v2925 = vsel %vm2486, %v2916, 0.0
  %2926 = vadd.xlane.f32.xlu0 %v2925
  %v2927 = vpop.xlane.xlu0 %2926
  %v2928 = vsel %vm2486, %v2918, 0.0
  %2929 = vadd.xlane.f32.xlu0 %v2928
  %v2930 = vpop.xlane.xlu0 %2929
  %v2931 = vrcp.pop %v2921
  %v2932 = vrcp.pop %v2924
  %v2933 = vrcp.pop %v2927
  %v2934 = vrcp.pop %v2930
  %v2935 = vmul.f32 %v2912, %v2931
  %v2936 = vmul.f32 %v2914, %v2932
  %v2937 = vmul.f32 %v2916, %v2933
  %v2938 = vmul.f32 %v2918, %v2934
  %v2939 = vpack.c.bf16 %v2936, %v2935
  %v2940 = vpack.c.bf16 %v2938, %v2937
  %2941 = vrot.lane.b32.xlu0 %v2633, 56
  %v2942 = vpop.permute.xlu0 %2941
  %2943 = vrot.lane.b32.xlu0 %v2634, 56
  %v2944 = vpop.permute.xlu0 %2943
  %v2948 = vsel %vm2486, %v2939, 0
  %v2951 = vsel %vm2486, %v2940, 0
  %2953 = vmatprep.subr.bf16.mxu0 0
  %2954 = vmatpush1.bf16.msra.mxu0 0
  %2955 = vmatprep.subr.bf16.mxu0 0
  %2956 = vmatpush1.bf16.msra.mxu0 0
  %2957 = vmatprep.subr.bf16.mxu0 0
  %2958 = vmatpush1.bf16.msra.mxu0 0
  %2959 = vmatprep.subr.bf16.mxu0 0
  %2960 = vmatpush1.bf16.msra.mxu0 0
  %2961 = vmatprep.subr.bf16.mxu0 0
  %2962 = vmatpush1.bf16.msra.mxu0 0
  %2963 = vmatprep.subr.bf16.mxu0 0
  %2964 = vmatpush1.bf16.msra.mxu0 0
  %2965 = vmatprep.subr.bf16.mxu0 0
  %2966 = vmatpush1.bf16.msra.mxu0 %v2944
  %2967 = vmatprep.subr.bf16.mxu0 0
  %2968 = vmatpush1.bf16.msra.mxu0 %v2942
  %2969 = vmatprep.subr.bf16.mxu0 0
  %2970 = vmatpush2.bf16.msra.mxu0 0
  %2971 = vmatprep.subr.bf16.mxu0 0
  %2972 = vmatpush2.bf16.msra.mxu0 0
  %2973 = vmatprep.subr.bf16.mxu0 0
  %2974 = vmatpush2.bf16.msra.mxu0 0
  %2975 = vmatprep.subr.bf16.mxu0 0
  %2976 = vmatpush2.bf16.msra.mxu0 0
  %2977 = vmatprep.subr.bf16.mxu0 0
  %2978 = vmatpush2.bf16.msra.mxu0 0
  %2979 = vmatprep.subr.bf16.mxu0 0
  %2980 = vmatpush2.bf16.msra.mxu0 0
  %2981 = vmatprep.subr.bf16.mxu0 0
  %2982 = vmatpush2.bf16.msra.mxu0 0
  %2983 = vmatprep.subr.bf16.mxu0 0
  %2984 = vmatpush2.bf16.msra.mxu0 0
  %2985 = vmatprep.mubr.bf16.mxu0 0
  %2986 = vmatmul.mubr.bf16.gmra.mxu0 %v2948
  %v2987 = vpop.f32.mrf.mxu0
  %v2988 = vadd.f32 0.0, %v2987
  %v2989 = vpop.f32.mrf.mxu0
  %v2990 = vpop.f32.mrf.mxu0
  %v2991 = vadd.f32 0.0, %v2990
  %v2992 = vpop.f32.mrf.mxu0
  %2993 = vmatprep.mubr.bf16.mxu0 0
  %2994 = vmatmul.mubr.bf16.gmra.mxu0 %v2951
  %v2995 = vpop.f32.mrf.mxu0
  %v2996 = vadd.f32 0.0, %v2995
  %v2997 = vpop.f32.mrf.mxu0
  %v2998 = vpop.f32.mrf.mxu0
  %v2999 = vadd.f32 0.0, %v2998
  %v3000 = vpop.f32.mrf.mxu0
  %3001 = vdwg.mxu0
  %3002 = vrot.lane.b32.xlu0 %v2633, 112
  %v3003 = vpop.permute.xlu0 %3002
  %3004 = vrot.lane.b32.xlu0 %v2634, 112
  %v3005 = vpop.permute.xlu0 %3004
  %3006 = vrot.lane.b32.xlu0 %v2633, 80
  %v3007 = vpop.permute.xlu0 %3006
  %3008 = vrot.lane.b32.xlu0 %v2634, 80
  %v3009 = vpop.permute.xlu0 %3008
  %v3011 = vsel %vm2641, %v3003, 0
  %v3014 = vsel %vm2641, %v3005, 0
  %v3017 = vsel %vm2641, %v3007, 0
  %v3020 = vsel %vm2641, %v3009, 0
  %3022 = vmatprep.subr.bf16.mxu0 0
  %3023 = vmatpush1.bf16.xpose.msra.mxu0 0
  %3024 = vmatprep.subr.bf16.mxu0 0
  %3025 = vmatpush1.bf16.xpose.msra.mxu0 0
  %3026 = vmatprep.subr.bf16.mxu0 0
  %3027 = vmatpush1.bf16.xpose.msra.mxu0 0
  %3028 = vmatprep.subr.bf16.mxu0 0
  %3029 = vmatpush1.bf16.xpose.msra.mxu0 0
  %3030 = vmatprep.subr.bf16.mxu0 0
  %3031 = vmatpush1.bf16.xpose.msra.mxu0 0
  %3032 = vmatprep.subr.bf16.mxu0 0
  %3033 = vmatpush1.bf16.xpose.msra.mxu0 0
  %3034 = vmatprep.subr.bf16.mxu0 0
  %3035 = vmatpush1.bf16.xpose.msra.mxu0 %v3020
  %3036 = vmatprep.subr.bf16.mxu0 0
  %3037 = vmatpush1.bf16.xpose.msra.mxu0 %v3017
  %3038 = vmatprep.subr.bf16.mxu0 0
  %3039 = vmatpush2.bf16.xpose.msra.mxu0 0
  %3040 = vmatprep.subr.bf16.mxu0 0
  %3041 = vmatpush2.bf16.xpose.msra.mxu0 0
  %3042 = vmatprep.subr.bf16.mxu0 0
  %3043 = vmatpush2.bf16.xpose.msra.mxu0 0
  %3044 = vmatprep.subr.bf16.mxu0 0
  %3045 = vmatpush2.bf16.xpose.msra.mxu0 0
  %3046 = vmatprep.subr.bf16.mxu0 0
  %3047 = vmatpush2.bf16.xpose.msra.mxu0 0
  %3048 = vmatprep.subr.bf16.mxu0 0
  %3049 = vmatpush2.bf16.xpose.msra.mxu0 0
  %3050 = vmatprep.subr.bf16.mxu0 0
  %3051 = vmatpush2.bf16.xpose.msra.mxu0 0
  %3052 = vmatprep.subr.bf16.mxu0 0
  %3053 = vmatpush2.bf16.xpose.msra.mxu0 0
  %3054 = vmatprep.mubr.bf16.mxu0 0
  %3055 = vmatmul.mubr.bf16.gmra.mxu0 %v3011
  %v3056 = vpop.f32.mrf.mxu0
  %v3057 = vadd.f32 0.0, %v3056
  %v3058 = vpop.f32.mrf.mxu0
  %v3059 = vpop.f32.mrf.mxu0
  %v3060 = vadd.f32 0.0, %v3059
  %v3061 = vpop.f32.mrf.mxu0
  %3062 = vmatprep.mubr.bf16.mxu0 0
  %3063 = vmatmul.mubr.bf16.gmra.mxu0 %v3014
  %v3064 = vpop.f32.mrf.mxu0
  %v3065 = vadd.f32 0.0, %v3064
  %v3066 = vpop.f32.mrf.mxu0
  %v3067 = vpop.f32.mrf.mxu0
  %v3068 = vadd.f32 0.0, %v3067
  %v3069 = vpop.f32.mrf.mxu0
  %3070 = vdwg.mxu0
  %v3071 = vmul.f32 %v3057, 0.35355338
  %v3072 = vmul.f32 %v3060, 0.35355338
  %v3073 = vmul.f32 %v3065, 0.35355338
  %v3074 = vmul.f32 %v3068, 0.35355338
  %v3075 = vadd.f32 %v3071, %v2480
  %v3076 = vadd.f32 %v3072, %v2481
  %v3077 = vadd.f32 %v3073, %v2482
  %v3078 = vadd.f32 %v3074, %v2483
  %v3079 = vsel %vm2486, %v3075, -inf
  %3080 = vmax.xlane.f32.xlu0 %v3079
  %v3081 = vpop.xlane.xlu0 %3080
  %v3082 = vsel %vm2486, %v3076, -inf
  %3083 = vmax.xlane.f32.xlu0 %v3082
  %v3084 = vpop.xlane.xlu0 %3083
  %v3085 = vsel %vm2486, %v3077, -inf
  %3086 = vmax.xlane.f32.xlu0 %v3085
  %v3087 = vpop.xlane.xlu0 %3086
  %v3088 = vsel %vm2486, %v3078, -inf
  %3089 = vmax.xlane.f32.xlu0 %v3088
  %v3090 = vpop.xlane.xlu0 %3089
  %v3091 = vsub.f32 %v3075, %v3081
  %v3092 = vsub.f32 %v3076, %v3084
  %v3093 = vsub.f32 %v3077, %v3087
  %v3094 = vsub.f32 %v3078, %v3090
  %v3095 = vmul.f32 %v3091, 1.442695
  %v3096 = vpow.pop %v3095
  %v3097 = vmul.f32 %v3092, 1.442695
  %v3098 = vpow.pop %v3097
  %v3099 = vmul.f32 %v3093, 1.442695
  %v3100 = vpow.pop %v3099
  %v3101 = vmul.f32 %v3094, 1.442695
  %v3102 = vpow.pop %v3101
  %v3103 = vsel %vm2486, %v3096, 0.0
  %3104 = vadd.xlane.f32.xlu0 %v3103
  %v3105 = vpop.xlane.xlu0 %3104
  %v3106 = vsel %vm2486, %v3098, 0.0
  %3107 = vadd.xlane.f32.xlu0 %v3106
  %v3108 = vpop.xlane.xlu0 %3107
  %v3109 = vsel %vm2486, %v3100, 0.0
  %3110 = vadd.xlane.f32.xlu0 %v3109
  %v3111 = vpop.xlane.xlu0 %3110
  %v3112 = vsel %vm2486, %v3102, 0.0
  %3113 = vadd.xlane.f32.xlu0 %v3112
  %v3114 = vpop.xlane.xlu0 %3113
  %v3115 = vrcp.pop %v3105
  %v3116 = vrcp.pop %v3108
  %v3117 = vrcp.pop %v3111
  %v3118 = vrcp.pop %v3114
  %v3119 = vmul.f32 %v3096, %v3115
  %v3120 = vmul.f32 %v3098, %v3116
  %v3121 = vmul.f32 %v3100, %v3117
  %v3122 = vmul.f32 %v3102, %v3118
  %v3123 = vpack.c.bf16 %v3120, %v3119
  %v3124 = vpack.c.bf16 %v3122, %v3121
  %3125 = vrot.lane.b32.xlu0 %v2633, 48
  %v3126 = vpop.permute.xlu0 %3125
  %3127 = vrot.lane.b32.xlu0 %v2634, 48
  %v3128 = vpop.permute.xlu0 %3127
  %v3132 = vsel %vm2486, %v3123, 0
  %v3135 = vsel %vm2486, %v3124, 0
  %3137 = vmatprep.subr.bf16.mxu0 0
  %3138 = vmatpush1.bf16.msra.mxu0 0
  %3139 = vmatprep.subr.bf16.mxu0 0
  %3140 = vmatpush1.bf16.msra.mxu0 0
  %3141 = vmatprep.subr.bf16.mxu0 0
  %3142 = vmatpush1.bf16.msra.mxu0 0
  %3143 = vmatprep.subr.bf16.mxu0 0
  %3144 = vmatpush1.bf16.msra.mxu0 0
  %3145 = vmatprep.subr.bf16.mxu0 0
  %3146 = vmatpush1.bf16.msra.mxu0 0
  %3147 = vmatprep.subr.bf16.mxu0 0
  %3148 = vmatpush1.bf16.msra.mxu0 0
  %3149 = vmatprep.subr.bf16.mxu0 0
  %3150 = vmatpush1.bf16.msra.mxu0 %v3128
  %3151 = vmatprep.subr.bf16.mxu0 0
  %3152 = vmatpush1.bf16.msra.mxu0 %v3126
  %3153 = vmatprep.subr.bf16.mxu0 0
  %3154 = vmatpush2.bf16.msra.mxu0 0
  %3155 = vmatprep.subr.bf16.mxu0 0
  %3156 = vmatpush2.bf16.msra.mxu0 0
  %3157 = vmatprep.subr.bf16.mxu0 0
  %3158 = vmatpush2.bf16.msra.mxu0 0
  %3159 = vmatprep.subr.bf16.mxu0 0
  %3160 = vmatpush2.bf16.msra.mxu0 0
  %3161 = vmatprep.subr.bf16.mxu0 0
  %3162 = vmatpush2.bf16.msra.mxu0 0
  %3163 = vmatprep.subr.bf16.mxu0 0
  %3164 = vmatpush2.bf16.msra.mxu0 0
  %3165 = vmatprep.subr.bf16.mxu0 0
  %3166 = vmatpush2.bf16.msra.mxu0 0
  %3167 = vmatprep.subr.bf16.mxu0 0
  %3168 = vmatpush2.bf16.msra.mxu0 0
  %3169 = vmatprep.mubr.bf16.mxu0 0
  %3170 = vmatmul.mubr.bf16.gmra.mxu0 %v3132
  %v3171 = vpop.f32.mrf.mxu0
  %v3172 = vadd.f32 0.0, %v3171
  %v3173 = vpop.f32.mrf.mxu0
  %v3174 = vpop.f32.mrf.mxu0
  %v3175 = vadd.f32 0.0, %v3174
  %v3176 = vpop.f32.mrf.mxu0
  %3177 = vmatprep.mubr.bf16.mxu0 0
  %3178 = vmatmul.mubr.bf16.gmra.mxu0 %v3135
  %v3179 = vpop.f32.mrf.mxu0
  %v3180 = vadd.f32 0.0, %v3179
  %v3181 = vpop.f32.mrf.mxu0
  %v3182 = vpop.f32.mrf.mxu0
  %v3183 = vadd.f32 0.0, %v3182
  %v3184 = vpop.f32.mrf.mxu0
  %3185 = vdwg.mxu0
  %3186 = vrot.lane.b32.xlu0 %v2633, 104
  %v3187 = vpop.permute.xlu0 %3186
  %3188 = vrot.lane.b32.xlu0 %v2634, 104
  %v3189 = vpop.permute.xlu0 %3188
  %3190 = vrot.lane.b32.xlu0 %v2633, 72
  %v3191 = vpop.permute.xlu0 %3190
  %3192 = vrot.lane.b32.xlu0 %v2634, 72
  %v3193 = vpop.permute.xlu0 %3192
  %v3195 = vsel %vm2641, %v3187, 0
  %v3198 = vsel %vm2641, %v3189, 0
  %v3201 = vsel %vm2641, %v3191, 0
  %v3204 = vsel %vm2641, %v3193, 0
  %3206 = vmatprep.subr.bf16.mxu0 0
  %3207 = vmatpush1.bf16.xpose.msra.mxu0 0
  %3208 = vmatprep.subr.bf16.mxu0 0
  %3209 = vmatpush1.bf16.xpose.msra.mxu0 0
  %3210 = vmatprep.subr.bf16.mxu0 0
  %3211 = vmatpush1.bf16.xpose.msra.mxu0 0
  %3212 = vmatprep.subr.bf16.mxu0 0
  %3213 = vmatpush1.bf16.xpose.msra.mxu0 0
  %3214 = vmatprep.subr.bf16.mxu0 0
  %3215 = vmatpush1.bf16.xpose.msra.mxu0 0
  %3216 = vmatprep.subr.bf16.mxu0 0
  %3217 = vmatpush1.bf16.xpose.msra.mxu0 0
  %3218 = vmatprep.subr.bf16.mxu0 0
  %3219 = vmatpush1.bf16.xpose.msra.mxu0 %v3204
  %3220 = vmatprep.subr.bf16.mxu0 0
  %3221 = vmatpush1.bf16.xpose.msra.mxu0 %v3201
  %3222 = vmatprep.subr.bf16.mxu0 0
  %3223 = vmatpush2.bf16.xpose.msra.mxu0 0
  %3224 = vmatprep.subr.bf16.mxu0 0
  %3225 = vmatpush2.bf16.xpose.msra.mxu0 0
  %3226 = vmatprep.subr.bf16.mxu0 0
  %3227 = vmatpush2.bf16.xpose.msra.mxu0 0
  %3228 = vmatprep.subr.bf16.mxu0 0
  %3229 = vmatpush2.bf16.xpose.msra.mxu0 0
  %3230 = vmatprep.subr.bf16.mxu0 0
  %3231 = vmatpush2.bf16.xpose.msra.mxu0 0
  %3232 = vmatprep.subr.bf16.mxu0 0
  %3233 = vmatpush2.bf16.xpose.msra.mxu0 0
  %3234 = vmatprep.subr.bf16.mxu0 0
  %3235 = vmatpush2.bf16.xpose.msra.mxu0 0
  %3236 = vmatprep.subr.bf16.mxu0 0
  %3237 = vmatpush2.bf16.xpose.msra.mxu0 0
  %3238 = vmatprep.mubr.bf16.mxu0 0
  %3239 = vmatmul.mubr.bf16.gmra.mxu0 %v3195
  %v3240 = vpop.f32.mrf.mxu0
  %v3241 = vadd.f32 0.0, %v3240
  %v3242 = vpop.f32.mrf.mxu0
  %v3243 = vpop.f32.mrf.mxu0
  %v3244 = vadd.f32 0.0, %v3243
  %v3245 = vpop.f32.mrf.mxu0
  %3246 = vmatprep.mubr.bf16.mxu0 0
  %3247 = vmatmul.mubr.bf16.gmra.mxu0 %v3198
  %v3248 = vpop.f32.mrf.mxu0
  %v3249 = vadd.f32 0.0, %v3248
  %v3250 = vpop.f32.mrf.mxu0
  %v3251 = vpop.f32.mrf.mxu0
  %v3252 = vadd.f32 0.0, %v3251
  %v3253 = vpop.f32.mrf.mxu0
  %3254 = vdwg.mxu0
  %v3255 = vmul.f32 %v3241, 0.35355338
  %v3256 = vmul.f32 %v3244, 0.35355338
  %v3257 = vmul.f32 %v3249, 0.35355338
  %v3258 = vmul.f32 %v3252, 0.35355338
  %v3259 = vadd.f32 %v3255, %v2480
  %v3260 = vadd.f32 %v3256, %v2481
  %v3261 = vadd.f32 %v3257, %v2482
  %v3262 = vadd.f32 %v3258, %v2483
  %v3263 = vsel %vm2486, %v3259, -inf
  %3264 = vmax.xlane.f32.xlu0 %v3263
  %v3265 = vpop.xlane.xlu0 %3264
  %v3266 = vsel %vm2486, %v3260, -inf
  %3267 = vmax.xlane.f32.xlu0 %v3266
  %v3268 = vpop.xlane.xlu0 %3267
  %v3269 = vsel %vm2486, %v3261, -inf
  %3270 = vmax.xlane.f32.xlu0 %v3269
  %v3271 = vpop.xlane.xlu0 %3270
  %v3272 = vsel %vm2486, %v3262, -inf
  %3273 = vmax.xlane.f32.xlu0 %v3272
  %v3274 = vpop.xlane.xlu0 %3273
  %v3275 = vsub.f32 %v3259, %v3265
  %v3276 = vsub.f32 %v3260, %v3268
  %v3277 = vsub.f32 %v3261, %v3271
  %v3278 = vsub.f32 %v3262, %v3274
  %v3279 = vmul.f32 %v3275, 1.442695
  %v3280 = vpow.pop %v3279
  %v3281 = vmul.f32 %v3276, 1.442695
  %v3282 = vpow.pop %v3281
  %v3283 = vmul.f32 %v3277, 1.442695
  %v3284 = vpow.pop %v3283
  %v3285 = vmul.f32 %v3278, 1.442695
  %v3286 = vpow.pop %v3285
  %v3287 = vsel %vm2486, %v3280, 0.0
  %3288 = vadd.xlane.f32.xlu0 %v3287
  %v3289 = vpop.xlane.xlu0 %3288
  %v3290 = vsel %vm2486, %v3282, 0.0
  %3291 = vadd.xlane.f32.xlu0 %v3290
  %v3292 = vpop.xlane.xlu0 %3291
  %v3293 = vsel %vm2486, %v3284, 0.0
  %3294 = vadd.xlane.f32.xlu0 %v3293
  %v3295 = vpop.xlane.xlu0 %3294
  %v3296 = vsel %vm2486, %v3286, 0.0
  %3297 = vadd.xlane.f32.xlu0 %v3296
  %v3298 = vpop.xlane.xlu0 %3297
  %v3299 = vrcp.pop %v3289
  %v3300 = vrcp.pop %v3292
  %v3301 = vrcp.pop %v3295
  %v3302 = vrcp.pop %v3298
  %v3303 = vmul.f32 %v3280, %v3299
  %v3304 = vmul.f32 %v3282, %v3300
  %v3305 = vmul.f32 %v3284, %v3301
  %v3306 = vmul.f32 %v3286, %v3302
  %v3307 = vpack.c.bf16 %v3304, %v3303
  %v3308 = vpack.c.bf16 %v3306, %v3305
  %3309 = vrot.lane.b32.xlu0 %v2633, 40
  %v3310 = vpop.permute.xlu0 %3309
  %3311 = vrot.lane.b32.xlu0 %v2634, 40
  %v3312 = vpop.permute.xlu0 %3311
  %v3316 = vsel %vm2486, %v3307, 0
  %v3319 = vsel %vm2486, %v3308, 0
  %3321 = vmatprep.subr.bf16.mxu0 0
  %3322 = vmatpush1.bf16.msra.mxu0 0
  %3323 = vmatprep.subr.bf16.mxu0 0
  %3324 = vmatpush1.bf16.msra.mxu0 0
  %3325 = vmatprep.subr.bf16.mxu0 0
  %3326 = vmatpush1.bf16.msra.mxu0 0
  %3327 = vmatprep.subr.bf16.mxu0 0
  %3328 = vmatpush1.bf16.msra.mxu0 0
  %3329 = vmatprep.subr.bf16.mxu0 0
  %3330 = vmatpush1.bf16.msra.mxu0 0
  %3331 = vmatprep.subr.bf16.mxu0 0
  %3332 = vmatpush1.bf16.msra.mxu0 0
  %3333 = vmatprep.subr.bf16.mxu0 0
  %3334 = vmatpush1.bf16.msra.mxu0 %v3312
  %3335 = vmatprep.subr.bf16.mxu0 0
  %3336 = vmatpush1.bf16.msra.mxu0 %v3310
  %3337 = vmatprep.subr.bf16.mxu0 0
  %3338 = vmatpush2.bf16.msra.mxu0 0
  %3339 = vmatprep.subr.bf16.mxu0 0
  %3340 = vmatpush2.bf16.msra.mxu0 0
  %3341 = vmatprep.subr.bf16.mxu0 0
  %3342 = vmatpush2.bf16.msra.mxu0 0
  %3343 = vmatprep.subr.bf16.mxu0 0
  %3344 = vmatpush2.bf16.msra.mxu0 0
  %3345 = vmatprep.subr.bf16.mxu0 0
  %3346 = vmatpush2.bf16.msra.mxu0 0
  %3347 = vmatprep.subr.bf16.mxu0 0
  %3348 = vmatpush2.bf16.msra.mxu0 0
  %3349 = vmatprep.subr.bf16.mxu0 0
  %3350 = vmatpush2.bf16.msra.mxu0 0
  %3351 = vmatprep.subr.bf16.mxu0 0
  %3352 = vmatpush2.bf16.msra.mxu0 0
  %3353 = vmatprep.mubr.bf16.mxu0 0
  %3354 = vmatmul.mubr.bf16.gmra.mxu0 %v3316
  %v3355 = vpop.f32.mrf.mxu0
  %v3356 = vadd.f32 0.0, %v3355
  %v3357 = vpop.f32.mrf.mxu0
  %v3358 = vpop.f32.mrf.mxu0
  %v3359 = vadd.f32 0.0, %v3358
  %v3360 = vpop.f32.mrf.mxu0
  %3361 = vmatprep.mubr.bf16.mxu0 0
  %3362 = vmatmul.mubr.bf16.gmra.mxu0 %v3319
  %v3363 = vpop.f32.mrf.mxu0
  %v3364 = vadd.f32 0.0, %v3363
  %v3365 = vpop.f32.mrf.mxu0
  %v3366 = vpop.f32.mrf.mxu0
  %v3367 = vadd.f32 0.0, %v3366
  %v3368 = vpop.f32.mrf.mxu0
  %3369 = vdwg.mxu0
  %3374 = vrot.lane.b32.xlu0 %v2988, 8
  %v3375 = vpop.permute.xlu0 %3374
  %3376 = vrot.lane.b32.xlu0 %v2991, 8
  %v3377 = vpop.permute.xlu0 %3376
  %3378 = vrot.lane.b32.xlu0 %v2996, 8
  %v3379 = vpop.permute.xlu0 %3378
  %3380 = vrot.lane.b32.xlu0 %v2999, 8
  %v3381 = vpop.permute.xlu0 %3380
  %3390 = vrot.lane.b32.xlu0 %v3172, 16
  %v3391 = vpop.permute.xlu0 %3390
  %3392 = vrot.lane.b32.xlu0 %v3175, 16
  %v3393 = vpop.permute.xlu0 %3392
  %3394 = vrot.lane.b32.xlu0 %v3180, 16
  %v3395 = vpop.permute.xlu0 %3394
  %3396 = vrot.lane.b32.xlu0 %v3183, 16
  %v3397 = vpop.permute.xlu0 %3396
  %3406 = vrot.lane.b32.xlu0 %v3356, 24
  %v3407 = vpop.permute.xlu0 %3406
  %3408 = vrot.lane.b32.xlu0 %v3359, 24
  %v3409 = vpop.permute.xlu0 %3408
  %3410 = vrot.lane.b32.xlu0 %v3364, 24
  %v3411 = vpop.permute.xlu0 %3410
  %3412 = vrot.lane.b32.xlu0 %v3367, 24
  %v3413 = vpop.permute.xlu0 %3412
  %v3418 = vsel %vm2641, %v2804, %v3375
  %v3419 = vsel %vm2641, %v2807, %v3377
  %v3420 = vsel %vm2641, %v2812, %v3379
  %v3421 = vsel %vm2641, %v2815, %v3381
  %vm3422 = vcmask 130048
  %v3423 = vsel %vm3422, %v3418, %v3391
  %v3424 = vsel %vm3422, %v3419, %v3393
  %v3425 = vsel %vm3422, %v3420, %v3395
  %v3426 = vsel %vm3422, %v3421, %v3397
  %vm3427 = vcmask 195584
  %v3428 = vsel %vm3427, %v3423, %v3407
  %v3429 = vsel %vm3427, %v3424, %v3409
  %v3430 = vsel %vm3427, %v3425, %v3411
  %v3431 = vsel %vm3427, %v3426, %v3413
  %v3432 = vpack.c.bf16 %v3429, %v3428
  %v3433 = vpack.c.bf16 %v3431, %v3430
  %v3434 = vld [vmem:[%s8] sm:$0xf]
  %v3435 = vld [vmem:[%s8 + $0x4] sm:$0xf]
  %v3436 = vld [vmem:[%s8 + $0x8] sm:$0xf]
  %v3437 = vld [vmem:[%s8 + $0xc] sm:$0xf]
  %v3442 = vunpack.c.l.b16 %v3434
  %v3443 = vunpack.c.l.b16 %v3435
  %v3444 = vunpack.c.l.b16 %v3436
  %v3445 = vunpack.c.l.b16 %v3437
  %v3446 = vpack.c.b16 %v3443, %v3442
  %v3447 = vpack.c.b16 %v3445, %v3444
  %v3451 = vsel %vm2486, %v3432, 0
  %v3454 = vsel %vm2486, %v3433, 0
  %3456 = vmatprep.subr.bf16.mxu0 0
  %3457 = vmatpush1.bf16.msra.mxu0 0
  %3458 = vmatprep.subr.bf16.mxu0 0
  %3459 = vmatpush1.bf16.msra.mxu0 0
  %3460 = vmatprep.subr.bf16.mxu0 0
  %3461 = vmatpush1.bf16.msra.mxu0 0
  %3462 = vmatprep.subr.bf16.mxu0 0
  %3463 = vmatpush1.bf16.msra.mxu0 0
  %3464 = vmatprep.subr.bf16.mxu0 0
  %3465 = vmatpush1.bf16.msra.mxu0 0
  %3466 = vmatprep.subr.bf16.mxu0 0
  %3467 = vmatpush1.bf16.msra.mxu0 0
  %3468 = vmatprep.subr.bf16.mxu0 0
  %3469 = vmatpush1.bf16.msra.mxu0 %v3447
  %3470 = vmatprep.subr.bf16.mxu0 0
  %3471 = vmatpush1.bf16.msra.mxu0 %v3446
  %3472 = vmatprep.subr.bf16.mxu0 0
  %3473 = vmatpush2.bf16.msra.mxu0 0
  %3474 = vmatprep.subr.bf16.mxu0 0
  %3475 = vmatpush2.bf16.msra.mxu0 0
  %3476 = vmatprep.subr.bf16.mxu0 0
  %3477 = vmatpush2.bf16.msra.mxu0 0
  %3478 = vmatprep.subr.bf16.mxu0 0
  %3479 = vmatpush2.bf16.msra.mxu0 0
  %3480 = vmatprep.subr.bf16.mxu0 0
  %3481 = vmatpush2.bf16.msra.mxu0 0
  %3482 = vmatprep.subr.bf16.mxu0 0
  %3483 = vmatpush2.bf16.msra.mxu0 0
  %3484 = vmatprep.subr.bf16.mxu0 0
  %3485 = vmatpush2.bf16.msra.mxu0 0
  %3486 = vmatprep.subr.bf16.mxu0 0
  %3487 = vmatpush2.bf16.msra.mxu0 0
  %3488 = vmatprep.mubr.bf16.mxu0 0
  %3489 = vmatmul.mubr.bf16.gmra.mxu0 %v3451
  %v3490 = vpop.f32.mrf.mxu0
  %v3491 = vadd.f32 0.0, %v3490
  %v3492 = vpop.f32.mrf.mxu0
  %v3493 = vpop.f32.mrf.mxu0
  %v3494 = vadd.f32 0.0, %v3493
  %v3495 = vpop.f32.mrf.mxu0
  %3496 = vmatprep.mubr.bf16.mxu0 0
  %3497 = vmatmul.mubr.bf16.gmra.mxu0 %v3454
  %v3498 = vpop.f32.mrf.mxu0
  %v3499 = vadd.f32 0.0, %v3498
  %v3500 = vpop.f32.mrf.mxu0
  %v3501 = vpop.f32.mrf.mxu0
  %v3502 = vadd.f32 0.0, %v3501
  %v3503 = vpop.f32.mrf.mxu0
  %3504 = vdwg.mxu0
  %v3505 = vadd.f32 %v2466, %v3491
  %v3506 = vadd.f32 %v2469, %v3494
  %v3507 = vadd.f32 %v2474, %v3499
  %v3508 = vadd.f32 %v2477, %v3502
  %v3509 = vld [vmem:[%s9] sm:$0x1]
  %v3511 = vlaneseq
  %v3512 = vshrl.u32 %v3511, 7
  %v3513 = vsub.s32 0, %v3512
  %v3514 = vrot.slane %v3509, %v3513
  %v3516 = vadd.f32 %v3505, %v3514
  %v3517 = vadd.f32 %v3506, %v3514
  %v3518 = vadd.f32 %v3507, %v3514
  %v3519 = vadd.f32 %v3508, %v3514
  %v3520 = vld [vmem:[%s10] sm:$0x1]
  %v3521 = vld [vmem:[%s11] sm:$0x1]
  %v3522 = vsel %vm2486, %v3516, 0.0
  %3523 = vadd.xlane.f32.xlu0 %v3522
  %v3524 = vpop.xlane.xlu0 %3523
  %v3525 = vsel %vm2486, %v3517, 0.0
  %3526 = vadd.xlane.f32.xlu0 %v3525
  %v3527 = vpop.xlane.xlu0 %3526
  %v3528 = vsel %vm2486, %v3518, 0.0
  %3529 = vadd.xlane.f32.xlu0 %v3528
  %v3530 = vpop.xlane.xlu0 %3529
  %v3531 = vsel %vm2486, %v3519, 0.0
  %3532 = vadd.xlane.f32.xlu0 %v3531
  %v3533 = vpop.xlane.xlu0 %3532
  %v3534 = vmul.f32 %v3524, %v2499
  %v3535 = vmul.f32 %v3527, %v2499
  %v3536 = vmul.f32 %v3530, %v2499
  %v3537 = vmul.f32 %v3533, %v2499
  %v3538 = vsub.f32 %v3516, %v3534
  %v3539 = vsub.f32 %v3517, %v3535
  %v3540 = vsub.f32 %v3518, %v3536
  %v3541 = vsub.f32 %v3519, %v3537
  %v3542 = vmul.f32 %v3538, %v3538
  %v3543 = vmul.f32 %v3539, %v3539
  %v3544 = vmul.f32 %v3540, %v3540
  %v3545 = vmul.f32 %v3541, %v3541
  %v3546 = vsel %vm2486, %v3542, 0.0
  %3547 = vadd.xlane.f32.xlu0 %v3546
  %v3548 = vpop.xlane.xlu0 %3547
  %v3549 = vsel %vm2486, %v3543, 0.0
  %3550 = vadd.xlane.f32.xlu0 %v3549
  %v3551 = vpop.xlane.xlu0 %3550
  %v3552 = vsel %vm2486, %v3544, 0.0
  %3553 = vadd.xlane.f32.xlu0 %v3552
  %v3554 = vpop.xlane.xlu0 %3553
  %v3555 = vsel %vm2486, %v3545, 0.0
  %3556 = vadd.xlane.f32.xlu0 %v3555
  %v3557 = vpop.xlane.xlu0 %3556
  %v3558 = vmul.f32 %v3548, %v2499
  %v3559 = vmul.f32 %v3551, %v2499
  %v3560 = vmul.f32 %v3554, %v2499
  %v3561 = vmul.f32 %v3557, %v2499
  %v3562 = vadd.f32 %v3558, 1e-05
  %v3563 = vadd.f32 %v3559, 1e-05
  %v3564 = vadd.f32 %v3560, 1e-05
  %v3565 = vadd.f32 %v3561, 1e-05
  %v3566 = vrsqrt.pop %v3562
  %v3567 = vrsqrt.pop %v3563
  %v3568 = vrsqrt.pop %v3564
  %v3569 = vrsqrt.pop %v3565
  %v3570 = vmul.f32 %v3538, %v3566
  %v3571 = vmul.f32 %v3539, %v3567
  %v3572 = vmul.f32 %v3540, %v3568
  %v3573 = vmul.f32 %v3541, %v3569
  %v3575 = vlaneseq
  %v3576 = vshrl.u32 %v3575, 7
  %v3577 = vsub.s32 0, %v3576
  %v3578 = vrot.slane %v3520, %v3577
  %v3580 = vmul.f32 %v3570, %v3578
  %v3581 = vmul.f32 %v3571, %v3578
  %v3582 = vmul.f32 %v3572, %v3578
  %v3583 = vmul.f32 %v3573, %v3578
  %v3585 = vlaneseq
  %v3586 = vshrl.u32 %v3585, 7
  %v3587 = vsub.s32 0, %v3586
  %v3588 = vrot.slane %v3521, %v3587
  %v3590 = vadd.f32 %v3580, %v3588
  %v3591 = vadd.f32 %v3581, %v3588
  %v3592 = vadd.f32 %v3582, %v3588
  %v3593 = vadd.f32 %v3583, %v3588
  %v3594 = vpack.c.bf16 %v3591, %v3590
  %v3595 = vpack.c.bf16 %v3593, %v3592
  %v3596 = vld [vmem:[%s12] sm:$0xf]
  %v3597 = vld [vmem:[%s12 + $0x4] sm:$0xf]
  %v3598 = vld [vmem:[%s12 + $0x8] sm:$0xf]
  %v3599 = vld [vmem:[%s12 + $0xc] sm:$0xf]
  %v3600 = vld [vmem:[%s13] sm:$0x1]
  %v3602 = vlaneseq
  %v3603 = vshrl.u32 %v3602, 7
  %v3604 = vsub.s32 0, %v3603
  %v3605 = vrot.slane %v3600, %v3604
  %v3611 = vunpack.c.l.b16 %v3596
  %v3612 = vunpack.c.l.b16 %v3597
  %v3613 = vunpack.c.l.b16 %v3598
  %v3614 = vunpack.c.l.b16 %v3599
  %v3615 = vpack.c.b16 %v3612, %v3611
  %v3616 = vpack.c.b16 %v3614, %v3613
  %v3620 = vsel %vm2486, %v3594, 0
  %v3623 = vsel %vm2486, %v3595, 0
  %3625 = vmatprep.subr.bf16.mxu0 0
  %3626 = vmatpush1.bf16.msra.mxu0 0
  %3627 = vmatprep.subr.bf16.mxu0 0
  %3628 = vmatpush1.bf16.msra.mxu0 0
  %3629 = vmatprep.subr.bf16.mxu0 0
  %3630 = vmatpush1.bf16.msra.mxu0 0
  %3631 = vmatprep.subr.bf16.mxu0 0
  %3632 = vmatpush1.bf16.msra.mxu0 0
  %3633 = vmatprep.subr.bf16.mxu0 0
  %3634 = vmatpush1.bf16.msra.mxu0 0
  %3635 = vmatprep.subr.bf16.mxu0 0
  %3636 = vmatpush1.bf16.msra.mxu0 0
  %3637 = vmatprep.subr.bf16.mxu0 0
  %3638 = vmatpush1.bf16.msra.mxu0 %v3616
  %3639 = vmatprep.subr.bf16.mxu0 0
  %3640 = vmatpush1.bf16.msra.mxu0 %v3615
  %3641 = vmatprep.subr.bf16.mxu0 0
  %3642 = vmatpush2.bf16.msra.mxu0 0
  %3643 = vmatprep.subr.bf16.mxu0 0
  %3644 = vmatpush2.bf16.msra.mxu0 0
  %3645 = vmatprep.subr.bf16.mxu0 0
  %3646 = vmatpush2.bf16.msra.mxu0 0
  %3647 = vmatprep.subr.bf16.mxu0 0
  %3648 = vmatpush2.bf16.msra.mxu0 0
  %3649 = vmatprep.subr.bf16.mxu0 0
  %3650 = vmatpush2.bf16.msra.mxu0 0
  %3651 = vmatprep.subr.bf16.mxu0 0
  %3652 = vmatpush2.bf16.msra.mxu0 0
  %3653 = vmatprep.subr.bf16.mxu0 0
  %3654 = vmatpush2.bf16.msra.mxu0 0
  %3655 = vmatprep.subr.bf16.mxu0 0
  %3656 = vmatpush2.bf16.msra.mxu0 0
  %3657 = vmatprep.mubr.bf16.mxu0 0
  %3658 = vmatmul.mubr.bf16.gmra.mxu0 %v3620
  %v3659 = vpop.f32.mrf.mxu0
  %v3660 = vadd.f32 %v3605, %v3659
  %v3661 = vpop.f32.mrf.mxu0
  %v3662 = vpop.f32.mrf.mxu0
  %v3663 = vadd.f32 %v3605, %v3662
  %v3664 = vpop.f32.mrf.mxu0
  %3665 = vmatprep.mubr.bf16.mxu0 0
  %3666 = vmatmul.mubr.bf16.gmra.mxu0 %v3623
  %v3667 = vpop.f32.mrf.mxu0
  %v3668 = vadd.f32 %v3605, %v3667
  %v3669 = vpop.f32.mrf.mxu0
  %v3670 = vpop.f32.mrf.mxu0
  %v3671 = vadd.f32 %v3605, %v3670
  %v3672 = vpop.f32.mrf.mxu0
  %3673 = vdwg.mxu0
  %v3674 = vmul.f32 %v3660, 0.5
  %v3675 = vmul.f32 %v3663, 0.5
  %v3676 = vmul.f32 %v3668, 0.5
  %v3677 = vmul.f32 %v3671, 0.5
  %v3678 = vmul.f32 %v3660, 0.044715
  %v3679 = vmul.f32 %v3663, 0.044715
  %v3680 = vmul.f32 %v3668, 0.044715
  %v3681 = vmul.f32 %v3671, 0.044715
  %v3682 = vmul.f32 %v3678, %v3660
  %v3683 = vmul.f32 %v3679, %v3663
  %v3684 = vmul.f32 %v3680, %v3668
  %v3685 = vmul.f32 %v3681, %v3671
  %v3686 = vmul.f32 %v3682, %v3660
  %v3687 = vmul.f32 %v3683, %v3663
  %v3688 = vmul.f32 %v3684, %v3668
  %v3689 = vmul.f32 %v3685, %v3671
  %v3690 = vadd.f32 %v3660, %v3686
  %v3691 = vadd.f32 %v3663, %v3687
  %v3692 = vadd.f32 %v3668, %v3688
  %v3693 = vadd.f32 %v3671, %v3689
  %v3694 = vmul.f32 %v3690, 0.7978846
  %v3695 = vmul.f32 %v3691, 0.7978846
  %v3696 = vmul.f32 %v3692, 0.7978846
  %v3697 = vmul.f32 %v3693, 0.7978846
  %v3698 = vtanh.pop %v3694
  %v3699 = vtanh.pop %v3695
  %v3700 = vtanh.pop %v3696
  %v3701 = vtanh.pop %v3697
  %v3702 = vadd.f32 %v3698, 1.0
  %v3703 = vadd.f32 %v3699, 1.0
  %v3704 = vadd.f32 %v3700, 1.0
  %v3705 = vadd.f32 %v3701, 1.0
  %v3706 = vmul.f32 %v3674, %v3702
  %v3707 = vmul.f32 %v3675, %v3703
  %v3708 = vmul.f32 %v3676, %v3704
  %v3709 = vmul.f32 %v3677, %v3705
  %v3710 = vpack.c.bf16 %v3707, %v3706
  %v3711 = vpack.c.bf16 %v3709, %v3708
  %v3712 = vld [vmem:[%s14] sm:$0xf]
  %v3713 = vld [vmem:[%s14 + $0x4] sm:$0xf]
  %v3714 = vld [vmem:[%s14 + $0x8] sm:$0xf]
  %v3715 = vld [vmem:[%s14 + $0xc] sm:$0xf]
  %v3716 = vld [vmem:[%s14 + $0x10] sm:$0xf]
  %v3717 = vld [vmem:[%s14 + $0x14] sm:$0xf]
  %v3718 = vld [vmem:[%s14 + $0x18] sm:$0xf]
  %v3719 = vld [vmem:[%s14 + $0x1c] sm:$0xf]
  %v3728 = vunpack.c.l.b16 %v3712
  %v3729 = vunpack.c.l.b16 %v3713
  %v3730 = vunpack.c.l.b16 %v3714
  %v3731 = vunpack.c.l.b16 %v3715
  %v3732 = vunpack.c.l.b16 %v3716
  %v3733 = vunpack.c.l.b16 %v3717
  %v3734 = vunpack.c.l.b16 %v3718
  %v3735 = vunpack.c.l.b16 %v3719
  %v3736 = vpack.c.b16 %v3729, %v3728
  %v3737 = vpack.c.b16 %v3731, %v3730
  %v3738 = vpack.c.b16 %v3733, %v3732
  %v3739 = vpack.c.b16 %v3735, %v3734
  %vm3744 = vcmask 523264
  %v3746 = vsel %vm3744, %v3710, 0
  %v3749 = vsel %vm3744, %v3711, 0
  %3751 = vmatprep.subr.bf16.mxu0 0
  %3752 = vmatpush1.bf16.msra.mxu0 0
  %3753 = vmatprep.subr.bf16.mxu0 0
  %3754 = vmatpush1.bf16.msra.mxu0 0
  %3755 = vmatprep.subr.bf16.mxu0 0
  %3756 = vmatpush1.bf16.msra.mxu0 0
  %3757 = vmatprep.subr.bf16.mxu0 0
  %3758 = vmatpush1.bf16.msra.mxu0 0
  %3759 = vmatprep.subr.bf16.mxu0 0
  %3760 = vmatpush1.bf16.msra.mxu0 %v3739
  %3761 = vmatprep.subr.bf16.mxu0 0
  %3762 = vmatpush1.bf16.msra.mxu0 %v3738
  %3763 = vmatprep.subr.bf16.mxu0 0
  %3764 = vmatpush1.bf16.msra.mxu0 %v3737
  %3765 = vmatprep.subr.bf16.mxu0 0
  %3766 = vmatpush1.bf16.msra.mxu0 %v3736
  %3767 = vmatprep.subr.bf16.mxu0 0
  %3768 = vmatpush2.bf16.msra.mxu0 0
  %3769 = vmatprep.subr.bf16.mxu0 0
  %3770 = vmatpush2.bf16.msra.mxu0 0
  %3771 = vmatprep.subr.bf16.mxu0 0
  %3772 = vmatpush2.bf16.msra.mxu0 0
  %3773 = vmatprep.subr.bf16.mxu0 0
  %3774 = vmatpush2.bf16.msra.mxu0 0
  %3775 = vmatprep.subr.bf16.mxu0 0
  %3776 = vmatpush2.bf16.msra.mxu0 0
  %3777 = vmatprep.subr.bf16.mxu0 0
  %3778 = vmatpush2.bf16.msra.mxu0 0
  %3779 = vmatprep.subr.bf16.mxu0 0
  %3780 = vmatpush2.bf16.msra.mxu0 0
  %3781 = vmatprep.subr.bf16.mxu0 0
  %3782 = vmatpush2.bf16.msra.mxu0 0
  %3783 = vmatprep.mubr.bf16.mxu0 0
  %3784 = vmatmul.mubr.bf16.gmra.mxu0 %v3746
  %v3785 = vpop.f32.mrf.mxu0
  %v3786 = vadd.f32 0.0, %v3785
  %v3787 = vpop.f32.mrf.mxu0
  %v3788 = vpop.f32.mrf.mxu0
  %v3789 = vadd.f32 0.0, %v3788
  %v3790 = vpop.f32.mrf.mxu0
  %3791 = vmatprep.mubr.bf16.mxu0 0
  %3792 = vmatmul.mubr.bf16.gmra.mxu0 %v3749
  %v3793 = vpop.f32.mrf.mxu0
  %v3794 = vadd.f32 0.0, %v3793
  %v3795 = vpop.f32.mrf.mxu0
  %v3796 = vpop.f32.mrf.mxu0
  %v3797 = vadd.f32 0.0, %v3796
  %v3798 = vpop.f32.mrf.mxu0
  %3799 = vdwg.mxu0
  %v3800 = vadd.f32 %v3516, %v3786
  %v3801 = vadd.f32 %v3517, %v3789
  %v3802 = vadd.f32 %v3518, %v3794
  %v3803 = vadd.f32 %v3519, %v3797
  %v3804 = vld [vmem:[%s15] sm:$0x1]
  %v3806 = vlaneseq
  %v3807 = vshrl.u32 %v3806, 7
  %v3808 = vsub.s32 0, %v3807
  %v3809 = vrot.slane %v3804, %v3808
  %v3811 = vadd.f32 %v3800, %v3809
  %v3812 = vadd.f32 %v3801, %v3809
  %v3813 = vadd.f32 %v3802, %v3809
  %v3814 = vadd.f32 %v3803, %v3809
  %s3815 = scalar_lea.vmem %s5, 1
  %v3816 = vld [vmem:[%s3815] sm:$0x1]
  %s3817 = scalar_lea.vmem %s6, 1
  %v3818 = vld [vmem:[%s3817] sm:$0x1]
  %v3819 = vsel %vm2486, %v3811, 0.0
  %3820 = vadd.xlane.f32.xlu0 %v3819
  %v3821 = vpop.xlane.xlu0 %3820
  %v3822 = vsel %vm2486, %v3812, 0.0
  %3823 = vadd.xlane.f32.xlu0 %v3822
  %v3824 = vpop.xlane.xlu0 %3823
  %v3825 = vsel %vm2486, %v3813, 0.0
  %3826 = vadd.xlane.f32.xlu0 %v3825
  %v3827 = vpop.xlane.xlu0 %3826
  %v3828 = vsel %vm2486, %v3814, 0.0
  %3829 = vadd.xlane.f32.xlu0 %v3828
  %v3830 = vpop.xlane.xlu0 %3829
  %v3831 = vmul.f32 %v3821, %v2499
  %v3832 = vmul.f32 %v3824, %v2499
  %v3833 = vmul.f32 %v3827, %v2499
  %v3834 = vmul.f32 %v3830, %v2499
  %v3835 = vsub.f32 %v3811, %v3831
  %v3836 = vsub.f32 %v3812, %v3832
  %v3837 = vsub.f32 %v3813, %v3833
  %v3838 = vsub.f32 %v3814, %v3834
  %v3839 = vmul.f32 %v3835, %v3835
  %v3840 = vmul.f32 %v3836, %v3836
  %v3841 = vmul.f32 %v3837, %v3837
  %v3842 = vmul.f32 %v3838, %v3838
  %v3843 = vsel %vm2486, %v3839, 0.0
  %3844 = vadd.xlane.f32.xlu0 %v3843
  %v3845 = vpop.xlane.xlu0 %3844
  %v3846 = vsel %vm2486, %v3840, 0.0
  %3847 = vadd.xlane.f32.xlu0 %v3846
  %v3848 = vpop.xlane.xlu0 %3847
  %v3849 = vsel %vm2486, %v3841, 0.0
  %3850 = vadd.xlane.f32.xlu0 %v3849
  %v3851 = vpop.xlane.xlu0 %3850
  %v3852 = vsel %vm2486, %v3842, 0.0
  %3853 = vadd.xlane.f32.xlu0 %v3852
  %v3854 = vpop.xlane.xlu0 %3853
  %v3855 = vmul.f32 %v3845, %v2499
  %v3856 = vmul.f32 %v3848, %v2499
  %v3857 = vmul.f32 %v3851, %v2499
  %v3858 = vmul.f32 %v3854, %v2499
  %v3859 = vadd.f32 %v3855, 1e-05
  %v3860 = vadd.f32 %v3856, 1e-05
  %v3861 = vadd.f32 %v3857, 1e-05
  %v3862 = vadd.f32 %v3858, 1e-05
  %v3863 = vrsqrt.pop %v3859
  %v3864 = vrsqrt.pop %v3860
  %v3865 = vrsqrt.pop %v3861
  %v3866 = vrsqrt.pop %v3862
  %v3867 = vmul.f32 %v3835, %v3863
  %v3868 = vmul.f32 %v3836, %v3864
  %v3869 = vmul.f32 %v3837, %v3865
  %v3870 = vmul.f32 %v3838, %v3866
  %v3872 = vlaneseq
  %v3873 = vshrl.u32 %v3872, 7
  %v3874 = vsub.s32 0, %v3873
  %v3875 = vrot.slane %v3816, %v3874
  %v3877 = vmul.f32 %v3867, %v3875
  %v3878 = vmul.f32 %v3868, %v3875
  %v3879 = vmul.f32 %v3869, %v3875
  %v3880 = vmul.f32 %v3870, %v3875
  %v3882 = vlaneseq
  %v3883 = vshrl.u32 %v3882, 7
  %v3884 = vsub.s32 0, %v3883
  %v3885 = vrot.slane %v3818, %v3884
  %v3887 = vadd.f32 %v3877, %v3885
  %v3888 = vadd.f32 %v3878, %v3885
  %v3889 = vadd.f32 %v3879, %v3885
  %v3890 = vadd.f32 %v3880, %v3885
  %v3891 = vpack.c.bf16 %v3888, %v3887
  %v3892 = vpack.c.bf16 %v3890, %v3889
  %s3893 = scalar_lea.vmem %s7, 16
  %v3894 = vld [vmem:[%s3893] sm:$0xf]
  %v3895 = vld [vmem:[%s3893 + $0x4] sm:$0xf]
  %v3896 = vld [vmem:[%s3893 + $0x8] sm:$0xf]
  %v3897 = vld [vmem:[%s3893 + $0xc] sm:$0xf]
  %v3902 = vunpack.c.l.b16 %v3894
  %v3903 = vunpack.c.l.b16 %v3895
  %v3904 = vunpack.c.l.b16 %v3896
  %v3905 = vunpack.c.l.b16 %v3897
  %v3906 = vpack.c.b16 %v3903, %v3902
  %v3907 = vpack.c.b16 %v3905, %v3904
  %v3911 = vsel %vm2486, %v3891, 0
  %v3914 = vsel %vm2486, %v3892, 0
  %3916 = vmatprep.subr.bf16.mxu0 0
  %3917 = vmatpush1.bf16.msra.mxu0 0
  %3918 = vmatprep.subr.bf16.mxu0 0
  %3919 = vmatpush1.bf16.msra.mxu0 0
  %3920 = vmatprep.subr.bf16.mxu0 0
  %3921 = vmatpush1.bf16.msra.mxu0 0
  %3922 = vmatprep.subr.bf16.mxu0 0
  %3923 = vmatpush1.bf16.msra.mxu0 0
  %3924 = vmatprep.subr.bf16.mxu0 0
  %3925 = vmatpush1.bf16.msra.mxu0 0
  %3926 = vmatprep.subr.bf16.mxu0 0
  %3927 = vmatpush1.bf16.msra.mxu0 0
  %3928 = vmatprep.subr.bf16.mxu0 0
  %3929 = vmatpush1.bf16.msra.mxu0 %v3907
  %3930 = vmatprep.subr.bf16.mxu0 0
  %3931 = vmatpush1.bf16.msra.mxu0 %v3906
  %3932 = vmatprep.subr.bf16.mxu0 0
  %3933 = vmatpush2.bf16.msra.mxu0 0
  %3934 = vmatprep.subr.bf16.mxu0 0
  %3935 = vmatpush2.bf16.msra.mxu0 0
  %3936 = vmatprep.subr.bf16.mxu0 0
  %3937 = vmatpush2.bf16.msra.mxu0 0
  %3938 = vmatprep.subr.bf16.mxu0 0
  %3939 = vmatpush2.bf16.msra.mxu0 0
  %3940 = vmatprep.subr.bf16.mxu0 0
  %3941 = vmatpush2.bf16.msra.mxu0 0
  %3942 = vmatprep.subr.bf16.mxu0 0
  %3943 = vmatpush2.bf16.msra.mxu0 0
  %3944 = vmatprep.subr.bf16.mxu0 0
  %3945 = vmatpush2.bf16.msra.mxu0 0
  %3946 = vmatprep.subr.bf16.mxu0 0
  %3947 = vmatpush2.bf16.msra.mxu0 0
  %3948 = vmatprep.mubr.bf16.mxu0 0
  %3949 = vmatmul.mubr.bf16.gmra.mxu0 %v3911
  %v3950 = vpop.f32.mrf.mxu0
  %v3951 = vadd.f32 0.0, %v3950
  %v3952 = vpop.f32.mrf.mxu0
  %v3953 = vpop.f32.mrf.mxu0
  %v3954 = vadd.f32 0.0, %v3953
  %v3955 = vpop.f32.mrf.mxu0
  %3956 = vmatprep.mubr.bf16.mxu0 0
  %3957 = vmatmul.mubr.bf16.gmra.mxu0 %v3914
  %v3958 = vpop.f32.mrf.mxu0
  %v3959 = vadd.f32 0.0, %v3958
  %v3960 = vpop.f32.mrf.mxu0
  %v3961 = vpop.f32.mrf.mxu0
  %v3962 = vadd.f32 0.0, %v3961
  %v3963 = vpop.f32.mrf.mxu0
  %3964 = vdwg.mxu0
  %v3965 = vpack.c.bf16 %v3954, %v3951
  %v3966 = vpack.c.bf16 %v3962, %v3959
  %3969 = vrot.lane.b32.xlu0 %v3965, 96
  %v3970 = vpop.permute.xlu0 %3969
  %3971 = vrot.lane.b32.xlu0 %v3966, 96
  %v3972 = vpop.permute.xlu0 %3971
  %v3974 = vsel %vm2641, %v3965, 0
  %v3977 = vsel %vm2641, %v3966, 0
  %v3980 = vsel %vm2641, %v3970, 0
  %v3983 = vsel %vm2641, %v3972, 0
  %3985 = vmatprep.subr.bf16.mxu0 0
  %3986 = vmatpush1.bf16.xpose.msra.mxu0 0
  %3987 = vmatprep.subr.bf16.mxu0 0
  %3988 = vmatpush1.bf16.xpose.msra.mxu0 0
  %3989 = vmatprep.subr.bf16.mxu0 0
  %3990 = vmatpush1.bf16.xpose.msra.mxu0 0
  %3991 = vmatprep.subr.bf16.mxu0 0
  %3992 = vmatpush1.bf16.xpose.msra.mxu0 0
  %3993 = vmatprep.subr.bf16.mxu0 0
  %3994 = vmatpush1.bf16.xpose.msra.mxu0 0
  %3995 = vmatprep.subr.bf16.mxu0 0
  %3996 = vmatpush1.bf16.xpose.msra.mxu0 0
  %3997 = vmatprep.subr.bf16.mxu0 0
  %3998 = vmatpush1.bf16.xpose.msra.mxu0 %v3983
  %3999 = vmatprep.subr.bf16.mxu0 0
  %4000 = vmatpush1.bf16.xpose.msra.mxu0 %v3980
  %4001 = vmatprep.subr.bf16.mxu0 0
  %4002 = vmatpush2.bf16.xpose.msra.mxu0 0
  %4003 = vmatprep.subr.bf16.mxu0 0
  %4004 = vmatpush2.bf16.xpose.msra.mxu0 0
  %4005 = vmatprep.subr.bf16.mxu0 0
  %4006 = vmatpush2.bf16.xpose.msra.mxu0 0
  %4007 = vmatprep.subr.bf16.mxu0 0
  %4008 = vmatpush2.bf16.xpose.msra.mxu0 0
  %4009 = vmatprep.subr.bf16.mxu0 0
  %4010 = vmatpush2.bf16.xpose.msra.mxu0 0
  %4011 = vmatprep.subr.bf16.mxu0 0
  %4012 = vmatpush2.bf16.xpose.msra.mxu0 0
  %4013 = vmatprep.subr.bf16.mxu0 0
  %4014 = vmatpush2.bf16.xpose.msra.mxu0 0
  %4015 = vmatprep.subr.bf16.mxu0 0
  %4016 = vmatpush2.bf16.xpose.msra.mxu0 0
  %4017 = vmatprep.mubr.bf16.mxu0 0
  %4018 = vmatmul.mubr.bf16.gmra.mxu0 %v3974
  %v4019 = vpop.f32.mrf.mxu0
  %v4020 = vadd.f32 0.0, %v4019
  %v4021 = vpop.f32.mrf.mxu0
  %v4022 = vpop.f32.mrf.mxu0
  %v4023 = vadd.f32 0.0, %v4022
  %v4024 = vpop.f32.mrf.mxu0
  %4025 = vmatprep.mubr.bf16.mxu0 0
  %4026 = vmatmul.mubr.bf16.gmra.mxu0 %v3977
  %v4027 = vpop.f32.mrf.mxu0
  %v4028 = vadd.f32 0.0, %v4027
  %v4029 = vpop.f32.mrf.mxu0
  %v4030 = vpop.f32.mrf.mxu0
  %v4031 = vadd.f32 0.0, %v4030
  %v4032 = vpop.f32.mrf.mxu0
  %4033 = vdwg.mxu0
  %v4034 = vmul.f32 %v4020, 0.35355338
  %v4035 = vmul.f32 %v4023, 0.35355338
  %v4036 = vmul.f32 %v4028, 0.35355338
  %v4037 = vmul.f32 %v4031, 0.35355338
  %v4038 = vadd.f32 %v4034, %v2480
  %v4039 = vadd.f32 %v4035, %v2481
  %v4040 = vadd.f32 %v4036, %v2482
  %v4041 = vadd.f32 %v4037, %v2483
  %v4042 = vsel %vm2486, %v4038, -inf
  %4043 = vmax.xlane.f32.xlu0 %v4042
  %v4044 = vpop.xlane.xlu0 %4043
  %v4045 = vsel %vm2486, %v4039, -inf
  %4046 = vmax.xlane.f32.xlu0 %v4045
  %v4047 = vpop.xlane.xlu0 %4046
  %v4048 = vsel %vm2486, %v4040, -inf
  %4049 = vmax.xlane.f32.xlu0 %v4048
  %v4050 = vpop.xlane.xlu0 %4049
  %v4051 = vsel %vm2486, %v4041, -inf
  %4052 = vmax.xlane.f32.xlu0 %v4051
  %v4053 = vpop.xlane.xlu0 %4052
  %v4054 = vsub.f32 %v4038, %v4044
  %v4055 = vsub.f32 %v4039, %v4047
  %v4056 = vsub.f32 %v4040, %v4050
  %v4057 = vsub.f32 %v4041, %v4053
  %v4058 = vmul.f32 %v4054, 1.442695
  %v4059 = vpow.pop %v4058
  %v4060 = vmul.f32 %v4055, 1.442695
  %v4061 = vpow.pop %v4060
  %v4062 = vmul.f32 %v4056, 1.442695
  %v4063 = vpow.pop %v4062
  %v4064 = vmul.f32 %v4057, 1.442695
  %v4065 = vpow.pop %v4064
  %v4066 = vsel %vm2486, %v4059, 0.0
  %4067 = vadd.xlane.f32.xlu0 %v4066
  %v4068 = vpop.xlane.xlu0 %4067
  %v4069 = vsel %vm2486, %v4061, 0.0
  %4070 = vadd.xlane.f32.xlu0 %v4069
  %v4071 = vpop.xlane.xlu0 %4070
  %v4072 = vsel %vm2486, %v4063, 0.0
  %4073 = vadd.xlane.f32.xlu0 %v4072
  %v4074 = vpop.xlane.xlu0 %4073
  %v4075 = vsel %vm2486, %v4065, 0.0
  %4076 = vadd.xlane.f32.xlu0 %v4075
  %v4077 = vpop.xlane.xlu0 %4076
  %v4078 = vrcp.pop %v4068
  %v4079 = vrcp.pop %v4071
  %v4080 = vrcp.pop %v4074
  %v4081 = vrcp.pop %v4077
  %v4082 = vmul.f32 %v4059, %v4078
  %v4083 = vmul.f32 %v4061, %v4079
  %v4084 = vmul.f32 %v4063, %v4080
  %v4085 = vmul.f32 %v4065, %v4081
  %v4086 = vpack.c.bf16 %v4083, %v4082
  %v4087 = vpack.c.bf16 %v4085, %v4084
  %4088 = vrot.lane.b32.xlu0 %v3965, 64
  %v4089 = vpop.permute.xlu0 %4088
  %4090 = vrot.lane.b32.xlu0 %v3966, 64
  %v4091 = vpop.permute.xlu0 %4090
  %v4095 = vsel %vm2486, %v4086, 0
  %v4098 = vsel %vm2486, %v4087, 0
  %4100 = vmatprep.subr.bf16.mxu0 0
  %4101 = vmatpush1.bf16.msra.mxu0 0
  %4102 = vmatprep.subr.bf16.mxu0 0
  %4103 = vmatpush1.bf16.msra.mxu0 0
  %4104 = vmatprep.subr.bf16.mxu0 0
  %4105 = vmatpush1.bf16.msra.mxu0 0
  %4106 = vmatprep.subr.bf16.mxu0 0
  %4107 = vmatpush1.bf16.msra.mxu0 0
  %4108 = vmatprep.subr.bf16.mxu0 0
  %4109 = vmatpush1.bf16.msra.mxu0 0
  %4110 = vmatprep.subr.bf16.mxu0 0
  %4111 = vmatpush1.bf16.msra.mxu0 0
  %4112 = vmatprep.subr.bf16.mxu0 0
  %4113 = vmatpush1.bf16.msra.mxu0 %v4091
  %4114 = vmatprep.subr.bf16.mxu0 0
  %4115 = vmatpush1.bf16.msra.mxu0 %v4089
  %4116 = vmatprep.subr.bf16.mxu0 0
  %4117 = vmatpush2.bf16.msra.mxu0 0
  %4118 = vmatprep.subr.bf16.mxu0 0
  %4119 = vmatpush2.bf16.msra.mxu0 0
  %4120 = vmatprep.subr.bf16.mxu0 0
  %4121 = vmatpush2.bf16.msra.mxu0 0
  %4122 = vmatprep.subr.bf16.mxu0 0
  %4123 = vmatpush2.bf16.msra.mxu0 0
  %4124 = vmatprep.subr.bf16.mxu0 0
  %4125 = vmatpush2.bf16.msra.mxu0 0
  %4126 = vmatprep.subr.bf16.mxu0 0
  %4127 = vmatpush2.bf16.msra.mxu0 0
  %4128 = vmatprep.subr.bf16.mxu0 0
  %4129 = vmatpush2.bf16.msra.mxu0 0
  %4130 = vmatprep.subr.bf16.mxu0 0
  %4131 = vmatpush2.bf16.msra.mxu0 0
  %4132 = vmatprep.mubr.bf16.mxu0 0
  %4133 = vmatmul.mubr.bf16.gmra.mxu0 %v4095
  %v4134 = vpop.f32.mrf.mxu0
  %v4135 = vadd.f32 0.0, %v4134
  %v4136 = vpop.f32.mrf.mxu0
  %v4137 = vpop.f32.mrf.mxu0
  %v4138 = vadd.f32 0.0, %v4137
  %v4139 = vpop.f32.mrf.mxu0
  %4140 = vmatprep.mubr.bf16.mxu0 0
  %4141 = vmatmul.mubr.bf16.gmra.mxu0 %v4098
  %v4142 = vpop.f32.mrf.mxu0
  %v4143 = vadd.f32 0.0, %v4142
  %v4144 = vpop.f32.mrf.mxu0
  %v4145 = vpop.f32.mrf.mxu0
  %v4146 = vadd.f32 0.0, %v4145
  %v4147 = vpop.f32.mrf.mxu0
  %4148 = vdwg.mxu0
  %4149 = vrot.lane.b32.xlu0 %v3965, 120
  %v4150 = vpop.permute.xlu0 %4149
  %4151 = vrot.lane.b32.xlu0 %v3966, 120
  %v4152 = vpop.permute.xlu0 %4151
  %4153 = vrot.lane.b32.xlu0 %v3965, 88
  %v4154 = vpop.permute.xlu0 %4153
  %4155 = vrot.lane.b32.xlu0 %v3966, 88
  %v4156 = vpop.permute.xlu0 %4155
  %v4158 = vsel %vm2641, %v4150, 0
  %v4161 = vsel %vm2641, %v4152, 0
  %v4164 = vsel %vm2641, %v4154, 0
  %v4167 = vsel %vm2641, %v4156, 0
  %4169 = vmatprep.subr.bf16.mxu0 0
  %4170 = vmatpush1.bf16.xpose.msra.mxu0 0
  %4171 = vmatprep.subr.bf16.mxu0 0
  %4172 = vmatpush1.bf16.xpose.msra.mxu0 0
  %4173 = vmatprep.subr.bf16.mxu0 0
  %4174 = vmatpush1.bf16.xpose.msra.mxu0 0
  %4175 = vmatprep.subr.bf16.mxu0 0
  %4176 = vmatpush1.bf16.xpose.msra.mxu0 0
  %4177 = vmatprep.subr.bf16.mxu0 0
  %4178 = vmatpush1.bf16.xpose.msra.mxu0 0
  %4179 = vmatprep.subr.bf16.mxu0 0
  %4180 = vmatpush1.bf16.xpose.msra.mxu0 0
  %4181 = vmatprep.subr.bf16.mxu0 0
  %4182 = vmatpush1.bf16.xpose.msra.mxu0 %v4167
  %4183 = vmatprep.subr.bf16.mxu0 0
  %4184 = vmatpush1.bf16.xpose.msra.mxu0 %v4164
  %4185 = vmatprep.subr.bf16.mxu0 0
  %4186 = vmatpush2.bf16.xpose.msra.mxu0 0
  %4187 = vmatprep.subr.bf16.mxu0 0
  %4188 = vmatpush2.bf16.xpose.msra.mxu0 0
  %4189 = vmatprep.subr.bf16.mxu0 0
  %4190 = vmatpush2.bf16.xpose.msra.mxu0 0
  %4191 = vmatprep.subr.bf16.mxu0 0
  %4192 = vmatpush2.bf16.xpose.msra.mxu0 0
  %4193 = vmatprep.subr.bf16.mxu0 0
  %4194 = vmatpush2.bf16.xpose.msra.mxu0 0
  %4195 = vmatprep.subr.bf16.mxu0 0
  %4196 = vmatpush2.bf16.xpose.msra.mxu0 0
  %4197 = vmatprep.subr.bf16.mxu0 0
  %4198 = vmatpush2.bf16.xpose.msra.mxu0 0
  %4199 = vmatprep.subr.bf16.mxu0 0
  %4200 = vmatpush2.bf16.xpose.msra.mxu0 0
  %4201 = vmatprep.mubr.bf16.mxu0 0
  %4202 = vmatmul.mubr.bf16.gmra.mxu0 %v4158
  %v4203 = vpop.f32.mrf.mxu0
  %v4204 = vadd.f32 0.0, %v4203
  %v4205 = vpop.f32.mrf.mxu0
  %v4206 = vpop.f32.mrf.mxu0
  %v4207 = vadd.f32 0.0, %v4206
  %v4208 = vpop.f32.mrf.mxu0
  %4209 = vmatprep.mubr.bf16.mxu0 0
  %4210 = vmatmul.mubr.bf16.gmra.mxu0 %v4161
  %v4211 = vpop.f32.mrf.mxu0
  %v4212 = vadd.f32 0.0, %v4211
  %v4213 = vpop.f32.mrf.mxu0
  %v4214 = vpop.f32.mrf.mxu0
  %v4215 = vadd.f32 0.0, %v4214
  %v4216 = vpop.f32.mrf.mxu0
  %4217 = vdwg.mxu0
  %v4218 = vmul.f32 %v4204, 0.35355338
  %v4219 = vmul.f32 %v4207, 0.35355338
  %v4220 = vmul.f32 %v4212, 0.35355338
  %v4221 = vmul.f32 %v4215, 0.35355338
  %v4222 = vadd.f32 %v4218, %v2480
  %v4223 = vadd.f32 %v4219, %v2481
  %v4224 = vadd.f32 %v4220, %v2482
  %v4225 = vadd.f32 %v4221, %v2483
  %v4226 = vsel %vm2486, %v4222, -inf
  %4227 = vmax.xlane.f32.xlu0 %v4226
  %v4228 = vpop.xlane.xlu0 %4227
  %v4229 = vsel %vm2486, %v4223, -inf
  %4230 = vmax.xlane.f32.xlu0 %v4229
  %v4231 = vpop.xlane.xlu0 %4230
  %v4232 = vsel %vm2486, %v4224, -inf
  %4233 = vmax.xlane.f32.xlu0 %v4232
  %v4234 = vpop.xlane.xlu0 %4233
  %v4235 = vsel %vm2486, %v4225, -inf
  %4236 = vmax.xlane.f32.xlu0 %v4235
  %v4237 = vpop.xlane.xlu0 %4236
  %v4238 = vsub.f32 %v4222, %v4228
  %v4239 = vsub.f32 %v4223, %v4231
  %v4240 = vsub.f32 %v4224, %v4234
  %v4241 = vsub.f32 %v4225, %v4237
  %v4242 = vmul.f32 %v4238, 1.442695
  %v4243 = vpow.pop %v4242
  %v4244 = vmul.f32 %v4239, 1.442695
  %v4245 = vpow.pop %v4244
  %v4246 = vmul.f32 %v4240, 1.442695
  %v4247 = vpow.pop %v4246
  %v4248 = vmul.f32 %v4241, 1.442695
  %v4249 = vpow.pop %v4248
  %v4250 = vsel %vm2486, %v4243, 0.0
  %4251 = vadd.xlane.f32.xlu0 %v4250
  %v4252 = vpop.xlane.xlu0 %4251
  %v4253 = vsel %vm2486, %v4245, 0.0
  %4254 = vadd.xlane.f32.xlu0 %v4253
  %v4255 = vpop.xlane.xlu0 %4254
  %v4256 = vsel %vm2486, %v4247, 0.0
  %4257 = vadd.xlane.f32.xlu0 %v4256
  %v4258 = vpop.xlane.xlu0 %4257
  %v4259 = vsel %vm2486, %v4249, 0.0
  %4260 = vadd.xlane.f32.xlu0 %v4259
  %v4261 = vpop.xlane.xlu0 %4260
  %v4262 = vrcp.pop %v4252
  %v4263 = vrcp.pop %v4255
  %v4264 = vrcp.pop %v4258
  %v4265 = vrcp.pop %v4261
  %v4266 = vmul.f32 %v4243, %v4262
  %v4267 = vmul.f32 %v4245, %v4263
  %v4268 = vmul.f32 %v4247, %v4264
  %v4269 = vmul.f32 %v4249, %v4265
  %v4270 = vpack.c.bf16 %v4267, %v4266
  %v4271 = vpack.c.bf16 %v4269, %v4268
  %4272 = vrot.lane.b32.xlu0 %v3965, 56
  %v4273 = vpop.permute.xlu0 %4272
  %4274 = vrot.lane.b32.xlu0 %v3966, 56
  %v4275 = vpop.permute.xlu0 %4274
  %v4279 = vsel %vm2486, %v4270, 0
  %v4282 = vsel %vm2486, %v4271, 0
  %4284 = vmatprep.subr.bf16.mxu0 0
  %4285 = vmatpush1.bf16.msra.mxu0 0
  %4286 = vmatprep.subr.bf16.mxu0 0
  %4287 = vmatpush1.bf16.msra.mxu0 0
  %4288 = vmatprep.subr.bf16.mxu0 0
  %4289 = vmatpush1.bf16.msra.mxu0 0
  %4290 = vmatprep.subr.bf16.mxu0 0
  %4291 = vmatpush1.bf16.msra.mxu0 0
  %4292 = vmatprep.subr.bf16.mxu0 0
  %4293 = vmatpush1.bf16.msra.mxu0 0
  %4294 = vmatprep.subr.bf16.mxu0 0
  %4295 = vmatpush1.bf16.msra.mxu0 0
  %4296 = vmatprep.subr.bf16.mxu0 0
  %4297 = vmatpush1.bf16.msra.mxu0 %v4275
  %4298 = vmatprep.subr.bf16.mxu0 0
  %4299 = vmatpush1.bf16.msra.mxu0 %v4273
  %4300 = vmatprep.subr.bf16.mxu0 0
  %4301 = vmatpush2.bf16.msra.mxu0 0
  %4302 = vmatprep.subr.bf16.mxu0 0
  %4303 = vmatpush2.bf16.msra.mxu0 0
  %4304 = vmatprep.subr.bf16.mxu0 0
  %4305 = vmatpush2.bf16.msra.mxu0 0
  %4306 = vmatprep.subr.bf16.mxu0 0
  %4307 = vmatpush2.bf16.msra.mxu0 0
  %4308 = vmatprep.subr.bf16.mxu0 0
  %4309 = vmatpush2.bf16.msra.mxu0 0
  %4310 = vmatprep.subr.bf16.mxu0 0
  %4311 = vmatpush2.bf16.msra.mxu0 0
  %4312 = vmatprep.subr.bf16.mxu0 0
  %4313 = vmatpush2.bf16.msra.mxu0 0
  %4314 = vmatprep.subr.bf16.mxu0 0
  %4315 = vmatpush2.bf16.msra.mxu0 0
  %4316 = vmatprep.mubr.bf16.mxu0 0
  %4317 = vmatmul.mubr.bf16.gmra.mxu0 %v4279
  %v4318 = vpop.f32.mrf.mxu0
  %v4319 = vadd.f32 0.0, %v4318
  %v4320 = vpop.f32.mrf.mxu0
  %v4321 = vpop.f32.mrf.mxu0
  %v4322 = vadd.f32 0.0, %v4321
  %v4323 = vpop.f32.mrf.mxu0
  %4324 = vmatprep.mubr.bf16.mxu0 0
  %4325 = vmatmul.mubr.bf16.gmra.mxu0 %v4282
  %v4326 = vpop.f32.mrf.mxu0
  %v4327 = vadd.f32 0.0, %v4326
  %v4328 = vpop.f32.mrf.mxu0
  %v4329 = vpop.f32.mrf.mxu0
  %v4330 = vadd.f32 0.0, %v4329
  %v4331 = vpop.f32.mrf.mxu0
  %4332 = vdwg.mxu0
  %4333 = vrot.lane.b32.xlu0 %v3965, 112
  %v4334 = vpop.permute.xlu0 %4333
  %4335 = vrot.lane.b32.xlu0 %v3966, 112
  %v4336 = vpop.permute.xlu0 %4335
  %4337 = vrot.lane.b32.xlu0 %v3965, 80
  %v4338 = vpop.permute.xlu0 %4337
  %4339 = vrot.lane.b32.xlu0 %v3966, 80
  %v4340 = vpop.permute.xlu0 %4339
  %v4342 = vsel %vm2641, %v4334, 0
  %v4345 = vsel %vm2641, %v4336, 0
  %v4348 = vsel %vm2641, %v4338, 0
  %v4351 = vsel %vm2641, %v4340, 0
  %4353 = vmatprep.subr.bf16.mxu0 0
  %4354 = vmatpush1.bf16.xpose.msra.mxu0 0
  %4355 = vmatprep.subr.bf16.mxu0 0
  %4356 = vmatpush1.bf16.xpose.msra.mxu0 0
  %4357 = vmatprep.subr.bf16.mxu0 0
  %4358 = vmatpush1.bf16.xpose.msra.mxu0 0
  %4359 = vmatprep.subr.bf16.mxu0 0
  %4360 = vmatpush1.bf16.xpose.msra.mxu0 0
  %4361 = vmatprep.subr.bf16.mxu0 0
  %4362 = vmatpush1.bf16.xpose.msra.mxu0 0
  %4363 = vmatprep.subr.bf16.mxu0 0
  %4364 = vmatpush1.bf16.xpose.msra.mxu0 0
  %4365 = vmatprep.subr.bf16.mxu0 0
  %4366 = vmatpush1.bf16.xpose.msra.mxu0 %v4351
  %4367 = vmatprep.subr.bf16.mxu0 0
  %4368 = vmatpush1.bf16.xpose.msra.mxu0 %v4348
  %4369 = vmatprep.subr.bf16.mxu0 0
  %4370 = vmatpush2.bf16.xpose.msra.mxu0 0
  %4371 = vmatprep.subr.bf16.mxu0 0
  %4372 = vmatpush2.bf16.xpose.msra.mxu0 0
  %4373 = vmatprep.subr.bf16.mxu0 0
  %4374 = vmatpush2.bf16.xpose.msra.mxu0 0
  %4375 = vmatprep.subr.bf16.mxu0 0
  %4376 = vmatpush2.bf16.xpose.msra.mxu0 0
  %4377 = vmatprep.subr.bf16.mxu0 0
  %4378 = vmatpush2.bf16.xpose.msra.mxu0 0
  %4379 = vmatprep.subr.bf16.mxu0 0
  %4380 = vmatpush2.bf16.xpose.msra.mxu0 0
  %4381 = vmatprep.subr.bf16.mxu0 0
  %4382 = vmatpush2.bf16.xpose.msra.mxu0 0
  %4383 = vmatprep.subr.bf16.mxu0 0
  %4384 = vmatpush2.bf16.xpose.msra.mxu0 0
  %4385 = vmatprep.mubr.bf16.mxu0 0
  %4386 = vmatmul.mubr.bf16.gmra.mxu0 %v4342
  %v4387 = vpop.f32.mrf.mxu0
  %v4388 = vadd.f32 0.0, %v4387
  %v4389 = vpop.f32.mrf.mxu0
  %v4390 = vpop.f32.mrf.mxu0
  %v4391 = vadd.f32 0.0, %v4390
  %v4392 = vpop.f32.mrf.mxu0
  %4393 = vmatprep.mubr.bf16.mxu0 0
  %4394 = vmatmul.mubr.bf16.gmra.mxu0 %v4345
  %v4395 = vpop.f32.mrf.mxu0
  %v4396 = vadd.f32 0.0, %v4395
  %v4397 = vpop.f32.mrf.mxu0
  %v4398 = vpop.f32.mrf.mxu0
  %v4399 = vadd.f32 0.0, %v4398
  %v4400 = vpop.f32.mrf.mxu0
  %4401 = vdwg.mxu0
  %v4402 = vmul.f32 %v4388, 0.35355338
  %v4403 = vmul.f32 %v4391, 0.35355338
  %v4404 = vmul.f32 %v4396, 0.35355338
  %v4405 = vmul.f32 %v4399, 0.35355338
  %v4406 = vadd.f32 %v4402, %v2480
  %v4407 = vadd.f32 %v4403, %v2481
  %v4408 = vadd.f32 %v4404, %v2482
  %v4409 = vadd.f32 %v4405, %v2483
  %v4410 = vsel %vm2486, %v4406, -inf
  %4411 = vmax.xlane.f32.xlu0 %v4410
  %v4412 = vpop.xlane.xlu0 %4411
  %v4413 = vsel %vm2486, %v4407, -inf
  %4414 = vmax.xlane.f32.xlu0 %v4413
  %v4415 = vpop.xlane.xlu0 %4414
  %v4416 = vsel %vm2486, %v4408, -inf
  %4417 = vmax.xlane.f32.xlu0 %v4416
  %v4418 = vpop.xlane.xlu0 %4417
  %v4419 = vsel %vm2486, %v4409, -inf
  %4420 = vmax.xlane.f32.xlu0 %v4419
  %v4421 = vpop.xlane.xlu0 %4420
  %v4422 = vsub.f32 %v4406, %v4412
  %v4423 = vsub.f32 %v4407, %v4415
  %v4424 = vsub.f32 %v4408, %v4418
  %v4425 = vsub.f32 %v4409, %v4421
  %v4426 = vmul.f32 %v4422, 1.442695
  %v4427 = vpow.pop %v4426
  %v4428 = vmul.f32 %v4423, 1.442695
  %v4429 = vpow.pop %v4428
  %v4430 = vmul.f32 %v4424, 1.442695
  %v4431 = vpow.pop %v4430
  %v4432 = vmul.f32 %v4425, 1.442695
  %v4433 = vpow.pop %v4432
  %v4434 = vsel %vm2486, %v4427, 0.0
  %4435 = vadd.xlane.f32.xlu0 %v4434
  %v4436 = vpop.xlane.xlu0 %4435
  %v4437 = vsel %vm2486, %v4429, 0.0
  %4438 = vadd.xlane.f32.xlu0 %v4437
  %v4439 = vpop.xlane.xlu0 %4438
  %v4440 = vsel %vm2486, %v4431, 0.0
  %4441 = vadd.xlane.f32.xlu0 %v4440
  %v4442 = vpop.xlane.xlu0 %4441
  %v4443 = vsel %vm2486, %v4433, 0.0
  %4444 = vadd.xlane.f32.xlu0 %v4443
  %v4445 = vpop.xlane.xlu0 %4444
  %v4446 = vrcp.pop %v4436
  %v4447 = vrcp.pop %v4439
  %v4448 = vrcp.pop %v4442
  %v4449 = vrcp.pop %v4445
  %v4450 = vmul.f32 %v4427, %v4446
  %v4451 = vmul.f32 %v4429, %v4447
  %v4452 = vmul.f32 %v4431, %v4448
  %v4453 = vmul.f32 %v4433, %v4449
  %v4454 = vpack.c.bf16 %v4451, %v4450
  %v4455 = vpack.c.bf16 %v4453, %v4452
  %4456 = vrot.lane.b32.xlu0 %v3965, 48
  %v4457 = vpop.permute.xlu0 %4456
  %4458 = vrot.lane.b32.xlu0 %v3966, 48
  %v4459 = vpop.permute.xlu0 %4458
  %v4463 = vsel %vm2486, %v4454, 0
  %v4466 = vsel %vm2486, %v4455, 0
  %4468 = vmatprep.subr.bf16.mxu0 0
  %4469 = vmatpush1.bf16.msra.mxu0 0
  %4470 = vmatprep.subr.bf16.mxu0 0
  %4471 = vmatpush1.bf16.msra.mxu0 0
  %4472 = vmatprep.subr.bf16.mxu0 0
  %4473 = vmatpush1.bf16.msra.mxu0 0
  %4474 = vmatprep.subr.bf16.mxu0 0
  %4475 = vmatpush1.bf16.msra.mxu0 0
  %4476 = vmatprep.subr.bf16.mxu0 0
  %4477 = vmatpush1.bf16.msra.mxu0 0
  %4478 = vmatprep.subr.bf16.mxu0 0
  %4479 = vmatpush1.bf16.msra.mxu0 0
  %4480 = vmatprep.subr.bf16.mxu0 0
  %4481 = vmatpush1.bf16.msra.mxu0 %v4459
  %4482 = vmatprep.subr.bf16.mxu0 0
  %4483 = vmatpush1.bf16.msra.mxu0 %v4457
  %4484 = vmatprep.subr.bf16.mxu0 0
  %4485 = vmatpush2.bf16.msra.mxu0 0
  %4486 = vmatprep.subr.bf16.mxu0 0
  %4487 = vmatpush2.bf16.msra.mxu0 0
  %4488 = vmatprep.subr.bf16.mxu0 0
  %4489 = vmatpush2.bf16.msra.mxu0 0
  %4490 = vmatprep.subr.bf16.mxu0 0
  %4491 = vmatpush2.bf16.msra.mxu0 0
  %4492 = vmatprep.subr.bf16.mxu0 0
  %4493 = vmatpush2.bf16.msra.mxu0 0
  %4494 = vmatprep.subr.bf16.mxu0 0
  %4495 = vmatpush2.bf16.msra.mxu0 0
  %4496 = vmatprep.subr.bf16.mxu0 0
  %4497 = vmatpush2.bf16.msra.mxu0 0
  %4498 = vmatprep.subr.bf16.mxu0 0
  %4499 = vmatpush2.bf16.msra.mxu0 0
  %4500 = vmatprep.mubr.bf16.mxu0 0
  %4501 = vmatmul.mubr.bf16.gmra.mxu0 %v4463
  %v4502 = vpop.f32.mrf.mxu0
  %v4503 = vadd.f32 0.0, %v4502
  %v4504 = vpop.f32.mrf.mxu0
  %v4505 = vpop.f32.mrf.mxu0
  %v4506 = vadd.f32 0.0, %v4505
  %v4507 = vpop.f32.mrf.mxu0
  %4508 = vmatprep.mubr.bf16.mxu0 0
  %4509 = vmatmul.mubr.bf16.gmra.mxu0 %v4466
  %v4510 = vpop.f32.mrf.mxu0
  %v4511 = vadd.f32 0.0, %v4510
  %v4512 = vpop.f32.mrf.mxu0
  %v4513 = vpop.f32.mrf.mxu0
  %v4514 = vadd.f32 0.0, %v4513
  %v4515 = vpop.f32.mrf.mxu0
  %4516 = vdwg.mxu0
  %4517 = vrot.lane.b32.xlu0 %v3965, 104
  %v4518 = vpop.permute.xlu0 %4517
  %4519 = vrot.lane.b32.xlu0 %v3966, 104
  %v4520 = vpop.permute.xlu0 %4519
  %4521 = vrot.lane.b32.xlu0 %v3965, 72
  %v4522 = vpop.permute.xlu0 %4521
  %4523 = vrot.lane.b32.xlu0 %v3966, 72
  %v4524 = vpop.permute.xlu0 %4523
  %v4526 = vsel %vm2641, %v4518, 0
  %v4529 = vsel %vm2641, %v4520, 0
  %v4532 = vsel %vm2641, %v4522, 0
  %v4535 = vsel %vm2641, %v4524, 0
  %4537 = vmatprep.subr.bf16.mxu0 0
  %4538 = vmatpush1.bf16.xpose.msra.mxu0 0
  %4539 = vmatprep.subr.bf16.mxu0 0
  %4540 = vmatpush1.bf16.xpose.msra.mxu0 0
  %4541 = vmatprep.subr.bf16.mxu0 0
  %4542 = vmatpush1.bf16.xpose.msra.mxu0 0
  %4543 = vmatprep.subr.bf16.mxu0 0
  %4544 = vmatpush1.bf16.xpose.msra.mxu0 0
  %4545 = vmatprep.subr.bf16.mxu0 0
  %4546 = vmatpush1.bf16.xpose.msra.mxu0 0
  %4547 = vmatprep.subr.bf16.mxu0 0
  %4548 = vmatpush1.bf16.xpose.msra.mxu0 0
  %4549 = vmatprep.subr.bf16.mxu0 0
  %4550 = vmatpush1.bf16.xpose.msra.mxu0 %v4535
  %4551 = vmatprep.subr.bf16.mxu0 0
  %4552 = vmatpush1.bf16.xpose.msra.mxu0 %v4532
  %4553 = vmatprep.subr.bf16.mxu0 0
  %4554 = vmatpush2.bf16.xpose.msra.mxu0 0
  %4555 = vmatprep.subr.bf16.mxu0 0
  %4556 = vmatpush2.bf16.xpose.msra.mxu0 0
  %4557 = vmatprep.subr.bf16.mxu0 0
  %4558 = vmatpush2.bf16.xpose.msra.mxu0 0
  %4559 = vmatprep.subr.bf16.mxu0 0
  %4560 = vmatpush2.bf16.xpose.msra.mxu0 0
  %4561 = vmatprep.subr.bf16.mxu0 0
  %4562 = vmatpush2.bf16.xpose.msra.mxu0 0
  %4563 = vmatprep.subr.bf16.mxu0 0
  %4564 = vmatpush2.bf16.xpose.msra.mxu0 0
  %4565 = vmatprep.subr.bf16.mxu0 0
  %4566 = vmatpush2.bf16.xpose.msra.mxu0 0
  %4567 = vmatprep.subr.bf16.mxu0 0
  %4568 = vmatpush2.bf16.xpose.msra.mxu0 0
  %4569 = vmatprep.mubr.bf16.mxu0 0
  %4570 = vmatmul.mubr.bf16.gmra.mxu0 %v4526
  %v4571 = vpop.f32.mrf.mxu0
  %v4572 = vadd.f32 0.0, %v4571
  %v4573 = vpop.f32.mrf.mxu0
  %v4574 = vpop.f32.mrf.mxu0
  %v4575 = vadd.f32 0.0, %v4574
  %v4576 = vpop.f32.mrf.mxu0
  %4577 = vmatprep.mubr.bf16.mxu0 0
  %4578 = vmatmul.mubr.bf16.gmra.mxu0 %v4529
  %v4579 = vpop.f32.mrf.mxu0
  %v4580 = vadd.f32 0.0, %v4579
  %v4581 = vpop.f32.mrf.mxu0
  %v4582 = vpop.f32.mrf.mxu0
  %v4583 = vadd.f32 0.0, %v4582
  %v4584 = vpop.f32.mrf.mxu0
  %4585 = vdwg.mxu0
  %v4586 = vmul.f32 %v4572, 0.35355338
  %v4587 = vmul.f32 %v4575, 0.35355338
  %v4588 = vmul.f32 %v4580, 0.35355338
  %v4589 = vmul.f32 %v4583, 0.35355338
  %v4590 = vadd.f32 %v4586, %v2480
  %v4591 = vadd.f32 %v4587, %v2481
  %v4592 = vadd.f32 %v4588, %v2482
  %v4593 = vadd.f32 %v4589, %v2483
  %v4594 = vsel %vm2486, %v4590, -inf
  %4595 = vmax.xlane.f32.xlu0 %v4594
  %v4596 = vpop.xlane.xlu0 %4595
  %v4597 = vsel %vm2486, %v4591, -inf
  %4598 = vmax.xlane.f32.xlu0 %v4597
  %v4599 = vpop.xlane.xlu0 %4598
  %v4600 = vsel %vm2486, %v4592, -inf
  %4601 = vmax.xlane.f32.xlu0 %v4600
  %v4602 = vpop.xlane.xlu0 %4601
  %v4603 = vsel %vm2486, %v4593, -inf
  %4604 = vmax.xlane.f32.xlu0 %v4603
  %v4605 = vpop.xlane.xlu0 %4604
  %v4606 = vsub.f32 %v4590, %v4596
  %v4607 = vsub.f32 %v4591, %v4599
  %v4608 = vsub.f32 %v4592, %v4602
  %v4609 = vsub.f32 %v4593, %v4605
  %v4610 = vmul.f32 %v4606, 1.442695
  %v4611 = vpow.pop %v4610
  %v4612 = vmul.f32 %v4607, 1.442695
  %v4613 = vpow.pop %v4612
  %v4614 = vmul.f32 %v4608, 1.442695
  %v4615 = vpow.pop %v4614
  %v4616 = vmul.f32 %v4609, 1.442695
  %v4617 = vpow.pop %v4616
  %v4618 = vsel %vm2486, %v4611, 0.0
  %4619 = vadd.xlane.f32.xlu0 %v4618
  %v4620 = vpop.xlane.xlu0 %4619
  %v4621 = vsel %vm2486, %v4613, 0.0
  %4622 = vadd.xlane.f32.xlu0 %v4621
  %v4623 = vpop.xlane.xlu0 %4622
  %v4624 = vsel %vm2486, %v4615, 0.0
  %4625 = vadd.xlane.f32.xlu0 %v4624
  %v4626 = vpop.xlane.xlu0 %4625
  %v4627 = vsel %vm2486, %v4617, 0.0
  %4628 = vadd.xlane.f32.xlu0 %v4627
  %v4629 = vpop.xlane.xlu0 %4628
  %v4630 = vrcp.pop %v4620
  %v4631 = vrcp.pop %v4623
  %v4632 = vrcp.pop %v4626
  %v4633 = vrcp.pop %v4629
  %v4634 = vmul.f32 %v4611, %v4630
  %v4635 = vmul.f32 %v4613, %v4631
  %v4636 = vmul.f32 %v4615, %v4632
  %v4637 = vmul.f32 %v4617, %v4633
  %v4638 = vpack.c.bf16 %v4635, %v4634
  %v4639 = vpack.c.bf16 %v4637, %v4636
  %4640 = vrot.lane.b32.xlu0 %v3965, 40
  %v4641 = vpop.permute.xlu0 %4640
  %4642 = vrot.lane.b32.xlu0 %v3966, 40
  %v4643 = vpop.permute.xlu0 %4642
  %v4647 = vsel %vm2486, %v4638, 0
  %v4650 = vsel %vm2486, %v4639, 0
  %4652 = vmatprep.subr.bf16.mxu0 0
  %4653 = vmatpush1.bf16.msra.mxu0 0
  %4654 = vmatprep.subr.bf16.mxu0 0
  %4655 = vmatpush1.bf16.msra.mxu0 0
  %4656 = vmatprep.subr.bf16.mxu0 0
  %4657 = vmatpush1.bf16.msra.mxu0 0
  %4658 = vmatprep.subr.bf16.mxu0 0
  %4659 = vmatpush1.bf16.msra.mxu0 0
  %4660 = vmatprep.subr.bf16.mxu0 0
  %4661 = vmatpush1.bf16.msra.mxu0 0
  %4662 = vmatprep.subr.bf16.mxu0 0
  %4663 = vmatpush1.bf16.msra.mxu0 0
  %4664 = vmatprep.subr.bf16.mxu0 0
  %4665 = vmatpush1.bf16.msra.mxu0 %v4643
  %4666 = vmatprep.subr.bf16.mxu0 0
  %4667 = vmatpush1.bf16.msra.mxu0 %v4641
  %4668 = vmatprep.subr.bf16.mxu0 0
  %4669 = vmatpush2.bf16.msra.mxu0 0
  %4670 = vmatprep.subr.bf16.mxu0 0
  %4671 = vmatpush2.bf16.msra.mxu0 0
  %4672 = vmatprep.subr.bf16.mxu0 0
  %4673 = vmatpush2.bf16.msra.mxu0 0
  %4674 = vmatprep.subr.bf16.mxu0 0
  %4675 = vmatpush2.bf16.msra.mxu0 0
  %4676 = vmatprep.subr.bf16.mxu0 0
  %4677 = vmatpush2.bf16.msra.mxu0 0
  %4678 = vmatprep.subr.bf16.mxu0 0
  %4679 = vmatpush2.bf16.msra.mxu0 0
  %4680 = vmatprep.subr.bf16.mxu0 0
  %4681 = vmatpush2.bf16.msra.mxu0 0
  %4682 = vmatprep.subr.bf16.mxu0 0
  %4683 = vmatpush2.bf16.msra.mxu0 0
  %4684 = vmatprep.mubr.bf16.mxu0 0
  %4685 = vmatmul.mubr.bf16.gmra.mxu0 %v4647
  %v4686 = vpop.f32.mrf.mxu0
  %v4687 = vadd.f32 0.0, %v4686
  %v4688 = vpop.f32.mrf.mxu0
  %v4689 = vpop.f32.mrf.mxu0
  %v4690 = vadd.f32 0.0, %v4689
  %v4691 = vpop.f32.mrf.mxu0
  %4692 = vmatprep.mubr.bf16.mxu0 0
  %4693 = vmatmul.mubr.bf16.gmra.mxu0 %v4650
  %v4694 = vpop.f32.mrf.mxu0
  %v4695 = vadd.f32 0.0, %v4694
  %v4696 = vpop.f32.mrf.mxu0
  %v4697 = vpop.f32.mrf.mxu0
  %v4698 = vadd.f32 0.0, %v4697
  %v4699 = vpop.f32.mrf.mxu0
  %4700 = vdwg.mxu0
  %4705 = vrot.lane.b32.xlu0 %v4319, 8
  %v4706 = vpop.permute.xlu0 %4705
  %4707 = vrot.lane.b32.xlu0 %v4322, 8
  %v4708 = vpop.permute.xlu0 %4707
  %4709 = vrot.lane.b32.xlu0 %v4327, 8
  %v4710 = vpop.permute.xlu0 %4709
  %4711 = vrot.lane.b32.xlu0 %v4330, 8
  %v4712 = vpop.permute.xlu0 %4711
  %4721 = vrot.lane.b32.xlu0 %v4503, 16
  %v4722 = vpop.permute.xlu0 %4721
  %4723 = vrot.lane.b32.xlu0 %v4506, 16
  %v4724 = vpop.permute.xlu0 %4723
  %4725 = vrot.lane.b32.xlu0 %v4511, 16
  %v4726 = vpop.permute.xlu0 %4725
  %4727 = vrot.lane.b32.xlu0 %v4514, 16
  %v4728 = vpop.permute.xlu0 %4727
  %4737 = vrot.lane.b32.xlu0 %v4687, 24
  %v4738 = vpop.permute.xlu0 %4737
  %4739 = vrot.lane.b32.xlu0 %v4690, 24
  %v4740 = vpop.permute.xlu0 %4739
  %4741 = vrot.lane.b32.xlu0 %v4695, 24
  %v4742 = vpop.permute.xlu0 %4741
  %4743 = vrot.lane.b32.xlu0 %v4698, 24
  %v4744 = vpop.permute.xlu0 %4743
  %v4749 = vsel %vm2641, %v4135, %v4706
  %v4750 = vsel %vm2641, %v4138, %v4708
  %v4751 = vsel %vm2641, %v4143, %v4710
  %v4752 = vsel %vm2641, %v4146, %v4712
  %v4753 = vsel %vm3422, %v4749, %v4722
  %v4754 = vsel %vm3422, %v4750, %v4724
  %v4755 = vsel %vm3422, %v4751, %v4726
  %v4756 = vsel %vm3422, %v4752, %v4728
  %v4757 = vsel %vm3427, %v4753, %v4738
  %v4758 = vsel %vm3427, %v4754, %v4740
  %v4759 = vsel %vm3427, %v4755, %v4742
  %v4760 = vsel %vm3427, %v4756, %v4744
  %v4761 = vpack.c.bf16 %v4758, %v4757
  %v4762 = vpack.c.bf16 %v4760, %v4759
  %s4763 = scalar_lea.vmem %s8, 16
  %v4764 = vld [vmem:[%s4763] sm:$0xf]
  %v4765 = vld [vmem:[%s4763 + $0x4] sm:$0xf]
  %v4766 = vld [vmem:[%s4763 + $0x8] sm:$0xf]
  %v4767 = vld [vmem:[%s4763 + $0xc] sm:$0xf]
  %v4772 = vunpack.c.l.b16 %v4764
  %v4773 = vunpack.c.l.b16 %v4765
  %v4774 = vunpack.c.l.b16 %v4766
  %v4775 = vunpack.c.l.b16 %v4767
  %v4776 = vpack.c.b16 %v4773, %v4772
  %v4777 = vpack.c.b16 %v4775, %v4774
  %v4781 = vsel %vm2486, %v4761, 0
  %v4784 = vsel %vm2486, %v4762, 0
  %4786 = vmatprep.subr.bf16.mxu0 0
  %4787 = vmatpush1.bf16.msra.mxu0 0
  %4788 = vmatprep.subr.bf16.mxu0 0
  %4789 = vmatpush1.bf16.msra.mxu0 0
  %4790 = vmatprep.subr.bf16.mxu0 0
  %4791 = vmatpush1.bf16.msra.mxu0 0
  %4792 = vmatprep.subr.bf16.mxu0 0
  %4793 = vmatpush1.bf16.msra.mxu0 0
  %4794 = vmatprep.subr.bf16.mxu0 0
  %4795 = vmatpush1.bf16.msra.mxu0 0
  %4796 = vmatprep.subr.bf16.mxu0 0
  %4797 = vmatpush1.bf16.msra.mxu0 0
  %4798 = vmatprep.subr.bf16.mxu0 0
  %4799 = vmatpush1.bf16.msra.mxu0 %v4777
  %4800 = vmatprep.subr.bf16.mxu0 0
  %4801 = vmatpush1.bf16.msra.mxu0 %v4776
  %4802 = vmatprep.subr.bf16.mxu0 0
  %4803 = vmatpush2.bf16.msra.mxu0 0
  %4804 = vmatprep.subr.bf16.mxu0 0
  %4805 = vmatpush2.bf16.msra.mxu0 0
  %4806 = vmatprep.subr.bf16.mxu0 0
  %4807 = vmatpush2.bf16.msra.mxu0 0
  %4808 = vmatprep.subr.bf16.mxu0 0
  %4809 = vmatpush2.bf16.msra.mxu0 0
  %4810 = vmatprep.subr.bf16.mxu0 0
  %4811 = vmatpush2.bf16.msra.mxu0 0
  %4812 = vmatprep.subr.bf16.mxu0 0
  %4813 = vmatpush2.bf16.msra.mxu0 0
  %4814 = vmatprep.subr.bf16.mxu0 0
  %4815 = vmatpush2.bf16.msra.mxu0 0
  %4816 = vmatprep.subr.bf16.mxu0 0
  %4817 = vmatpush2.bf16.msra.mxu0 0
  %4818 = vmatprep.mubr.bf16.mxu0 0
  %4819 = vmatmul.mubr.bf16.gmra.mxu0 %v4781
  %v4820 = vpop.f32.mrf.mxu0
  %v4821 = vadd.f32 0.0, %v4820
  %v4822 = vpop.f32.mrf.mxu0
  %v4823 = vpop.f32.mrf.mxu0
  %v4824 = vadd.f32 0.0, %v4823
  %v4825 = vpop.f32.mrf.mxu0
  %4826 = vmatprep.mubr.bf16.mxu0 0
  %4827 = vmatmul.mubr.bf16.gmra.mxu0 %v4784
  %v4828 = vpop.f32.mrf.mxu0
  %v4829 = vadd.f32 0.0, %v4828
  %v4830 = vpop.f32.mrf.mxu0
  %v4831 = vpop.f32.mrf.mxu0
  %v4832 = vadd.f32 0.0, %v4831
  %v4833 = vpop.f32.mrf.mxu0
  %4834 = vdwg.mxu0
  %v4835 = vadd.f32 %v3811, %v4821
  %v4836 = vadd.f32 %v3812, %v4824
  %v4837 = vadd.f32 %v3813, %v4829
  %v4838 = vadd.f32 %v3814, %v4832
  %s4839 = scalar_lea.vmem %s9, 1
  %v4840 = vld [vmem:[%s4839] sm:$0x1]
  %v4842 = vlaneseq
  %v4843 = vshrl.u32 %v4842, 7
  %v4844 = vsub.s32 0, %v4843
  %v4845 = vrot.slane %v4840, %v4844
  %v4847 = vadd.f32 %v4835, %v4845
  %v4848 = vadd.f32 %v4836, %v4845
  %v4849 = vadd.f32 %v4837, %v4845
  %v4850 = vadd.f32 %v4838, %v4845
  %s4851 = scalar_lea.vmem %s10, 1
  %v4852 = vld [vmem:[%s4851] sm:$0x1]
  %s4853 = scalar_lea.vmem %s11, 1
  %v4854 = vld [vmem:[%s4853] sm:$0x1]
  %v4855 = vsel %vm2486, %v4847, 0.0
  %4856 = vadd.xlane.f32.xlu0 %v4855
  %v4857 = vpop.xlane.xlu0 %4856
  %v4858 = vsel %vm2486, %v4848, 0.0
  %4859 = vadd.xlane.f32.xlu0 %v4858
  %v4860 = vpop.xlane.xlu0 %4859
  %v4861 = vsel %vm2486, %v4849, 0.0
  %4862 = vadd.xlane.f32.xlu0 %v4861
  %v4863 = vpop.xlane.xlu0 %4862
  %v4864 = vsel %vm2486, %v4850, 0.0
  %4865 = vadd.xlane.f32.xlu0 %v4864
  %v4866 = vpop.xlane.xlu0 %4865
  %v4867 = vmul.f32 %v4857, %v2499
  %v4868 = vmul.f32 %v4860, %v2499
  %v4869 = vmul.f32 %v4863, %v2499
  %v4870 = vmul.f32 %v4866, %v2499
  %v4871 = vsub.f32 %v4847, %v4867
  %v4872 = vsub.f32 %v4848, %v4868
  %v4873 = vsub.f32 %v4849, %v4869
  %v4874 = vsub.f32 %v4850, %v4870
  %v4875 = vmul.f32 %v4871, %v4871
  %v4876 = vmul.f32 %v4872, %v4872
  %v4877 = vmul.f32 %v4873, %v4873
  %v4878 = vmul.f32 %v4874, %v4874
  %v4879 = vsel %vm2486, %v4875, 0.0
  %4880 = vadd.xlane.f32.xlu0 %v4879
  %v4881 = vpop.xlane.xlu0 %4880
  %v4882 = vsel %vm2486, %v4876, 0.0
  %4883 = vadd.xlane.f32.xlu0 %v4882
  %v4884 = vpop.xlane.xlu0 %4883
  %v4885 = vsel %vm2486, %v4877, 0.0
  %4886 = vadd.xlane.f32.xlu0 %v4885
  %v4887 = vpop.xlane.xlu0 %4886
  %v4888 = vsel %vm2486, %v4878, 0.0
  %4889 = vadd.xlane.f32.xlu0 %v4888
  %v4890 = vpop.xlane.xlu0 %4889
  %v4891 = vmul.f32 %v4881, %v2499
  %v4892 = vmul.f32 %v4884, %v2499
  %v4893 = vmul.f32 %v4887, %v2499
  %v4894 = vmul.f32 %v4890, %v2499
  %v4895 = vadd.f32 %v4891, 1e-05
  %v4896 = vadd.f32 %v4892, 1e-05
  %v4897 = vadd.f32 %v4893, 1e-05
  %v4898 = vadd.f32 %v4894, 1e-05
  %v4899 = vrsqrt.pop %v4895
  %v4900 = vrsqrt.pop %v4896
  %v4901 = vrsqrt.pop %v4897
  %v4902 = vrsqrt.pop %v4898
  %v4903 = vmul.f32 %v4871, %v4899
  %v4904 = vmul.f32 %v4872, %v4900
  %v4905 = vmul.f32 %v4873, %v4901
  %v4906 = vmul.f32 %v4874, %v4902
  %v4908 = vlaneseq
  %v4909 = vshrl.u32 %v4908, 7
  %v4910 = vsub.s32 0, %v4909
  %v4911 = vrot.slane %v4852, %v4910
  %v4913 = vmul.f32 %v4903, %v4911
  %v4914 = vmul.f32 %v4904, %v4911
  %v4915 = vmul.f32 %v4905, %v4911
  %v4916 = vmul.f32 %v4906, %v4911
  %v4918 = vlaneseq
  %v4919 = vshrl.u32 %v4918, 7
  %v4920 = vsub.s32 0, %v4919
  %v4921 = vrot.slane %v4854, %v4920
  %v4923 = vadd.f32 %v4913, %v4921
  %v4924 = vadd.f32 %v4914, %v4921
  %v4925 = vadd.f32 %v4915, %v4921
  %v4926 = vadd.f32 %v4916, %v4921
  %v4927 = vpack.c.bf16 %v4924, %v4923
  %v4928 = vpack.c.bf16 %v4926, %v4925
  %s4929 = scalar_lea.vmem %s12, 16
  %v4930 = vld [vmem:[%s4929] sm:$0xf]
  %v4931 = vld [vmem:[%s4929 + $0x4] sm:$0xf]
  %v4932 = vld [vmem:[%s4929 + $0x8] sm:$0xf]
  %v4933 = vld [vmem:[%s4929 + $0xc] sm:$0xf]
  %s4934 = scalar_lea.vmem %s13, 1
  %v4935 = vld [vmem:[%s4934] sm:$0x1]
  %v4937 = vlaneseq
  %v4938 = vshrl.u32 %v4937, 7
  %v4939 = vsub.s32 0, %v4938
  %v4940 = vrot.slane %v4935, %v4939
  %v4946 = vunpack.c.l.b16 %v4930
  %v4947 = vunpack.c.l.b16 %v4931
  %v4948 = vunpack.c.l.b16 %v4932
  %v4949 = vunpack.c.l.b16 %v4933
  %v4950 = vpack.c.b16 %v4947, %v4946
  %v4951 = vpack.c.b16 %v4949, %v4948
  %v4955 = vsel %vm2486, %v4927, 0
  %v4958 = vsel %vm2486, %v4928, 0
  %4960 = vmatprep.subr.bf16.mxu0 0
  %4961 = vmatpush1.bf16.msra.mxu0 0
  %4962 = vmatprep.subr.bf16.mxu0 0
  %4963 = vmatpush1.bf16.msra.mxu0 0
  %4964 = vmatprep.subr.bf16.mxu0 0
  %4965 = vmatpush1.bf16.msra.mxu0 0
  %4966 = vmatprep.subr.bf16.mxu0 0
  %4967 = vmatpush1.bf16.msra.mxu0 0
  %4968 = vmatprep.subr.bf16.mxu0 0
  %4969 = vmatpush1.bf16.msra.mxu0 0
  %4970 = vmatprep.subr.bf16.mxu0 0
  %4971 = vmatpush1.bf16.msra.mxu0 0
  %4972 = vmatprep.subr.bf16.mxu0 0
  %4973 = vmatpush1.bf16.msra.mxu0 %v4951
  %4974 = vmatprep.subr.bf16.mxu0 0
  %4975 = vmatpush1.bf16.msra.mxu0 %v4950
  %4976 = vmatprep.subr.bf16.mxu0 0
  %4977 = vmatpush2.bf16.msra.mxu0 0
  %4978 = vmatprep.subr.bf16.mxu0 0
  %4979 = vmatpush2.bf16.msra.mxu0 0
  %4980 = vmatprep.subr.bf16.mxu0 0
  %4981 = vmatpush2.bf16.msra.mxu0 0
  %4982 = vmatprep.subr.bf16.mxu0 0
  %4983 = vmatpush2.bf16.msra.mxu0 0
  %4984 = vmatprep.subr.bf16.mxu0 0
  %4985 = vmatpush2.bf16.msra.mxu0 0
  %4986 = vmatprep.subr.bf16.mxu0 0
  %4987 = vmatpush2.bf16.msra.mxu0 0
  %4988 = vmatprep.subr.bf16.mxu0 0
  %4989 = vmatpush2.bf16.msra.mxu0 0
  %4990 = vmatprep.subr.bf16.mxu0 0
  %4991 = vmatpush2.bf16.msra.mxu0 0
  %4992 = vmatprep.mubr.bf16.mxu0 0
  %4993 = vmatmul.mubr.bf16.gmra.mxu0 %v4955
  %v4994 = vpop.f32.mrf.mxu0
  %v4995 = vadd.f32 %v4940, %v4994
  %v4996 = vpop.f32.mrf.mxu0
  %v4997 = vpop.f32.mrf.mxu0
  %v4998 = vadd.f32 %v4940, %v4997
  %v4999 = vpop.f32.mrf.mxu0
  %5000 = vmatprep.mubr.bf16.mxu0 0
  %5001 = vmatmul.mubr.bf16.gmra.mxu0 %v4958
  %v5002 = vpop.f32.mrf.mxu0
  %v5003 = vadd.f32 %v4940, %v5002
  %v5004 = vpop.f32.mrf.mxu0
  %v5005 = vpop.f32.mrf.mxu0
  %v5006 = vadd.f32 %v4940, %v5005
  %v5007 = vpop.f32.mrf.mxu0
  %5008 = vdwg.mxu0
  %v5009 = vmul.f32 %v4995, 0.5
  %v5010 = vmul.f32 %v4998, 0.5
  %v5011 = vmul.f32 %v5003, 0.5
  %v5012 = vmul.f32 %v5006, 0.5
  %v5013 = vmul.f32 %v4995, 0.044715
  %v5014 = vmul.f32 %v4998, 0.044715
  %v5015 = vmul.f32 %v5003, 0.044715
  %v5016 = vmul.f32 %v5006, 0.044715
  %v5017 = vmul.f32 %v5013, %v4995
  %v5018 = vmul.f32 %v5014, %v4998
  %v5019 = vmul.f32 %v5015, %v5003
  %v5020 = vmul.f32 %v5016, %v5006
  %v5021 = vmul.f32 %v5017, %v4995
  %v5022 = vmul.f32 %v5018, %v4998
  %v5023 = vmul.f32 %v5019, %v5003
  %v5024 = vmul.f32 %v5020, %v5006
  %v5025 = vadd.f32 %v4995, %v5021
  %v5026 = vadd.f32 %v4998, %v5022
  %v5027 = vadd.f32 %v5003, %v5023
  %v5028 = vadd.f32 %v5006, %v5024
  %v5029 = vmul.f32 %v5025, 0.7978846
  %v5030 = vmul.f32 %v5026, 0.7978846
  %v5031 = vmul.f32 %v5027, 0.7978846
  %v5032 = vmul.f32 %v5028, 0.7978846
  %v5033 = vtanh.pop %v5029
  %v5034 = vtanh.pop %v5030
  %v5035 = vtanh.pop %v5031
  %v5036 = vtanh.pop %v5032
  %v5037 = vadd.f32 %v5033, 1.0
  %v5038 = vadd.f32 %v5034, 1.0
  %v5039 = vadd.f32 %v5035, 1.0
  %v5040 = vadd.f32 %v5036, 1.0
  %v5041 = vmul.f32 %v5009, %v5037
  %v5042 = vmul.f32 %v5010, %v5038
  %v5043 = vmul.f32 %v5011, %v5039
  %v5044 = vmul.f32 %v5012, %v5040
  %v5045 = vpack.c.bf16 %v5042, %v5041
  %v5046 = vpack.c.bf16 %v5044, %v5043
  %s5047 = scalar_lea.vmem %s14, 32
  %v5048 = vld [vmem:[%s5047] sm:$0xf]
  %v5049 = vld [vmem:[%s5047 + $0x4] sm:$0xf]
  %v5050 = vld [vmem:[%s5047 + $0x8] sm:$0xf]
  %v5051 = vld [vmem:[%s5047 + $0xc] sm:$0xf]
  %v5052 = vld [vmem:[%s5047 + $0x10] sm:$0xf]
  %v5053 = vld [vmem:[%s5047 + $0x14] sm:$0xf]
  %v5054 = vld [vmem:[%s5047 + $0x18] sm:$0xf]
  %v5055 = vld [vmem:[%s5047 + $0x1c] sm:$0xf]
  %v5064 = vunpack.c.l.b16 %v5048
  %v5065 = vunpack.c.l.b16 %v5049
  %v5066 = vunpack.c.l.b16 %v5050
  %v5067 = vunpack.c.l.b16 %v5051
  %v5068 = vunpack.c.l.b16 %v5052
  %v5069 = vunpack.c.l.b16 %v5053
  %v5070 = vunpack.c.l.b16 %v5054
  %v5071 = vunpack.c.l.b16 %v5055
  %v5072 = vpack.c.b16 %v5065, %v5064
  %v5073 = vpack.c.b16 %v5067, %v5066
  %v5074 = vpack.c.b16 %v5069, %v5068
  %v5075 = vpack.c.b16 %v5071, %v5070
  %v5081 = vsel %vm3744, %v5045, 0
  %v5084 = vsel %vm3744, %v5046, 0
  %5086 = vmatprep.subr.bf16.mxu0 0
  %5087 = vmatpush1.bf16.msra.mxu0 0
  %5088 = vmatprep.subr.bf16.mxu0 0
  %5089 = vmatpush1.bf16.msra.mxu0 0
  %5090 = vmatprep.subr.bf16.mxu0 0
  %5091 = vmatpush1.bf16.msra.mxu0 0
  %5092 = vmatprep.subr.bf16.mxu0 0
  %5093 = vmatpush1.bf16.msra.mxu0 0
  %5094 = vmatprep.subr.bf16.mxu0 0
  %5095 = vmatpush1.bf16.msra.mxu0 %v5075
  %5096 = vmatprep.subr.bf16.mxu0 0
  %5097 = vmatpush1.bf16.msra.mxu0 %v5074
  %5098 = vmatprep.subr.bf16.mxu0 0
  %5099 = vmatpush1.bf16.msra.mxu0 %v5073
  %5100 = vmatprep.subr.bf16.mxu0 0
  %5101 = vmatpush1.bf16.msra.mxu0 %v5072
  %5102 = vmatprep.subr.bf16.mxu0 0
  %5103 = vmatpush2.bf16.msra.mxu0 0
  %5104 = vmatprep.subr.bf16.mxu0 0
  %5105 = vmatpush2.bf16.msra.mxu0 0
  %5106 = vmatprep.subr.bf16.mxu0 0
  %5107 = vmatpush2.bf16.msra.mxu0 0
  %5108 = vmatprep.subr.bf16.mxu0 0
  %5109 = vmatpush2.bf16.msra.mxu0 0
  %5110 = vmatprep.subr.bf16.mxu0 0
  %5111 = vmatpush2.bf16.msra.mxu0 0
  %5112 = vmatprep.subr.bf16.mxu0 0
  %5113 = vmatpush2.bf16.msra.mxu0 0
  %5114 = vmatprep.subr.bf16.mxu0 0
  %5115 = vmatpush2.bf16.msra.mxu0 0
  %5116 = vmatprep.subr.bf16.mxu0 0
  %5117 = vmatpush2.bf16.msra.mxu0 0
  %5118 = vmatprep.mubr.bf16.mxu0 0
  %5119 = vmatmul.mubr.bf16.gmra.mxu0 %v5081
  %v5120 = vpop.f32.mrf.mxu0
  %v5121 = vadd.f32 0.0, %v5120
  %v5122 = vpop.f32.mrf.mxu0
  %v5123 = vpop.f32.mrf.mxu0
  %v5124 = vadd.f32 0.0, %v5123
  %v5125 = vpop.f32.mrf.mxu0
  %5126 = vmatprep.mubr.bf16.mxu0 0
  %5127 = vmatmul.mubr.bf16.gmra.mxu0 %v5084
  %v5128 = vpop.f32.mrf.mxu0
  %v5129 = vadd.f32 0.0, %v5128
  %v5130 = vpop.f32.mrf.mxu0
  %v5131 = vpop.f32.mrf.mxu0
  %v5132 = vadd.f32 0.0, %v5131
  %v5133 = vpop.f32.mrf.mxu0
  %5134 = vdwg.mxu0
  %v5135 = vadd.f32 %v4847, %v5121
  %v5136 = vadd.f32 %v4848, %v5124
  %v5137 = vadd.f32 %v4849, %v5129
  %v5138 = vadd.f32 %v4850, %v5132
  %s5139 = scalar_lea.vmem %s15, 1
  %v5140 = vld [vmem:[%s5139] sm:$0x1]
  %v5142 = vlaneseq
  %v5143 = vshrl.u32 %v5142, 7
  %v5144 = vsub.s32 0, %v5143
  %v5145 = vrot.slane %v5140, %v5144
  %v5147 = vadd.f32 %v5135, %v5145
  %v5148 = vadd.f32 %v5136, %v5145
  %v5149 = vadd.f32 %v5137, %v5145
  %v5150 = vadd.f32 %v5138, %v5145
  %5151 = vst.msk [vmem:[%s18] sm:$0xff] %vm2486, %v5147
  %5152 = vst.msk [vmem:[%s18 + $0x8] sm:$0xff] %vm2486, %v5148
  %5153 = vst.msk [vmem:[%s18 + $0x10] sm:$0xff] %vm2486, %v5149
  %5154 = vst.msk [vmem:[%s18 + $0x18] sm:$0xff] %vm2486, %v5150
  %v5155 = vld [vmem:[%s4] sm:$0x3]
  %v5157 = vsel %vm2486, %v5155, 0
  %5159 = vmatprep.subr.mxu0 0.0
  %5160 = vmatpush1.msra.mxu0 0.0
  %5161 = vmatprep.subr.mxu0 0.0
  %5162 = vmatpush1.msra.mxu0 0.0
  %5163 = vmatprep.subr.mxu0 0.0
  %5164 = vmatpush1.msra.mxu0 0.0
  %5165 = vmatprep.subr.mxu0 0.0
  %5166 = vmatpush1.msra.mxu0 0.0
  %5167 = vmatprep.subr.mxu0 0.0
  %5168 = vmatpush1.msra.mxu0 0.0
  %5169 = vmatprep.subr.mxu0 0.0
  %5170 = vmatpush1.msra.mxu0 0.0
  %5171 = vmatprep.subr.mxu0 0.0
  %5172 = vmatpush1.msra.mxu0 0.0
  %5173 = vmatprep.subr.mxu0 0.0
  %5174 = vmatpush1.msra.mxu0 0.0
  %5175 = vmatprep.subr.mxu0 0.0
  %5176 = vmatpush1.msra.mxu0 0.0
  %5177 = vmatprep.subr.mxu0 0.0
  %5178 = vmatpush1.msra.mxu0 0.0
  %5179 = vmatprep.subr.mxu0 0.0
  %5180 = vmatpush1.msra.mxu0 0.0
  %5181 = vmatprep.subr.mxu0 0.0
  %5182 = vmatpush1.msra.mxu0 0.0
  %5183 = vmatprep.subr.mxu0 0.0
  %5184 = vmatpush1.msra.mxu0 %v5150
  %5185 = vmatprep.subr.mxu0 0.0
  %5186 = vmatpush1.msra.mxu0 %v5149
  %5187 = vmatprep.subr.mxu0 0.0
  %5188 = vmatpush1.msra.mxu0 %v5148
  %5189 = vmatprep.subr.mxu0 0.0
  %5190 = vmatpush1.msra.mxu0 %v5147
  %5191 = vmatprep.subr.mxu0 0.0
  %5192 = vmatpush2.msra.mxu0 0.0
  %5193 = vmatprep.subr.mxu0 0.0
  %5194 = vmatpush2.msra.mxu0 0.0
  %5195 = vmatprep.subr.mxu0 0.0
  %5196 = vmatpush2.msra.mxu0 0.0
  %5197 = vmatprep.subr.mxu0 0.0
  %5198 = vmatpush2.msra.mxu0 0.0
  %5199 = vmatprep.subr.mxu0 0.0
  %5200 = vmatpush2.msra.mxu0 0.0
  %5201 = vmatprep.subr.mxu0 0.0
  %5202 = vmatpush2.msra.mxu0 0.0
  %5203 = vmatprep.subr.mxu0 0.0
  %5204 = vmatpush2.msra.mxu0 0.0
  %5205 = vmatprep.subr.mxu0 0.0
  %5206 = vmatpush2.msra.mxu0 0.0
  %5207 = vmatprep.subr.mxu0 0.0
  %5208 = vmatpush2.msra.mxu0 0.0
  %5209 = vmatprep.subr.mxu0 0.0
  %5210 = vmatpush2.msra.mxu0 0.0
  %5211 = vmatprep.subr.mxu0 0.0
  %5212 = vmatpush2.msra.mxu0 0.0
  %5213 = vmatprep.subr.mxu0 0.0
  %5214 = vmatpush2.msra.mxu0 0.0
  %5215 = vmatprep.subr.mxu0 0.0
  %5216 = vmatpush2.msra.mxu0 0.0
  %5217 = vmatprep.subr.mxu0 0.0
  %5218 = vmatpush2.msra.mxu0 0.0
  %5219 = vmatprep.subr.mxu0 0.0
  %5220 = vmatpush2.msra.mxu0 0.0
  %5221 = vmatprep.subr.mxu0 0.0
  %5222 = vmatpush2.msra.mxu0 0.0
  %5223 = vmatprep.mubr.f32.mxu0 0.0
  %5224 = vmatmul.mubr.f32.gmra.mxu0 %v5157
  %v5225 = vpop.f32.mrf.mxu0
  %v5226 = vadd.f32 0.0, %v5225
  %v5227 = vpop.f32.mrf.mxu0
  %5228 = vdwg.mxu0
  %v5229 = vld [vmem:[%s16] sm:$0xff]
  %v5230 = vld [vmem:[%s16 + $0x8] sm:$0xff]
  %v5231 = vld [vmem:[%s16 + $0x10] sm:$0xff]
  %v5232 = vld [vmem:[%s16 + $0x18] sm:$0xff]
  %v5233 = vld [vmem:[#allocation2] sm:$0x1]
  %v5235 = vlaneseq
  %v5236 = vshrl.u32 %v5235, 7
  %v5237 = vsub.s32 0, %v5236
  %v5238 = vrot.slane %v5233, %v5237
  %v5241 = vsel %vm2486, %v5226, 0
  %5243 = vmatprep.subr.mxu0 0.0
  %5244 = vmatpush1.msra.mxu0 0.0
  %5245 = vmatprep.subr.mxu0 0.0
  %5246 = vmatpush1.msra.mxu0 0.0
  %5247 = vmatprep.subr.mxu0 0.0
  %5248 = vmatpush1.msra.mxu0 0.0
  %5249 = vmatprep.subr.mxu0 0.0
  %5250 = vmatpush1.msra.mxu0 0.0
  %5251 = vmatprep.subr.mxu0 0.0
  %5252 = vmatpush1.msra.mxu0 0.0
  %5253 = vmatprep.subr.mxu0 0.0
  %5254 = vmatpush1.msra.mxu0 0.0
  %5255 = vmatprep.subr.mxu0 0.0
  %5256 = vmatpush1.msra.mxu0 0.0
  %5257 = vmatprep.subr.mxu0 0.0
  %5258 = vmatpush1.msra.mxu0 0.0
  %5259 = vmatprep.subr.mxu0 0.0
  %5260 = vmatpush1.msra.mxu0 0.0
  %5261 = vmatprep.subr.mxu0 0.0
  %5262 = vmatpush1.msra.mxu0 0.0
  %5263 = vmatprep.subr.mxu0 0.0
  %5264 = vmatpush1.msra.mxu0 0.0
  %5265 = vmatprep.subr.mxu0 0.0
  %5266 = vmatpush1.msra.mxu0 0.0
  %5267 = vmatprep.subr.mxu0 0.0
  %5268 = vmatpush1.msra.mxu0 %v5232
  %5269 = vmatprep.subr.mxu0 0.0
  %5270 = vmatpush1.msra.mxu0 %v5231
  %5271 = vmatprep.subr.mxu0 0.0
  %5272 = vmatpush1.msra.mxu0 %v5230
  %5273 = vmatprep.subr.mxu0 0.0
  %5274 = vmatpush1.msra.mxu0 %v5229
  %5275 = vmatprep.subr.mxu0 0.0
  %5276 = vmatpush2.msra.mxu0 0.0
  %5277 = vmatprep.subr.mxu0 0.0
  %5278 = vmatpush2.msra.mxu0 0.0
  %5279 = vmatprep.subr.mxu0 0.0
  %5280 = vmatpush2.msra.mxu0 0.0
  %5281 = vmatprep.subr.mxu0 0.0
  %5282 = vmatpush2.msra.mxu0 0.0
  %5283 = vmatprep.subr.mxu0 0.0
  %5284 = vmatpush2.msra.mxu0 0.0
  %5285 = vmatprep.subr.mxu0 0.0
  %5286 = vmatpush2.msra.mxu0 0.0
  %5287 = vmatprep.subr.mxu0 0.0
  %5288 = vmatpush2.msra.mxu0 0.0
  %5289 = vmatprep.subr.mxu0 0.0
  %5290 = vmatpush2.msra.mxu0 0.0
  %5291 = vmatprep.subr.mxu0 0.0
  %5292 = vmatpush2.msra.mxu0 0.0
  %5293 = vmatprep.subr.mxu0 0.0
  %5294 = vmatpush2.msra.mxu0 0.0
  %5295 = vmatprep.subr.mxu0 0.0
  %5296 = vmatpush2.msra.mxu0 0.0
  %5297 = vmatprep.subr.mxu0 0.0
  %5298 = vmatpush2.msra.mxu0 0.0
  %5299 = vmatprep.subr.mxu0 0.0
  %5300 = vmatpush2.msra.mxu0 0.0
  %5301 = vmatprep.subr.mxu0 0.0
  %5302 = vmatpush2.msra.mxu0 0.0
  %5303 = vmatprep.subr.mxu0 0.0
  %5304 = vmatpush2.msra.mxu0 0.0
  %5305 = vmatprep.subr.mxu0 0.0
  %5306 = vmatpush2.msra.mxu0 0.0
  %5307 = vmatprep.mubr.f32.mxu0 0.0
  %5308 = vmatmul.mubr.f32.gmra.mxu0 %v5241
  %v5309 = vpop.f32.mrf.mxu0
  %v5310 = vadd.f32 %v5238, %v5309
  %v5311 = vpop.f32.mrf.mxu0
  %5312 = vdwg.mxu0
  %vm5313 = vcmask 1024
  %5314 = vst.msk [vmem:[%s19] sm:$0x3] %vm5313, %v5310
  // Predicated region
  $region74: #{transforensics_forward.1} parent=0 // pred_check
    _
  $region75: #{transforensics_forward.1} parent=0 // pred_check_branch
    %5316 = sbr.rel (0) target = $region77
  $region76: #{transforensics_forward.1} parent=0 // pred_region
    _
  $region77: #{transforensics_forward.1} parent=0 // pred_fallthru
    _
  // Predicated region
  $region78: #{transforensics_forward.1} parent=0 // pred_check
    _
  $region79: #{transforensics_forward.1} parent=0 // pred_check_branch
    %5318 = sbr.rel (0) target = $region81
  $region80: #{transforensics_forward.1} parent=0 // pred_region
    _
  $region81: #{transforensics_forward.1} parent=0 // pred_fallthru
    _
  // Predicated region
  $region82: #{transforensics_forward.1} parent=0 // pred_check
    _
  $region83: #{transforensics_forward.1} parent=0 // pred_check_branch
    %5320 = sbr.rel (0) target = $region85
  $region84: #{transforensics_forward.1} parent=0 // pred_region
    _
  $region85: #{transforensics_forward.1} parent=0 // pred_fallthru
    _
  // Predicated region
  $region86: #{transforensics_forward.1} parent=0 // pred_check
    _
  $region87: #{transforensics_forward.1} parent=0 // pred_check_branch
    %5322 = sbr.rel (0) target = $region89
  $region88: #{transforensics_forward.1} parent=0 // pred_region
    _
  $region89: #{transforensics_forward.1} parent=0 // pred_fallthru
    _

</llo_original>
